<compile_context>
chip_gen: v7x
topology: tpu7x:2x2x1
jax: 0.10.0
libtpu: 0.0.40
codegen_flags: <defaults>
</compile_context>

<pallas_src>
import functools

import jax
import jax.numpy as jnp
import numpy as np
from jax.experimental import pallas as pl
from jax.experimental.pallas import tpu as pltpu


# ----------------------------- kernel body -----------------------------
def encoder_layer_kernel(x_ref, wq_ref, wkv_ref, wout_ref, w1_ref, w2_ref,
                         vecs_ref, bkv_ref, b1_ref, o_ref,
                         k_scr, v_scr, attn_scr, *, nhead, tq, eps):
    S, E = x_ref.shape
    dh = E // nhead
    qi = pl.program_id(1)

    # --- K/V projection, cached once per batch element (first query tile) ---
    @pl.when(qi == 0)
    def _():
        xs = x_ref[...].astype(jnp.bfloat16)                          # (S, E)
        kv = jnp.dot(xs, wkv_ref[...],
                     preferred_element_type=jnp.float32) + bkv_ref[...]  # (S, 2E)
        for h in range(nhead):
            k_scr[h, :, :] = kv[:, h * dh:(h + 1) * dh].astype(jnp.bfloat16)
            v_scr[h, :, :] = kv[:, E + h * dh:E + (h + 1) * dh].astype(jnp.bfloat16)

    # --- packed small vectors: [bq(scaled), bout, g1, be1, b2, g2, be2, 0] ---
    vecs = vecs_ref[...]                                              # (8, E)
    bq, bout = vecs[0:1, :], vecs[1:2, :]
    g1, be1 = vecs[2:3, :], vecs[3:4, :]
    b2 = vecs[4:5, :]
    g2, be2 = vecs[5:6, :], vecs[6:7, :]

    # --- query-tile rows sliced from the resident full-sequence block ---
    row0 = pl.multiple_of(qi * tq, tq)
    x = x_ref[pl.ds(row0, tq), :].astype(jnp.float32)                 # (tq, E) residual

    # --- Q projection (1/sqrt(dh) already folded into Wq / bq) ---
    q2 = jnp.dot(x.astype(jnp.bfloat16), wq_ref[...],
                 preferred_element_type=jnp.float32) + bq             # (tq, E)
    q = jnp.stack([q2[:, h * dh:(h + 1) * dh] for h in range(nhead)],
                  axis=0).astype(jnp.bfloat16)                        # (H, tq, dh)

    # --- head-batched attention against cached K/V (no mask, no dropout) ---
    k = k_scr[...]                                                    # (H, S, dh) bf16
    v = v_scr[...]
    s = jax.lax.dot_general(q, k, (((2,), (2,)), ((0,), (0,))),
                            preferred_element_type=jnp.float32)       # (H, tq, S)
    m = jnp.max(s, axis=-1, keepdims=True)
    p = jnp.exp(s - m)
    denom = jnp.sum(p, axis=-1, keepdims=True)
    p = (p * pl.reciprocal(denom, approx=True)).astype(jnp.bfloat16)
    o = jax.lax.dot_general(p, v, (((2,), (1,)), ((0,), (0,))),
                            preferred_element_type=jnp.float32)       # (H, tq, dh)

    # per-head results written straight into lane-offset columns (no concat)
    for h in range(nhead):
        attn_scr[:, h * dh:(h + 1) * dh] = o[h]

    # --- per-layer out projection + residual + post-LN1 (one-pass stats) ---
    attn = jnp.dot(attn_scr[...].astype(jnp.bfloat16), wout_ref[...],
                   preferred_element_type=jnp.float32) + bout
    y = x + attn
    mu = jnp.mean(y, axis=-1, keepdims=True)
    var = jnp.mean(y * y, axis=-1, keepdims=True) - mu * mu
    y = (y - mu) * jax.lax.rsqrt(var + eps) * g1 + be1

    # --- FFN (relu); bf16 matmul inputs, f32 accumulation, h1 kept bf16 ---
    h1 = jnp.maximum(
        jnp.dot(y.astype(jnp.bfloat16), w1_ref[...],
                preferred_element_type=jnp.float32) + b1_ref[...], 0.0
    ).astype(jnp.bfloat16)                                            # (tq, F)
    ff = jnp.dot(h1, w2_ref[...], preferred_element_type=jnp.float32) + b2

    # --- residual + post-LN2 ---
    z = y + ff
    mu2 = jnp.mean(z, axis=-1, keepdims=True)
    var2 = jnp.mean(z * z, axis=-1, keepdims=True) - mu2 * mu2
    z = (z - mu2) * jax.lax.rsqrt(var2 + eps) * g2 + be2

    o_ref[...] = z.astype(o_ref.dtype)


# ----------------------------- wrapper -----------------------------
def _pick_q_tile(S):
    if S <= 256:
        return S
    for t in (256, 128, 64, 32, 16, 8):
        if S % t == 0:
            return t
    return S


def _vmem_capacity_bytes():
    try:
        return int(pltpu.get_tpu_info().vmem_capacity_bytes)
    except Exception:
        return 64 * 1024 * 1024


def _vmem_limit_bytes(S, E, F, tq, nhead):
    bf, f4 = 2, 4
    weights = (E * E + E * 2 * E + E * E + E * F + F * E) * bf \
        + (8 * E + 8 * 2 * E + 8 * F) * f4          # (1, .) operands pad to 8 sublanes
    io = 2 * S * E * f4 + 2 * tq * E * f4           # x (dbl-buffered) + output
    scratch = 2 * S * E * bf + tq * E * f4          # K/V caches + attn scratch
    transients = nhead * tq * S * (f4 + bf) + S * 2 * E * f4 \
        + tq * F * (f4 + bf) + 6 * tq * E * f4
    est = weights + io + scratch + transients
    cap = int(0.9 * _vmem_capacity_bytes())
    return min(cap, max(32 * 1024 * 1024, int(1.5 * est) + (4 << 20)))


def prepare_layer_params(p, *, nhead):
    """One-time weight prep: bf16 cast, scale folded into Wq/bq, vectors packed."""
    E = p["wout"].shape[0]
    dh = E // nhead
    scale = 1.0 / float(np.sqrt(dh))
    vecs = jnp.concatenate(
        [p["bqkv"][:, :E] * scale, p["bout"], p["gamma1"], p["beta1"],
         p["b2"], p["gamma2"], p["beta2"], jnp.zeros((1, E), jnp.float32)],
        axis=0)                                                        # (8, E)
    return {
        "wq":   (p["wqkv"][:, :E] * scale).astype(jnp.bfloat16),
        "wkv":  p["wqkv"][:, E:].astype(jnp.bfloat16),
        "wout": p["wout"].astype(jnp.bfloat16),
        "w1":   p["w1"].astype(jnp.bfloat16),
        "w2":   p["w2"].astype(jnp.bfloat16),
        "vecs": vecs,
        "bkv":  p["bqkv"][:, E:],
        "b1":   p["b1"],
    }


def encoder_layer_forward(x, p, *, nhead, eps=1e-5):
    B, S, E = x.shape
    F = p["w1"].shape[1]
    assert E % nhead == 0
    tq = _pick_q_tile(S)
    nq = S // tq
    kernel = functools.partial(encoder_layer_kernel, nhead=nhead, tq=tq, eps=eps)

    def resident(shape):
        # Grid-invariant operand: constant block index + single-buffered.
        return pl.BlockSpec(shape, lambda b, q: (0,) * len(shape),
                            pipeline_mode=pl.Buffered(1))

    return pl.pallas_call(
        kernel,
        out_shape=jax.ShapeDtypeStruct((B, S, E), x.dtype),
        grid_spec=pltpu.PrefetchScalarGridSpec(
            num_scalar_prefetch=0,
            grid=(B, nq),
            in_specs=[
                pl.BlockSpec((pl.Squeezed(), S, E), lambda b, q: (b, 0, 0)),  # x
                resident((E, E)),        # Wq (bf16, scale folded)
                resident((E, 2 * E)),    # Wkv (bf16)
                resident((E, E)),        # Wout (bf16)
                resident((E, F)),        # W1 (bf16)
                resident((F, E)),        # W2 (bf16)
                resident((8, E)),        # packed (1, E) vectors (f32)
                resident((1, 2 * E)),    # bkv (f32)
                resident((1, F)),        # b1 (f32)
            ],
            out_specs=pl.BlockSpec((pl.Squeezed(), tq, E), lambda b, q: (b, q, 0)),
            scratch_shapes=[
                pltpu.VMEM((nhead, S, E // nhead), jnp.bfloat16),   # K cache
                pltpu.VMEM((nhead, S, E // nhead), jnp.bfloat16),   # V cache
                pltpu.VMEM((tq, E), jnp.float32),                   # attn head writeback
            ],
        ),
        compiler_params=pltpu.CompilerParams(
            dimension_semantics=("parallel", "arbitrary"),
            vmem_limit_bytes=_vmem_limit_bytes(S, E, F, tq, nhead)),
    )(x, p["wq"], p["wkv"], p["wout"], p["w1"], p["w2"],
      p["vecs"], p["bkv"], p["b1"])


def transformer_encoder_forward(x, layer_params, *, nhead, eps=1e-5):
    # extra_layer_norm=None -> no final norm.
    out = x
    for p in layer_params:
        out = encoder_layer_forward(out, p, nhead=nhead, eps=eps)
    return out


# ------------------------- pure-JAX reference -------------------------
def _layer_norm(x, g, b, eps):
    mu = jnp.mean(x, axis=-1, keepdims=True)
    var = jnp.mean((x - mu) ** 2, axis=-1, keepdims=True)
    return (x - mu) * jax.lax.rsqrt(var + eps) * g + b


def _bf16_round(w):
    # Match the weight values the kernel actually sees (weights cast to bf16).
    return w.astype(jnp.bfloat16).astype(jnp.float32)


def ref_encoder(x, layer_params, *, nhead, eps=1e-5):
    B, S, E = x.shape
    dh = E // nhead
    out = x
    for p in layer_params:
        wqkv, wout = _bf16_round(p["wqkv"]), _bf16_round(p["wout"])
        w1, w2 = _bf16_round(p["w1"]), _bf16_round(p["w2"])
        qkv = out @ wqkv + p["bqkv"][0]
        q, k, v = qkv[..., :E], qkv[..., E:2 * E], qkv[..., 2 * E:]
        q = q.reshape(B, S, nhead, dh)
        k = k.reshape(B, S, nhead, dh)
        v = v.reshape(B, S, nhead, dh)
        s = jnp.einsum('bqhd,bkhd->bhqk', q, k) / np.sqrt(dh)
        a = jax.nn.softmax(s, axis=-1)
        o = jnp.einsum('bhqk,bkhd->bqhd', a, v).reshape(B, S, E)
        o = o @ wout + p["bout"][0]
        y = _layer_norm(out + o, p["gamma1"][0], p["beta1"][0], eps)
        ff = jnp.maximum(y @ w1 + p["b1"][0], 0.0) @ w2 + p["b2"][0]
        out = _layer_norm(y + ff, p["gamma2"][0], p["beta2"][0], eps)
    return out


# ------------------------- deterministic init -------------------------
def init_layer_params(key, embed_dim, dim_feedforward):
    ks = jax.random.split(key, 13)
    s = 0.1
    return {
        "wqkv":  s * jax.random.normal(ks[0], (embed_dim, 3 * embed_dim), jnp.float32),
        "bqkv":  s * jax.random.normal(ks[1], (1, 3 * embed_dim), jnp.float32),
        "wout":  s * jax.random.normal(ks[2], (embed_dim, embed_dim), jnp.float32),
        "bout":  s * jax.random.normal(ks[3], (1, embed_dim), jnp.float32),
        "gamma1": 1.0 + s * jax.random.normal(ks[4], (1, embed_dim), jnp.float32),
        "beta1":  s * jax.random.normal(ks[5], (1, embed_dim), jnp.float32),
        "w1":    s * jax.random.normal(ks[6], (embed_dim, dim_feedforward), jnp.float32),
        "b1":    s * jax.random.normal(ks[7], (1, dim_feedforward), jnp.float32),
        "w2":    s * jax.random.normal(ks[8], (dim_feedforward, embed_dim), jnp.float32),
        "b2":    s * jax.random.normal(ks[9], (1, embed_dim), jnp.float32),
        "gamma2": 1.0 + s * jax.random.normal(ks[10], (1, embed_dim), jnp.float32),
        "beta2":  s * jax.random.normal(ks[11], (1, embed_dim), jnp.float32),
    }


if __name__ == "__main__":
    B, S, E = 2, 8, 32
    nhead = 4
    dim_feedforward = 64
    num_layers = 2

    key = jax.random.PRNGKey(0)
    kx, *layer_keys = jax.random.split(key, num_layers + 1)
    x = jax.random.normal(kx, (B, S, E), jnp.float32)
    params = [init_layer_params(k, E, dim_feedforward) for k in layer_keys]

    # One-time weight prep (bf16 cast + scale fold + vector packing) outside
    # the forward loop — no per-layer, per-call .astype round-trips.
    prepared = [prepare_layer_params(p, nhead=nhead) for p in params]

    fwd = jax.jit(functools.partial(transformer_encoder_forward, nhead=nhead))
    out = jax.block_until_ready(fwd(x, prepared))

    ref = jax.block_until_ready(ref_encoder(x, params, nhead=nhead))
    # bf16 matmul inputs + approx reciprocal -> looser tolerance than pure-f32.
    np.testing.assert_allclose(np.asarray(out), np.asarray(ref),
                               rtol=5e-2, atol=5e-2)
    print("KERNEL_OK")
</pallas_src>

<mosaic_0001>
module attributes {stable_mosaic.version = 11 : i64} {
  func.func @encoder_layer_kernel(%arg0: i32, %arg1: i32, %arg2: memref<1x8x32xf32, #tpu.memory_space<vmem>>, %arg3: memref<32x32xbf16, #tpu.memory_space<vmem>>, %arg4: memref<32x64xbf16, #tpu.memory_space<vmem>>, %arg5: memref<32x32xbf16, #tpu.memory_space<vmem>>, %arg6: memref<32x64xbf16, #tpu.memory_space<vmem>>, %arg7: memref<64x32xbf16, #tpu.memory_space<vmem>>, %arg8: memref<8x32xf32, #tpu.memory_space<vmem>>, %arg9: memref<1x64xf32, #tpu.memory_space<vmem>>, %arg10: memref<1x64xf32, #tpu.memory_space<vmem>>, %arg11: memref<1x8x32xf32, #tpu.memory_space<vmem>>, %arg12: memref<4x8x8xbf16, #tpu.memory_space<vmem>>, %arg13: memref<4x8x8xbf16, #tpu.memory_space<vmem>>, %arg14: memref<8x32xf32, #tpu.memory_space<vmem>>) attributes {dimension_semantics = [#tpu.dimension_semantics<parallel>, #tpu.dimension_semantics<arbitrary>], iteration_bounds = array<i64: 2, 1>, scalar_prefetch = 0 : i64, scratch_operands = 3 : i64, tpu.core_type = #tpu.core_type<tc>, window_params = [{transform_indices = @transform_0, window_bounds = array<i64: 1, 8, 32>}, {pipeline_mode = #tpu.pipeline_mode<synchronous>, transform_indices = @transform_1, window_bounds = array<i64: 32, 32>}, {pipeline_mode = #tpu.pipeline_mode<synchronous>, transform_indices = @transform_2, window_bounds = array<i64: 32, 64>}, {pipeline_mode = #tpu.pipeline_mode<synchronous>, transform_indices = @transform_3, window_bounds = array<i64: 32, 32>}, {pipeline_mode = #tpu.pipeline_mode<synchronous>, transform_indices = @transform_4, window_bounds = array<i64: 32, 64>}, {pipeline_mode = #tpu.pipeline_mode<synchronous>, transform_indices = @transform_5, window_bounds = array<i64: 64, 32>}, {pipeline_mode = #tpu.pipeline_mode<synchronous>, transform_indices = @transform_6, window_bounds = array<i64: 8, 32>}, {pipeline_mode = #tpu.pipeline_mode<synchronous>, transform_indices = @transform_7, window_bounds = array<i64: 1, 64>}, {pipeline_mode = #tpu.pipeline_mode<synchronous>, transform_indices = @transform_8, window_bounds = array<i64: 1, 64>}, {transform_indices = @transform_9, window_bounds = array<i64: 1, 8, 32>}]} {
    %c0_i32 = arith.constant 0 : i32
    %0 = arith.cmpi eq, %arg1, %c0_i32 : i32
    %1 = arith.extui %0 : i1 to i32
    %c0_i32_0 = arith.constant 0 : i32
    %2 = arith.cmpi ne, %1, %c0_i32_0 : i32
    scf.if %2 {
      %c0_48 = arith.constant 0 : index
      %c0_49 = arith.constant 0 : index
      %c0_50 = arith.constant 0 : index
      %126 = vector.load %arg2[%c0_48, %c0_49, %c0_50] : memref<1x8x32xf32, #tpu.memory_space<vmem>>, vector<1x8x32xf32>
      %127 = vector.shape_cast %126 : vector<1x8x32xf32> to vector<8x32xf32>
      %128 = arith.truncf %127 : vector<8x32xf32> to vector<8x32xbf16>
      %c0_51 = arith.constant 0 : index
      %c0_52 = arith.constant 0 : index
      %129 = vector.load %arg4[%c0_51, %c0_52] : memref<32x64xbf16, #tpu.memory_space<vmem>>, vector<32x64xbf16>
      %cst_53 = arith.constant dense<0.000000e+00> : vector<8x64xf32>
      %130 = tpu.matmul %128, %129, %cst_53 {dimension_numbers = #tpu.dot_dimension_numbers<[1], [0], [0], [1], [0, 0, 1, 1], [], []>} : vector<8x32xbf16>, vector<32x64xbf16>, vector<8x64xf32> -> vector<8x64xf32>
      %c0_54 = arith.constant 0 : index
      %c0_55 = arith.constant 0 : index
      %131 = vector.load %arg9[%c0_54, %c0_55] : memref<1x64xf32, #tpu.memory_space<vmem>>, vector<1x64xf32>
      %132 = vector.broadcast %131 : vector<1x64xf32> to vector<8x64xf32>
      %133 = arith.addf %130, %132 : vector<8x64xf32>
      %134 = vector.extract_strided_slice %133 {offsets = [0, 0], sizes = [8, 8], strides = [1, 1]} : vector<8x64xf32> to vector<8x8xf32>
      %135 = arith.truncf %134 : vector<8x8xf32> to vector<8x8xbf16>
      %c0_56 = arith.constant 0 : index
      %c0_57 = arith.constant 0 : index
      %c0_58 = arith.constant 0 : index
      %136 = vector.load %arg12[%c0_56, %c0_57, %c0_58] : memref<4x8x8xbf16, #tpu.memory_space<vmem>>, vector<1x8x8xbf16>
      %137 = vector.shape_cast %136 : vector<1x8x8xbf16> to vector<8x8xbf16>
      %138 = vector.shape_cast %135 : vector<8x8xbf16> to vector<1x8x8xbf16>
      tpu.vector_store %arg12[%c0_56, %c0_57, %c0_58], %138 {strides = array<i32>} : memref<4x8x8xbf16, #tpu.memory_space<vmem>>, vector<1x8x8xbf16>,
      %139 = vector.extract_strided_slice %133 {offsets = [0, 32], sizes = [8, 8], strides = [1, 1]} : vector<8x64xf32> to vector<8x8xf32>
      %140 = arith.truncf %139 : vector<8x8xf32> to vector<8x8xbf16>
      %c0_59 = arith.constant 0 : index
      %c0_60 = arith.constant 0 : index
      %c0_61 = arith.constant 0 : index
      %141 = vector.load %arg13[%c0_59, %c0_60, %c0_61] : memref<4x8x8xbf16, #tpu.memory_space<vmem>>, vector<1x8x8xbf16>
      %142 = vector.shape_cast %141 : vector<1x8x8xbf16> to vector<8x8xbf16>
      %143 = vector.shape_cast %140 : vector<8x8xbf16> to vector<1x8x8xbf16>
      tpu.vector_store %arg13[%c0_59, %c0_60, %c0_61], %143 {strides = array<i32>} : memref<4x8x8xbf16, #tpu.memory_space<vmem>>, vector<1x8x8xbf16>,
      %144 = vector.extract_strided_slice %133 {offsets = [0, 8], sizes = [8, 8], strides = [1, 1]} : vector<8x64xf32> to vector<8x8xf32>
      %145 = arith.truncf %144 : vector<8x8xf32> to vector<8x8xbf16>
      %c1 = arith.constant 1 : index
      %c0_62 = arith.constant 0 : index
      %c0_63 = arith.constant 0 : index
      %146 = vector.load %arg12[%c1, %c0_62, %c0_63] : memref<4x8x8xbf16, #tpu.memory_space<vmem>>, vector<1x8x8xbf16>
      %147 = vector.shape_cast %146 : vector<1x8x8xbf16> to vector<8x8xbf16>
      %148 = vector.shape_cast %145 : vector<8x8xbf16> to vector<1x8x8xbf16>
      tpu.vector_store %arg12[%c1, %c0_62, %c0_63], %148 {strides = array<i32>} : memref<4x8x8xbf16, #tpu.memory_space<vmem>>, vector<1x8x8xbf16>,
      %149 = vector.extract_strided_slice %133 {offsets = [0, 40], sizes = [8, 8], strides = [1, 1]} : vector<8x64xf32> to vector<8x8xf32>
      %150 = arith.truncf %149 : vector<8x8xf32> to vector<8x8xbf16>
      %c1_64 = arith.constant 1 : index
      %c0_65 = arith.constant 0 : index
      %c0_66 = arith.constant 0 : index
      %151 = vector.load %arg13[%c1_64, %c0_65, %c0_66] : memref<4x8x8xbf16, #tpu.memory_space<vmem>>, vector<1x8x8xbf16>
      %152 = vector.shape_cast %151 : vector<1x8x8xbf16> to vector<8x8xbf16>
      %153 = vector.shape_cast %150 : vector<8x8xbf16> to vector<1x8x8xbf16>
      tpu.vector_store %arg13[%c1_64, %c0_65, %c0_66], %153 {strides = array<i32>} : memref<4x8x8xbf16, #tpu.memory_space<vmem>>, vector<1x8x8xbf16>,
      %154 = vector.extract_strided_slice %133 {offsets = [0, 16], sizes = [8, 8], strides = [1, 1]} : vector<8x64xf32> to vector<8x8xf32>
      %155 = arith.truncf %154 : vector<8x8xf32> to vector<8x8xbf16>
      %c2 = arith.constant 2 : index
      %c0_67 = arith.constant 0 : index
      %c0_68 = arith.constant 0 : index
      %156 = vector.load %arg12[%c2, %c0_67, %c0_68] : memref<4x8x8xbf16, #tpu.memory_space<vmem>>, vector<1x8x8xbf16>
      %157 = vector.shape_cast %156 : vector<1x8x8xbf16> to vector<8x8xbf16>
      %158 = vector.shape_cast %155 : vector<8x8xbf16> to vector<1x8x8xbf16>
      tpu.vector_store %arg12[%c2, %c0_67, %c0_68], %158 {strides = array<i32>} : memref<4x8x8xbf16, #tpu.memory_space<vmem>>, vector<1x8x8xbf16>,
      %159 = vector.extract_strided_slice %133 {offsets = [0, 48], sizes = [8, 8], strides = [1, 1]} : vector<8x64xf32> to vector<8x8xf32>
      %160 = arith.truncf %159 : vector<8x8xf32> to vector<8x8xbf16>
      %c2_69 = arith.constant 2 : index
      %c0_70 = arith.constant 0 : index
      %c0_71 = arith.constant 0 : index
      %161 = vector.load %arg13[%c2_69, %c0_70, %c0_71] : memref<4x8x8xbf16, #tpu.memory_space<vmem>>, vector<1x8x8xbf16>
      %162 = vector.shape_cast %161 : vector<1x8x8xbf16> to vector<8x8xbf16>
      %163 = vector.shape_cast %160 : vector<8x8xbf16> to vector<1x8x8xbf16>
      tpu.vector_store %arg13[%c2_69, %c0_70, %c0_71], %163 {strides = array<i32>} : memref<4x8x8xbf16, #tpu.memory_space<vmem>>, vector<1x8x8xbf16>,
      %164 = vector.extract_strided_slice %133 {offsets = [0, 24], sizes = [8, 8], strides = [1, 1]} : vector<8x64xf32> to vector<8x8xf32>
      %165 = arith.truncf %164 : vector<8x8xf32> to vector<8x8xbf16>
      %c3 = arith.constant 3 : index
      %c0_72 = arith.constant 0 : index
      %c0_73 = arith.constant 0 : index
      %166 = vector.load %arg12[%c3, %c0_72, %c0_73] : memref<4x8x8xbf16, #tpu.memory_space<vmem>>, vector<1x8x8xbf16>
      %167 = vector.shape_cast %166 : vector<1x8x8xbf16> to vector<8x8xbf16>
      %168 = vector.shape_cast %165 : vector<8x8xbf16> to vector<1x8x8xbf16>
      tpu.vector_store %arg12[%c3, %c0_72, %c0_73], %168 {strides = array<i32>} : memref<4x8x8xbf16, #tpu.memory_space<vmem>>, vector<1x8x8xbf16>,
      %169 = vector.extract_strided_slice %133 {offsets = [0, 56], sizes = [8, 8], strides = [1, 1]} : vector<8x64xf32> to vector<8x8xf32>
      %170 = arith.truncf %169 : vector<8x8xf32> to vector<8x8xbf16>
      %c3_74 = arith.constant 3 : index
      %c0_75 = arith.constant 0 : index
      %c0_76 = arith.constant 0 : index
      %171 = vector.load %arg13[%c3_74, %c0_75, %c0_76] : memref<4x8x8xbf16, #tpu.memory_space<vmem>>, vector<1x8x8xbf16>
      %172 = vector.shape_cast %171 : vector<1x8x8xbf16> to vector<8x8xbf16>
      %173 = vector.shape_cast %170 : vector<8x8xbf16> to vector<1x8x8xbf16>
      tpu.vector_store %arg13[%c3_74, %c0_75, %c0_76], %173 {strides = array<i32>} : memref<4x8x8xbf16, #tpu.memory_space<vmem>>, vector<1x8x8xbf16>,
    } else {
    }
    %c0 = arith.constant 0 : index
    %c0_1 = arith.constant 0 : index
    %3 = vector.load %arg8[%c0, %c0_1] : memref<8x32xf32, #tpu.memory_space<vmem>>, vector<8x32xf32>
    %4 = vector.extract_strided_slice %3 {offsets = [0, 0], sizes = [1, 32], strides = [1, 1]} : vector<8x32xf32> to vector<1x32xf32>
    %5 = vector.extract_strided_slice %3 {offsets = [1, 0], sizes = [1, 32], strides = [1, 1]} : vector<8x32xf32> to vector<1x32xf32>
    %6 = vector.extract_strided_slice %3 {offsets = [2, 0], sizes = [1, 32], strides = [1, 1]} : vector<8x32xf32> to vector<1x32xf32>
    %7 = vector.extract_strided_slice %3 {offsets = [3, 0], sizes = [1, 32], strides = [1, 1]} : vector<8x32xf32> to vector<1x32xf32>
    %8 = vector.extract_strided_slice %3 {offsets = [4, 0], sizes = [1, 32], strides = [1, 1]} : vector<8x32xf32> to vector<1x32xf32>
    %9 = vector.extract_strided_slice %3 {offsets = [5, 0], sizes = [1, 32], strides = [1, 1]} : vector<8x32xf32> to vector<1x32xf32>
    %10 = vector.extract_strided_slice %3 {offsets = [6, 0], sizes = [1, 32], strides = [1, 1]} : vector<8x32xf32> to vector<1x32xf32>
    %c8_i32 = arith.constant 8 : i32
    %11 = arith.muli %arg1, %c8_i32 : i32
    %12 = tpu.assume_multiple %11, 8 : i32
    %c0_2 = arith.constant 0 : index
    %13 = arith.index_cast %12 : i32 to index
    %c0_3 = arith.constant 0 : index
    %14 = vector.load %arg2[%c0_2, %13, %c0_3] : memref<1x8x32xf32, #tpu.memory_space<vmem>>, vector<1x8x32xf32>
    %15 = vector.shape_cast %14 : vector<1x8x32xf32> to vector<8x32xf32>
    %16 = arith.truncf %15 : vector<8x32xf32> to vector<8x32xbf16>
    %c0_4 = arith.constant 0 : index
    %c0_5 = arith.constant 0 : index
    %17 = vector.load %arg3[%c0_4, %c0_5] : memref<32x32xbf16, #tpu.memory_space<vmem>>, vector<32x32xbf16>
    %cst = arith.constant dense<0.000000e+00> : vector<8x32xf32>
    %18 = tpu.matmul %16, %17, %cst {dimension_numbers = #tpu.dot_dimension_numbers<[1], [0], [0], [1], [0, 0, 1, 1], [], []>} : vector<8x32xbf16>, vector<32x32xbf16>, vector<8x32xf32> -> vector<8x32xf32>
    %19 = vector.broadcast %4 : vector<1x32xf32> to vector<8x32xf32>
    %20 = arith.addf %18, %19 : vector<8x32xf32>
    %21 = vector.extract_strided_slice %20 {offsets = [0, 0], sizes = [8, 8], strides = [1, 1]} : vector<8x32xf32> to vector<8x8xf32>
    %22 = vector.extract_strided_slice %20 {offsets = [0, 8], sizes = [8, 8], strides = [1, 1]} : vector<8x32xf32> to vector<8x8xf32>
    %23 = vector.extract_strided_slice %20 {offsets = [0, 16], sizes = [8, 8], strides = [1, 1]} : vector<8x32xf32> to vector<8x8xf32>
    %24 = vector.extract_strided_slice %20 {offsets = [0, 24], sizes = [8, 8], strides = [1, 1]} : vector<8x32xf32> to vector<8x8xf32>
    %25 = vector.shape_cast %21 : vector<8x8xf32> to vector<1x8x8xf32>
    %26 = vector.shape_cast %22 : vector<8x8xf32> to vector<1x8x8xf32>
    %27 = vector.shape_cast %23 : vector<8x8xf32> to vector<1x8x8xf32>
    %28 = vector.shape_cast %24 : vector<8x8xf32> to vector<1x8x8xf32>
    %29 = tpu.concatenate %25, %26, %27, %28 in 0 : vector<1x8x8xf32>, vector<1x8x8xf32>, vector<1x8x8xf32>, vector<1x8x8xf32> -> vector<4x8x8xf32>
    %30 = arith.truncf %29 : vector<4x8x8xf32> to vector<4x8x8xbf16>
    %c0_6 = arith.constant 0 : index
    %c0_7 = arith.constant 0 : index
    %c0_8 = arith.constant 0 : index
    %31 = vector.load %arg12[%c0_6, %c0_7, %c0_8] : memref<4x8x8xbf16, #tpu.memory_space<vmem>>, vector<4x8x8xbf16>
    %c0_9 = arith.constant 0 : index
    %c0_10 = arith.constant 0 : index
    %c0_11 = arith.constant 0 : index
    %32 = vector.load %arg13[%c0_9, %c0_10, %c0_11] : memref<4x8x8xbf16, #tpu.memory_space<vmem>>, vector<4x8x8xbf16>
    %cst_12 = arith.constant dense<0.000000e+00> : vector<4x8x8xf32>
    %33 = tpu.matmul %30, %31, %cst_12 {dimension_numbers = #tpu.dot_dimension_numbers<[2], [2], [1], [1], [0, 0, 0, 1, 1, 1], [0], [0]>} : vector<4x8x8xbf16>, vector<4x8x8xbf16>, vector<4x8x8xf32> -> vector<4x8x8xf32>
    %cst_13 = arith.constant dense<0xFF800000> : vector<4x8xf32>
    %34 = vector.multi_reduction <maximumf>, %33, %cst_13 [2] : vector<4x8x8xf32> to vector<4x8xf32>
    %35 = vector.shape_cast %34 : vector<4x8xf32> to vector<4x8x1xf32>
    %36 = vector.broadcast %35 : vector<4x8x1xf32> to vector<4x8x8xf32>
    %37 = arith.subf %33, %36 : vector<4x8x8xf32>
    %38 = math.exp %37 : vector<4x8x8xf32>
    %cst_14 = arith.constant dense<0.000000e+00> : vector<4x8xf32>
    %39 = vector.multi_reduction <add>, %38, %cst_14 [2] : vector<4x8x8xf32> to vector<4x8xf32>
    %40 = vector.shape_cast %39 : vector<4x8xf32> to vector<4x8x1xf32>
    %41 = tpu.reciprocal %40 {approx = true} : vector<4x8x1xf32> -> vector<4x8x1xf32>
    %42 = vector.broadcast %41 : vector<4x8x1xf32> to vector<4x8x8xf32>
    %43 = arith.mulf %38, %42 : vector<4x8x8xf32>
    %44 = arith.truncf %43 : vector<4x8x8xf32> to vector<4x8x8xbf16>
    %cst_15 = arith.constant dense<0.000000e+00> : vector<4x8x8xf32>
    %45 = tpu.matmul %44, %32, %cst_15 {dimension_numbers = #tpu.dot_dimension_numbers<[2], [1], [1], [2], [0, 0, 0, 1, 1, 2], [0], [0]>} : vector<4x8x8xbf16>, vector<4x8x8xbf16>, vector<4x8x8xf32> -> vector<4x8x8xf32>
    %46 = vector.extract_strided_slice %45 {offsets = [0, 0, 0], sizes = [1, 8, 8], strides = [1, 1, 1]} : vector<4x8x8xf32> to vector<1x8x8xf32>
    %47 = vector.shape_cast %46 : vector<1x8x8xf32> to vector<8x8xf32>
    %c0_16 = arith.constant 0 : index
    %c0_17 = arith.constant 0 : index
    %48 = vector.load %arg14[%c0_16, %c0_17] : memref<8x32xf32, #tpu.memory_space<vmem>>, vector<8x8xf32>
    tpu.vector_store %arg14[%c0_16, %c0_17], %47 {strides = array<i32>} : memref<8x32xf32, #tpu.memory_space<vmem>>, vector<8x8xf32>,
    %49 = vector.extract_strided_slice %45 {offsets = [1, 0, 0], sizes = [1, 8, 8], strides = [1, 1, 1]} : vector<4x8x8xf32> to vector<1x8x8xf32>
    %50 = vector.shape_cast %49 : vector<1x8x8xf32> to vector<8x8xf32>
    %c0_18 = arith.constant 0 : index
    %c8 = arith.constant 8 : index
    %51 = vector.load %arg14[%c0_18, %c8] : memref<8x32xf32, #tpu.memory_space<vmem>>, vector<8x8xf32>
    tpu.vector_store %arg14[%c0_18, %c8], %50 {strides = array<i32>} : memref<8x32xf32, #tpu.memory_space<vmem>>, vector<8x8xf32>,
    %52 = vector.extract_strided_slice %45 {offsets = [2, 0, 0], sizes = [1, 8, 8], strides = [1, 1, 1]} : vector<4x8x8xf32> to vector<1x8x8xf32>
    %53 = vector.shape_cast %52 : vector<1x8x8xf32> to vector<8x8xf32>
    %c0_19 = arith.constant 0 : index
    %c16 = arith.constant 16 : index
    %54 = vector.load %arg14[%c0_19, %c16] : memref<8x32xf32, #tpu.memory_space<vmem>>, vector<8x8xf32>
    tpu.vector_store %arg14[%c0_19, %c16], %53 {strides = array<i32>} : memref<8x32xf32, #tpu.memory_space<vmem>>, vector<8x8xf32>,
    %55 = vector.extract_strided_slice %45 {offsets = [3, 0, 0], sizes = [1, 8, 8], strides = [1, 1, 1]} : vector<4x8x8xf32> to vector<1x8x8xf32>
    %56 = vector.shape_cast %55 : vector<1x8x8xf32> to vector<8x8xf32>
    %c0_20 = arith.constant 0 : index
    %c24 = arith.constant 24 : index
    %57 = vector.load %arg14[%c0_20, %c24] : memref<8x32xf32, #tpu.memory_space<vmem>>, vector<8x8xf32>
    tpu.vector_store %arg14[%c0_20, %c24], %56 {strides = array<i32>} : memref<8x32xf32, #tpu.memory_space<vmem>>, vector<8x8xf32>,
    %c0_21 = arith.constant 0 : index
    %c0_22 = arith.constant 0 : index
    %58 = vector.load %arg14[%c0_21, %c0_22] : memref<8x32xf32, #tpu.memory_space<vmem>>, vector<8x32xf32>
    %59 = arith.truncf %58 : vector<8x32xf32> to vector<8x32xbf16>
    %c0_23 = arith.constant 0 : index
    %c0_24 = arith.constant 0 : index
    %60 = vector.load %arg5[%c0_23, %c0_24] : memref<32x32xbf16, #tpu.memory_space<vmem>>, vector<32x32xbf16>
    %cst_25 = arith.constant dense<0.000000e+00> : vector<8x32xf32>
    %61 = tpu.matmul %59, %60, %cst_25 {dimension_numbers = #tpu.dot_dimension_numbers<[1], [0], [0], [1], [0, 0, 1, 1], [], []>} : vector<8x32xbf16>, vector<32x32xbf16>, vector<8x32xf32> -> vector<8x32xf32>
    %62 = vector.broadcast %5 : vector<1x32xf32> to vector<8x32xf32>
    %63 = arith.addf %61, %62 : vector<8x32xf32>
    %64 = arith.addf %15, %63 : vector<8x32xf32>
    %cst_26 = arith.constant dense<0.000000e+00> : vector<8xf32>
    %65 = vector.multi_reduction <add>, %64, %cst_26 [1] : vector<8x32xf32> to vector<8xf32>
    %66 = vector.shape_cast %65 : vector<8xf32> to vector<8x1xf32>
    %cst_27 = arith.constant 3.200000e+01 : f32
    %67 = vector.broadcast %cst_27 : f32 to vector<8x1xf32>
    %68 = arith.divf %66, %67 : vector<8x1xf32>
    %69 = arith.mulf %64, %64 : vector<8x32xf32>
    %cst_28 = arith.constant dense<0.000000e+00> : vector<8xf32>
    %70 = vector.multi_reduction <add>, %69, %cst_28 [1] : vector<8x32xf32> to vector<8xf32>
    %71 = vector.shape_cast %70 : vector<8xf32> to vector<8x1xf32>
    %cst_29 = arith.constant 3.200000e+01 : f32
    %72 = vector.broadcast %cst_29 : f32 to vector<8x1xf32>
    %73 = arith.divf %71, %72 : vector<8x1xf32>
    %74 = arith.mulf %68, %68 : vector<8x1xf32>
    %75 = arith.subf %73, %74 : vector<8x1xf32>
    %76 = vector.broadcast %68 : vector<8x1xf32> to vector<8x32xf32>
    %77 = arith.subf %64, %76 : vector<8x32xf32>
    %cst_30 = arith.constant 9.99999974E-6 : f32
    %78 = vector.broadcast %cst_30 : f32 to vector<8x1xf32>
    %79 = arith.addf %75, %78 : vector<8x1xf32>
    %80 = math.rsqrt %79 : vector<8x1xf32>
    %81 = vector.broadcast %80 : vector<8x1xf32> to vector<8x32xf32>
    %82 = arith.mulf %77, %81 : vector<8x32xf32>
    %83 = vector.broadcast %6 : vector<1x32xf32> to vector<8x32xf32>
    %84 = arith.mulf %82, %83 : vector<8x32xf32>
    %85 = vector.broadcast %7 : vector<1x32xf32> to vector<8x32xf32>
    %86 = arith.addf %84, %85 : vector<8x32xf32>
    %87 = arith.truncf %86 : vector<8x32xf32> to vector<8x32xbf16>
    %c0_31 = arith.constant 0 : index
    %c0_32 = arith.constant 0 : index
    %88 = vector.load %arg6[%c0_31, %c0_32] : memref<32x64xbf16, #tpu.memory_space<vmem>>, vector<32x64xbf16>
    %cst_33 = arith.constant dense<0.000000e+00> : vector<8x64xf32>
    %89 = tpu.matmul %87, %88, %cst_33 {dimension_numbers = #tpu.dot_dimension_numbers<[1], [0], [0], [1], [0, 0, 1, 1], [], []>} : vector<8x32xbf16>, vector<32x64xbf16>, vector<8x64xf32> -> vector<8x64xf32>
    %c0_34 = arith.constant 0 : index
    %c0_35 = arith.constant 0 : index
    %90 = vector.load %arg10[%c0_34, %c0_35] : memref<1x64xf32, #tpu.memory_space<vmem>>, vector<1x64xf32>
    %91 = vector.broadcast %90 : vector<1x64xf32> to vector<8x64xf32>
    %92 = arith.addf %89, %91 : vector<8x64xf32>
    %cst_36 = arith.constant 0.000000e+00 : f32
    %93 = vector.broadcast %cst_36 : f32 to vector<8x64xf32>
    %94 = arith.maximumf %92, %93 : vector<8x64xf32>
    %95 = arith.truncf %94 : vector<8x64xf32> to vector<8x64xbf16>
    %c0_37 = arith.constant 0 : index
    %c0_38 = arith.constant 0 : index
    %96 = vector.load %arg7[%c0_37, %c0_38] : memref<64x32xbf16, #tpu.memory_space<vmem>>, vector<64x32xbf16>
    %cst_39 = arith.constant dense<0.000000e+00> : vector<8x32xf32>
    %97 = tpu.matmul %95, %96, %cst_39 {dimension_numbers = #tpu.dot_dimension_numbers<[1], [0], [0], [1], [0, 0, 1, 1], [], []>} : vector<8x64xbf16>, vector<64x32xbf16>, vector<8x32xf32> -> vector<8x32xf32>
    %98 = vector.broadcast %8 : vector<1x32xf32> to vector<8x32xf32>
    %99 = arith.addf %97, %98 : vector<8x32xf32>
    %100 = arith.addf %86, %99 : vector<8x32xf32>
    %cst_40 = arith.constant dense<0.000000e+00> : vector<8xf32>
    %101 = vector.multi_reduction <add>, %100, %cst_40 [1] : vector<8x32xf32> to vector<8xf32>
    %102 = vector.shape_cast %101 : vector<8xf32> to vector<8x1xf32>
    %cst_41 = arith.constant 3.200000e+01 : f32
    %103 = vector.broadcast %cst_41 : f32 to vector<8x1xf32>
    %104 = arith.divf %102, %103 : vector<8x1xf32>
    %105 = arith.mulf %100, %100 : vector<8x32xf32>
    %cst_42 = arith.constant dense<0.000000e+00> : vector<8xf32>
    %106 = vector.multi_reduction <add>, %105, %cst_42 [1] : vector<8x32xf32> to vector<8xf32>
    %107 = vector.shape_cast %106 : vector<8xf32> to vector<8x1xf32>
    %cst_43 = arith.constant 3.200000e+01 : f32
    %108 = vector.broadcast %cst_43 : f32 to vector<8x1xf32>
    %109 = arith.divf %107, %108 : vector<8x1xf32>
    %110 = arith.mulf %104, %104 : vector<8x1xf32>
    %111 = arith.subf %109, %110 : vector<8x1xf32>
    %112 = vector.broadcast %104 : vector<8x1xf32> to vector<8x32xf32>
    %113 = arith.subf %100, %112 : vector<8x32xf32>
    %cst_44 = arith.constant 9.99999974E-6 : f32
    %114 = vector.broadcast %cst_44 : f32 to vector<8x1xf32>
    %115 = arith.addf %111, %114 : vector<8x1xf32>
    %116 = math.rsqrt %115 : vector<8x1xf32>
    %117 = vector.broadcast %116 : vector<8x1xf32> to vector<8x32xf32>
    %118 = arith.mulf %113, %117 : vector<8x32xf32>
    %119 = vector.broadcast %9 : vector<1x32xf32> to vector<8x32xf32>
    %120 = arith.mulf %118, %119 : vector<8x32xf32>
    %121 = vector.broadcast %10 : vector<1x32xf32> to vector<8x32xf32>
    %122 = arith.addf %120, %121 : vector<8x32xf32>
    %c0_45 = arith.constant 0 : index
    %c0_46 = arith.constant 0 : index
    %c0_47 = arith.constant 0 : index
    %123 = vector.load %arg11[%c0_45, %c0_46, %c0_47] : memref<1x8x32xf32, #tpu.memory_space<vmem>>, vector<1x8x32xf32>
    %124 = vector.shape_cast %123 : vector<1x8x32xf32> to vector<8x32xf32>
    %125 = vector.shape_cast %122 : vector<8x32xf32> to vector<1x8x32xf32>
    tpu.vector_store %arg11[%c0_45, %c0_46, %c0_47], %125 {strides = array<i32>} : memref<1x8x32xf32, #tpu.memory_space<vmem>>, vector<1x8x32xf32>,
    return
  }
  func.func @transform_0(%arg0: i32, %arg1: i32) -> (i32, i32, i32) {
    %c0_i32 = arith.constant 0 : i32
    %c0_i32_0 = arith.constant 0 : i32
    %c0_i32_1 = arith.constant 0 : i32
    return %arg0, %c0_i32, %c0_i32_0 : i32, i32, i32
  }
  func.func @transform_1(%arg0: i32, %arg1: i32) -> (i32, i32) {
    %c0_i32 = arith.constant 0 : i32
    %c0_i32_0 = arith.constant 0 : i32
    %c0_i32_1 = arith.constant 0 : i32
    return %c0_i32, %c0_i32_0 : i32, i32
  }
  func.func @transform_2(%arg0: i32, %arg1: i32) -> (i32, i32) {
    %c0_i32 = arith.constant 0 : i32
    %c0_i32_0 = arith.constant 0 : i32
    %c0_i32_1 = arith.constant 0 : i32
    return %c0_i32, %c0_i32_0 : i32, i32
  }
  func.func @transform_3(%arg0: i32, %arg1: i32) -> (i32, i32) {
    %c0_i32 = arith.constant 0 : i32
    %c0_i32_0 = arith.constant 0 : i32
    %c0_i32_1 = arith.constant 0 : i32
    return %c0_i32, %c0_i32_0 : i32, i32
  }
  func.func @transform_4(%arg0: i32, %arg1: i32) -> (i32, i32) {
    %c0_i32 = arith.constant 0 : i32
    %c0_i32_0 = arith.constant 0 : i32
    %c0_i32_1 = arith.constant 0 : i32
    return %c0_i32, %c0_i32_0 : i32, i32
  }
  func.func @transform_5(%arg0: i32, %arg1: i32) -> (i32, i32) {
    %c0_i32 = arith.constant 0 : i32
    %c0_i32_0 = arith.constant 0 : i32
    %c0_i32_1 = arith.constant 0 : i32
    return %c0_i32, %c0_i32_0 : i32, i32
  }
  func.func @transform_6(%arg0: i32, %arg1: i32) -> (i32, i32) {
    %c0_i32 = arith.constant 0 : i32
    %c0_i32_0 = arith.constant 0 : i32
    %c0_i32_1 = arith.constant 0 : i32
    return %c0_i32, %c0_i32_0 : i32, i32
  }
  func.func @transform_7(%arg0: i32, %arg1: i32) -> (i32, i32) {
    %c0_i32 = arith.constant 0 : i32
    %c0_i32_0 = arith.constant 0 : i32
    %c0_i32_1 = arith.constant 0 : i32
    return %c0_i32, %c0_i32_0 : i32, i32
  }
  func.func @transform_8(%arg0: i32, %arg1: i32) -> (i32, i32) {
    %c0_i32 = arith.constant 0 : i32
    %c0_i32_0 = arith.constant 0 : i32
    %c0_i32_1 = arith.constant 0 : i32
    return %c0_i32, %c0_i32_0 : i32, i32
  }
  func.func @transform_9(%arg0: i32, %arg1: i32) -> (i32, i32, i32) {
    %c0_i32 = arith.constant 0 : i32
    %c0_i32_0 = arith.constant 0 : i32
    return %arg0, %arg1, %c0_i32 : i32, i32, i32
  }
}

module attributes {stable_mosaic.version = 11 : i64} {
  func.func @encoder_layer_kernel(%arg0: i32, %arg1: i32, %arg2: memref<1x8x32xf32, #tpu.memory_space<vmem>>, %arg3: memref<32x32xbf16, #tpu.memory_space<vmem>>, %arg4: memref<32x64xbf16, #tpu.memory_space<vmem>>, %arg5: memref<32x32xbf16, #tpu.memory_space<vmem>>, %arg6: memref<32x64xbf16, #tpu.memory_space<vmem>>, %arg7: memref<64x32xbf16, #tpu.memory_space<vmem>>, %arg8: memref<8x32xf32, #tpu.memory_space<vmem>>, %arg9: memref<1x64xf32, #tpu.memory_space<vmem>>, %arg10: memref<1x64xf32, #tpu.memory_space<vmem>>, %arg11: memref<1x8x32xf32, #tpu.memory_space<vmem>>, %arg12: memref<4x8x8xbf16, #tpu.memory_space<vmem>>, %arg13: memref<4x8x8xbf16, #tpu.memory_space<vmem>>, %arg14: memref<8x32xf32, #tpu.memory_space<vmem>>) attributes {dimension_semantics = [#tpu.dimension_semantics<parallel>, #tpu.dimension_semantics<arbitrary>], iteration_bounds = array<i64: 2, 1>, scalar_prefetch = 0 : i64, scratch_operands = 3 : i64, tpu.core_type = #tpu.core_type<tc>, window_params = [{transform_indices = @transform_0, window_bounds = array<i64: 1, 8, 32>}, {pipeline_mode = #tpu.pipeline_mode<synchronous>, transform_indices = @transform_1, window_bounds = array<i64: 32, 32>}, {pipeline_mode = #tpu.pipeline_mode<synchronous>, transform_indices = @transform_2, window_bounds = array<i64: 32, 64>}, {pipeline_mode = #tpu.pipeline_mode<synchronous>, transform_indices = @transform_3, window_bounds = array<i64: 32, 32>}, {pipeline_mode = #tpu.pipeline_mode<synchronous>, transform_indices = @transform_4, window_bounds = array<i64: 32, 64>}, {pipeline_mode = #tpu.pipeline_mode<synchronous>, transform_indices = @transform_5, window_bounds = array<i64: 64, 32>}, {pipeline_mode = #tpu.pipeline_mode<synchronous>, transform_indices = @transform_6, window_bounds = array<i64: 8, 32>}, {pipeline_mode = #tpu.pipeline_mode<synchronous>, transform_indices = @transform_7, window_bounds = array<i64: 1, 64>}, {pipeline_mode = #tpu.pipeline_mode<synchronous>, transform_indices = @transform_8, window_bounds = array<i64: 1, 64>}, {transform_indices = @transform_9, window_bounds = array<i64: 1, 8, 32>}]} {
    %c0_i32 = arith.constant 0 : i32
    %0 = arith.cmpi eq, %arg1, %c0_i32 : i32
    %1 = arith.extui %0 : i1 to i32
    %c0_i32_0 = arith.constant 0 : i32
    %2 = arith.cmpi ne, %1, %c0_i32_0 : i32
    scf.if %2 {
      %c0_48 = arith.constant 0 : index
      %c0_49 = arith.constant 0 : index
      %c0_50 = arith.constant 0 : index
      %126 = vector.load %arg2[%c0_48, %c0_49, %c0_50] : memref<1x8x32xf32, #tpu.memory_space<vmem>>, vector<1x8x32xf32>
      %127 = vector.shape_cast %126 : vector<1x8x32xf32> to vector<8x32xf32>
      %128 = arith.truncf %127 : vector<8x32xf32> to vector<8x32xbf16>
      %c0_51 = arith.constant 0 : index
      %c0_52 = arith.constant 0 : index
      %129 = vector.load %arg4[%c0_51, %c0_52] : memref<32x64xbf16, #tpu.memory_space<vmem>>, vector<32x64xbf16>
      %cst_53 = arith.constant dense<0.000000e+00> : vector<8x64xf32>
      %130 = tpu.matmul %128, %129, %cst_53 {dimension_numbers = #tpu.dot_dimension_numbers<[1], [0], [0], [1], [0, 0, 1, 1], [], []>} : vector<8x32xbf16>, vector<32x64xbf16>, vector<8x64xf32> -> vector<8x64xf32>
      %c0_54 = arith.constant 0 : index
      %c0_55 = arith.constant 0 : index
      %131 = vector.load %arg9[%c0_54, %c0_55] : memref<1x64xf32, #tpu.memory_space<vmem>>, vector<1x64xf32>
      %132 = vector.broadcast %131 : vector<1x64xf32> to vector<8x64xf32>
      %133 = arith.addf %130, %132 : vector<8x64xf32>
      %134 = vector.extract_strided_slice %133 {offsets = [0, 0], sizes = [8, 8], strides = [1, 1]} : vector<8x64xf32> to vector<8x8xf32>
      %135 = arith.truncf %134 : vector<8x8xf32> to vector<8x8xbf16>
      %c0_56 = arith.constant 0 : index
      %c0_57 = arith.constant 0 : index
      %c0_58 = arith.constant 0 : index
      %136 = vector.load %arg12[%c0_56, %c0_57, %c0_58] : memref<4x8x8xbf16, #tpu.memory_space<vmem>>, vector<1x8x8xbf16>
      %137 = vector.shape_cast %136 : vector<1x8x8xbf16> to vector<8x8xbf16>
      %138 = vector.shape_cast %135 : vector<8x8xbf16> to vector<1x8x8xbf16>
      tpu.vector_store %arg12[%c0_56, %c0_57, %c0_58], %138 {strides = array<i32>} : memref<4x8x8xbf16, #tpu.memory_space<vmem>>, vector<1x8x8xbf16>,
      %139 = vector.extract_strided_slice %133 {offsets = [0, 32], sizes = [8, 8], strides = [1, 1]} : vector<8x64xf32> to vector<8x8xf32>
      %140 = arith.truncf %139 : vector<8x8xf32> to vector<8x8xbf16>
      %c0_59 = arith.constant 0 : index
      %c0_60 = arith.constant 0 : index
      %c0_61 = arith.constant 0 : index
      %141 = vector.load %arg13[%c0_59, %c0_60, %c0_61] : memref<4x8x8xbf16, #tpu.memory_space<vmem>>, vector<1x8x8xbf16>
      %142 = vector.shape_cast %141 : vector<1x8x8xbf16> to vector<8x8xbf16>
      %143 = vector.shape_cast %140 : vector<8x8xbf16> to vector<1x8x8xbf16>
      tpu.vector_store %arg13[%c0_59, %c0_60, %c0_61], %143 {strides = array<i32>} : memref<4x8x8xbf16, #tpu.memory_space<vmem>>, vector<1x8x8xbf16>,
      %144 = vector.extract_strided_slice %133 {offsets = [0, 8], sizes = [8, 8], strides = [1, 1]} : vector<8x64xf32> to vector<8x8xf32>
      %145 = arith.truncf %144 : vector<8x8xf32> to vector<8x8xbf16>
      %c1 = arith.constant 1 : index
      %c0_62 = arith.constant 0 : index
      %c0_63 = arith.constant 0 : index
      %146 = vector.load %arg12[%c1, %c0_62, %c0_63] : memref<4x8x8xbf16, #tpu.memory_space<vmem>>, vector<1x8x8xbf16>
      %147 = vector.shape_cast %146 : vector<1x8x8xbf16> to vector<8x8xbf16>
      %148 = vector.shape_cast %145 : vector<8x8xbf16> to vector<1x8x8xbf16>
      tpu.vector_store %arg12[%c1, %c0_62, %c0_63], %148 {strides = array<i32>} : memref<4x8x8xbf16, #tpu.memory_space<vmem>>, vector<1x8x8xbf16>,
      %149 = vector.extract_strided_slice %133 {offsets = [0, 40], sizes = [8, 8], strides = [1, 1]} : vector<8x64xf32> to vector<8x8xf32>
      %150 = arith.truncf %149 : vector<8x8xf32> to vector<8x8xbf16>
      %c1_64 = arith.constant 1 : index
      %c0_65 = arith.constant 0 : index
      %c0_66 = arith.constant 0 : index
      %151 = vector.load %arg13[%c1_64, %c0_65, %c0_66] : memref<4x8x8xbf16, #tpu.memory_space<vmem>>, vector<1x8x8xbf16>
      %152 = vector.shape_cast %151 : vector<1x8x8xbf16> to vector<8x8xbf16>
      %153 = vector.shape_cast %150 : vector<8x8xbf16> to vector<1x8x8xbf16>
      tpu.vector_store %arg13[%c1_64, %c0_65, %c0_66], %153 {strides = array<i32>} : memref<4x8x8xbf16, #tpu.memory_space<vmem>>, vector<1x8x8xbf16>,
      %154 = vector.extract_strided_slice %133 {offsets = [0, 16], sizes = [8, 8], strides = [1, 1]} : vector<8x64xf32> to vector<8x8xf32>
      %155 = arith.truncf %154 : vector<8x8xf32> to vector<8x8xbf16>
      %c2 = arith.constant 2 : index
      %c0_67 = arith.constant 0 : index
      %c0_68 = arith.constant 0 : index
      %156 = vector.load %arg12[%c2, %c0_67, %c0_68] : memref<4x8x8xbf16, #tpu.memory_space<vmem>>, vector<1x8x8xbf16>
      %157 = vector.shape_cast %156 : vector<1x8x8xbf16> to vector<8x8xbf16>
      %158 = vector.shape_cast %155 : vector<8x8xbf16> to vector<1x8x8xbf16>
      tpu.vector_store %arg12[%c2, %c0_67, %c0_68], %158 {strides = array<i32>} : memref<4x8x8xbf16, #tpu.memory_space<vmem>>, vector<1x8x8xbf16>,
      %159 = vector.extract_strided_slice %133 {offsets = [0, 48], sizes = [8, 8], strides = [1, 1]} : vector<8x64xf32> to vector<8x8xf32>
      %160 = arith.truncf %159 : vector<8x8xf32> to vector<8x8xbf16>
      %c2_69 = arith.constant 2 : index
      %c0_70 = arith.constant 0 : index
      %c0_71 = arith.constant 0 : index
      %161 = vector.load %arg13[%c2_69, %c0_70, %c0_71] : memref<4x8x8xbf16, #tpu.memory_space<vmem>>, vector<1x8x8xbf16>
      %162 = vector.shape_cast %161 : vector<1x8x8xbf16> to vector<8x8xbf16>
      %163 = vector.shape_cast %160 : vector<8x8xbf16> to vector<1x8x8xbf16>
      tpu.vector_store %arg13[%c2_69, %c0_70, %c0_71], %163 {strides = array<i32>} : memref<4x8x8xbf16, #tpu.memory_space<vmem>>, vector<1x8x8xbf16>,
      %164 = vector.extract_strided_slice %133 {offsets = [0, 24], sizes = [8, 8], strides = [1, 1]} : vector<8x64xf32> to vector<8x8xf32>
      %165 = arith.truncf %164 : vector<8x8xf32> to vector<8x8xbf16>
      %c3 = arith.constant 3 : index
      %c0_72 = arith.constant 0 : index
      %c0_73 = arith.constant 0 : index
      %166 = vector.load %arg12[%c3, %c0_72, %c0_73] : memref<4x8x8xbf16, #tpu.memory_space<vmem>>, vector<1x8x8xbf16>
      %167 = vector.shape_cast %166 : vector<1x8x8xbf16> to vector<8x8xbf16>
      %168 = vector.shape_cast %165 : vector<8x8xbf16> to vector<1x8x8xbf16>
      tpu.vector_store %arg12[%c3, %c0_72, %c0_73], %168 {strides = array<i32>} : memref<4x8x8xbf16, #tpu.memory_space<vmem>>, vector<1x8x8xbf16>,
      %169 = vector.extract_strided_slice %133 {offsets = [0, 56], sizes = [8, 8], strides = [1, 1]} : vector<8x64xf32> to vector<8x8xf32>
      %170 = arith.truncf %169 : vector<8x8xf32> to vector<8x8xbf16>
      %c3_74 = arith.constant 3 : index
      %c0_75 = arith.constant 0 : index
      %c0_76 = arith.constant 0 : index
      %171 = vector.load %arg13[%c3_74, %c0_75, %c0_76] : memref<4x8x8xbf16, #tpu.memory_space<vmem>>, vector<1x8x8xbf16>
      %172 = vector.shape_cast %171 : vector<1x8x8xbf16> to vector<8x8xbf16>
      %173 = vector.shape_cast %170 : vector<8x8xbf16> to vector<1x8x8xbf16>
      tpu.vector_store %arg13[%c3_74, %c0_75, %c0_76], %173 {strides = array<i32>} : memref<4x8x8xbf16, #tpu.memory_space<vmem>>, vector<1x8x8xbf16>,
    } else {
    }
    %c0 = arith.constant 0 : index
    %c0_1 = arith.constant 0 : index
    %3 = vector.load %arg8[%c0, %c0_1] : memref<8x32xf32, #tpu.memory_space<vmem>>, vector<8x32xf32>
    %4 = vector.extract_strided_slice %3 {offsets = [0, 0], sizes = [1, 32], strides = [1, 1]} : vector<8x32xf32> to vector<1x32xf32>
    %5 = vector.extract_strided_slice %3 {offsets = [1, 0], sizes = [1, 32], strides = [1, 1]} : vector<8x32xf32> to vector<1x32xf32>
    %6 = vector.extract_strided_slice %3 {offsets = [2, 0], sizes = [1, 32], strides = [1, 1]} : vector<8x32xf32> to vector<1x32xf32>
    %7 = vector.extract_strided_slice %3 {offsets = [3, 0], sizes = [1, 32], strides = [1, 1]} : vector<8x32xf32> to vector<1x32xf32>
    %8 = vector.extract_strided_slice %3 {offsets = [4, 0], sizes = [1, 32], strides = [1, 1]} : vector<8x32xf32> to vector<1x32xf32>
    %9 = vector.extract_strided_slice %3 {offsets = [5, 0], sizes = [1, 32], strides = [1, 1]} : vector<8x32xf32> to vector<1x32xf32>
    %10 = vector.extract_strided_slice %3 {offsets = [6, 0], sizes = [1, 32], strides = [1, 1]} : vector<8x32xf32> to vector<1x32xf32>
    %c8_i32 = arith.constant 8 : i32
    %11 = arith.muli %arg1, %c8_i32 : i32
    %12 = tpu.assume_multiple %11, 8 : i32
    %c0_2 = arith.constant 0 : index
    %13 = arith.index_cast %12 : i32 to index
    %c0_3 = arith.constant 0 : index
    %14 = vector.load %arg2[%c0_2, %13, %c0_3] : memref<1x8x32xf32, #tpu.memory_space<vmem>>, vector<1x8x32xf32>
    %15 = vector.shape_cast %14 : vector<1x8x32xf32> to vector<8x32xf32>
    %16 = arith.truncf %15 : vector<8x32xf32> to vector<8x32xbf16>
    %c0_4 = arith.constant 0 : index
    %c0_5 = arith.constant 0 : index
    %17 = vector.load %arg3[%c0_4, %c0_5] : memref<32x32xbf16, #tpu.memory_space<vmem>>, vector<32x32xbf16>
    %cst = arith.constant dense<0.000000e+00> : vector<8x32xf32>
    %18 = tpu.matmul %16, %17, %cst {dimension_numbers = #tpu.dot_dimension_numbers<[1], [0], [0], [1], [0, 0, 1, 1], [], []>} : vector<8x32xbf16>, vector<32x32xbf16>, vector<8x32xf32> -> vector<8x32xf32>
    %19 = vector.broadcast %4 : vector<1x32xf32> to vector<8x32xf32>
    %20 = arith.addf %18, %19 : vector<8x32xf32>
    %21 = vector.extract_strided_slice %20 {offsets = [0, 0], sizes = [8, 8], strides = [1, 1]} : vector<8x32xf32> to vector<8x8xf32>
    %22 = vector.extract_strided_slice %20 {offsets = [0, 8], sizes = [8, 8], strides = [1, 1]} : vector<8x32xf32> to vector<8x8xf32>
    %23 = vector.extract_strided_slice %20 {offsets = [0, 16], sizes = [8, 8], strides = [1, 1]} : vector<8x32xf32> to vector<8x8xf32>
    %24 = vector.extract_strided_slice %20 {offsets = [0, 24], sizes = [8, 8], strides = [1, 1]} : vector<8x32xf32> to vector<8x8xf32>
    %25 = vector.shape_cast %21 : vector<8x8xf32> to vector<1x8x8xf32>
    %26 = vector.shape_cast %22 : vector<8x8xf32> to vector<1x8x8xf32>
    %27 = vector.shape_cast %23 : vector<8x8xf32> to vector<1x8x8xf32>
    %28 = vector.shape_cast %24 : vector<8x8xf32> to vector<1x8x8xf32>
    %29 = tpu.concatenate %25, %26, %27, %28 in 0 : vector<1x8x8xf32>, vector<1x8x8xf32>, vector<1x8x8xf32>, vector<1x8x8xf32> -> vector<4x8x8xf32>
    %30 = arith.truncf %29 : vector<4x8x8xf32> to vector<4x8x8xbf16>
    %c0_6 = arith.constant 0 : index
    %c0_7 = arith.constant 0 : index
    %c0_8 = arith.constant 0 : index
    %31 = vector.load %arg12[%c0_6, %c0_7, %c0_8] : memref<4x8x8xbf16, #tpu.memory_space<vmem>>, vector<4x8x8xbf16>
    %c0_9 = arith.constant 0 : index
    %c0_10 = arith.constant 0 : index
    %c0_11 = arith.constant 0 : index
    %32 = vector.load %arg13[%c0_9, %c0_10, %c0_11] : memref<4x8x8xbf16, #tpu.memory_space<vmem>>, vector<4x8x8xbf16>
    %cst_12 = arith.constant dense<0.000000e+00> : vector<4x8x8xf32>
    %33 = tpu.matmul %30, %31, %cst_12 {dimension_numbers = #tpu.dot_dimension_numbers<[2], [2], [1], [1], [0, 0, 0, 1, 1, 1], [0], [0]>} : vector<4x8x8xbf16>, vector<4x8x8xbf16>, vector<4x8x8xf32> -> vector<4x8x8xf32>
    %cst_13 = arith.constant dense<0xFF800000> : vector<4x8xf32>
    %34 = vector.multi_reduction <maximumf>, %33, %cst_13 [2] : vector<4x8x8xf32> to vector<4x8xf32>
    %35 = vector.shape_cast %34 : vector<4x8xf32> to vector<4x8x1xf32>
    %36 = vector.broadcast %35 : vector<4x8x1xf32> to vector<4x8x8xf32>
    %37 = arith.subf %33, %36 : vector<4x8x8xf32>
    %38 = math.exp %37 : vector<4x8x8xf32>
    %cst_14 = arith.constant dense<0.000000e+00> : vector<4x8xf32>
    %39 = vector.multi_reduction <add>, %38, %cst_14 [2] : vector<4x8x8xf32> to vector<4x8xf32>
    %40 = vector.shape_cast %39 : vector<4x8xf32> to vector<4x8x1xf32>
    %41 = tpu.reciprocal %40 {approx = true} : vector<4x8x1xf32> -> vector<4x8x1xf32>
    %42 = vector.broadcast %41 : vector<4x8x1xf32> to vector<4x8x8xf32>
    %43 = arith.mulf %38, %42 : vector<4x8x8xf32>
    %44 = arith.truncf %43 : vector<4x8x8xf32> to vector<4x8x8xbf16>
    %cst_15 = arith.constant dense<0.000000e+00> : vector<4x8x8xf32>
    %45 = tpu.matmul %44, %32, %cst_15 {dimension_numbers = #tpu.dot_dimension_numbers<[2], [1], [1], [2], [0, 0, 0, 1, 1, 2], [0], [0]>} : vector<4x8x8xbf16>, vector<4x8x8xbf16>, vector<4x8x8xf32> -> vector<4x8x8xf32>
    %46 = vector.extract_strided_slice %45 {offsets = [0, 0, 0], sizes = [1, 8, 8], strides = [1, 1, 1]} : vector<4x8x8xf32> to vector<1x8x8xf32>
    %47 = vector.shape_cast %46 : vector<1x8x8xf32> to vector<8x8xf32>
    %c0_16 = arith.constant 0 : index
    %c0_17 = arith.constant 0 : index
    %48 = vector.load %arg14[%c0_16, %c0_17] : memref<8x32xf32, #tpu.memory_space<vmem>>, vector<8x8xf32>
    tpu.vector_store %arg14[%c0_16, %c0_17], %47 {strides = array<i32>} : memref<8x32xf32, #tpu.memory_space<vmem>>, vector<8x8xf32>,
    %49 = vector.extract_strided_slice %45 {offsets = [1, 0, 0], sizes = [1, 8, 8], strides = [1, 1, 1]} : vector<4x8x8xf32> to vector<1x8x8xf32>
    %50 = vector.shape_cast %49 : vector<1x8x8xf32> to vector<8x8xf32>
    %c0_18 = arith.constant 0 : index
    %c8 = arith.constant 8 : index
    %51 = vector.load %arg14[%c0_18, %c8] : memref<8x32xf32, #tpu.memory_space<vmem>>, vector<8x8xf32>
    tpu.vector_store %arg14[%c0_18, %c8], %50 {strides = array<i32>} : memref<8x32xf32, #tpu.memory_space<vmem>>, vector<8x8xf32>,
    %52 = vector.extract_strided_slice %45 {offsets = [2, 0, 0], sizes = [1, 8, 8], strides = [1, 1, 1]} : vector<4x8x8xf32> to vector<1x8x8xf32>
    %53 = vector.shape_cast %52 : vector<1x8x8xf32> to vector<8x8xf32>
    %c0_19 = arith.constant 0 : index
    %c16 = arith.constant 16 : index
    %54 = vector.load %arg14[%c0_19, %c16] : memref<8x32xf32, #tpu.memory_space<vmem>>, vector<8x8xf32>
    tpu.vector_store %arg14[%c0_19, %c16], %53 {strides = array<i32>} : memref<8x32xf32, #tpu.memory_space<vmem>>, vector<8x8xf32>,
    %55 = vector.extract_strided_slice %45 {offsets = [3, 0, 0], sizes = [1, 8, 8], strides = [1, 1, 1]} : vector<4x8x8xf32> to vector<1x8x8xf32>
    %56 = vector.shape_cast %55 : vector<1x8x8xf32> to vector<8x8xf32>
    %c0_20 = arith.constant 0 : index
    %c24 = arith.constant 24 : index
    %57 = vector.load %arg14[%c0_20, %c24] : memref<8x32xf32, #tpu.memory_space<vmem>>, vector<8x8xf32>
    tpu.vector_store %arg14[%c0_20, %c24], %56 {strides = array<i32>} : memref<8x32xf32, #tpu.memory_space<vmem>>, vector<8x8xf32>,
    %c0_21 = arith.constant 0 : index
    %c0_22 = arith.constant 0 : index
    %58 = vector.load %arg14[%c0_21, %c0_22] : memref<8x32xf32, #tpu.memory_space<vmem>>, vector<8x32xf32>
    %59 = arith.truncf %58 : vector<8x32xf32> to vector<8x32xbf16>
    %c0_23 = arith.constant 0 : index
    %c0_24 = arith.constant 0 : index
    %60 = vector.load %arg5[%c0_23, %c0_24] : memref<32x32xbf16, #tpu.memory_space<vmem>>, vector<32x32xbf16>
    %cst_25 = arith.constant dense<0.000000e+00> : vector<8x32xf32>
    %61 = tpu.matmul %59, %60, %cst_25 {dimension_numbers = #tpu.dot_dimension_numbers<[1], [0], [0], [1], [0, 0, 1, 1], [], []>} : vector<8x32xbf16>, vector<32x32xbf16>, vector<8x32xf32> -> vector<8x32xf32>
    %62 = vector.broadcast %5 : vector<1x32xf32> to vector<8x32xf32>
    %63 = arith.addf %61, %62 : vector<8x32xf32>
    %64 = arith.addf %15, %63 : vector<8x32xf32>
    %cst_26 = arith.constant dense<0.000000e+00> : vector<8xf32>
    %65 = vector.multi_reduction <add>, %64, %cst_26 [1] : vector<8x32xf32> to vector<8xf32>
    %66 = vector.shape_cast %65 : vector<8xf32> to vector<8x1xf32>
    %cst_27 = arith.constant 3.200000e+01 : f32
    %67 = vector.broadcast %cst_27 : f32 to vector<8x1xf32>
    %68 = arith.divf %66, %67 : vector<8x1xf32>
    %69 = arith.mulf %64, %64 : vector<8x32xf32>
    %cst_28 = arith.constant dense<0.000000e+00> : vector<8xf32>
    %70 = vector.multi_reduction <add>, %69, %cst_28 [1] : vector<8x32xf32> to vector<8xf32>
    %71 = vector.shape_cast %70 : vector<8xf32> to vector<8x1xf32>
    %cst_29 = arith.constant 3.200000e+01 : f32
    %72 = vector.broadcast %cst_29 : f32 to vector<8x1xf32>
    %73 = arith.divf %71, %72 : vector<8x1xf32>
    %74 = arith.mulf %68, %68 : vector<8x1xf32>
    %75 = arith.subf %73, %74 : vector<8x1xf32>
    %76 = vector.broadcast %68 : vector<8x1xf32> to vector<8x32xf32>
    %77 = arith.subf %64, %76 : vector<8x32xf32>
    %cst_30 = arith.constant 9.99999974E-6 : f32
    %78 = vector.broadcast %cst_30 : f32 to vector<8x1xf32>
    %79 = arith.addf %75, %78 : vector<8x1xf32>
    %80 = math.rsqrt %79 : vector<8x1xf32>
    %81 = vector.broadcast %80 : vector<8x1xf32> to vector<8x32xf32>
    %82 = arith.mulf %77, %81 : vector<8x32xf32>
    %83 = vector.broadcast %6 : vector<1x32xf32> to vector<8x32xf32>
    %84 = arith.mulf %82, %83 : vector<8x32xf32>
    %85 = vector.broadcast %7 : vector<1x32xf32> to vector<8x32xf32>
    %86 = arith.addf %84, %85 : vector<8x32xf32>
    %87 = arith.truncf %86 : vector<8x32xf32> to vector<8x32xbf16>
    %c0_31 = arith.constant 0 : index
    %c0_32 = arith.constant 0 : index
    %88 = vector.load %arg6[%c0_31, %c0_32] : memref<32x64xbf16, #tpu.memory_space<vmem>>, vector<32x64xbf16>
    %cst_33 = arith.constant dense<0.000000e+00> : vector<8x64xf32>
    %89 = tpu.matmul %87, %88, %cst_33 {dimension_numbers = #tpu.dot_dimension_numbers<[1], [0], [0], [1], [0, 0, 1, 1], [], []>} : vector<8x32xbf16>, vector<32x64xbf16>, vector<8x64xf32> -> vector<8x64xf32>
    %c0_34 = arith.constant 0 : index
    %c0_35 = arith.constant 0 : index
    %90 = vector.load %arg10[%c0_34, %c0_35] : memref<1x64xf32, #tpu.memory_space<vmem>>, vector<1x64xf32>
    %91 = vector.broadcast %90 : vector<1x64xf32> to vector<8x64xf32>
    %92 = arith.addf %89, %91 : vector<8x64xf32>
    %cst_36 = arith.constant 0.000000e+00 : f32
    %93 = vector.broadcast %cst_36 : f32 to vector<8x64xf32>
    %94 = arith.maximumf %92, %93 : vector<8x64xf32>
    %95 = arith.truncf %94 : vector<8x64xf32> to vector<8x64xbf16>
    %c0_37 = arith.constant 0 : index
    %c0_38 = arith.constant 0 : index
    %96 = vector.load %arg7[%c0_37, %c0_38] : memref<64x32xbf16, #tpu.memory_space<vmem>>, vector<64x32xbf16>
    %cst_39 = arith.constant dense<0.000000e+00> : vector<8x32xf32>
    %97 = tpu.matmul %95, %96, %cst_39 {dimension_numbers = #tpu.dot_dimension_numbers<[1], [0], [0], [1], [0, 0, 1, 1], [], []>} : vector<8x64xbf16>, vector<64x32xbf16>, vector<8x32xf32> -> vector<8x32xf32>
    %98 = vector.broadcast %8 : vector<1x32xf32> to vector<8x32xf32>
    %99 = arith.addf %97, %98 : vector<8x32xf32>
    %100 = arith.addf %86, %99 : vector<8x32xf32>
    %cst_40 = arith.constant dense<0.000000e+00> : vector<8xf32>
    %101 = vector.multi_reduction <add>, %100, %cst_40 [1] : vector<8x32xf32> to vector<8xf32>
    %102 = vector.shape_cast %101 : vector<8xf32> to vector<8x1xf32>
    %cst_41 = arith.constant 3.200000e+01 : f32
    %103 = vector.broadcast %cst_41 : f32 to vector<8x1xf32>
    %104 = arith.divf %102, %103 : vector<8x1xf32>
    %105 = arith.mulf %100, %100 : vector<8x32xf32>
    %cst_42 = arith.constant dense<0.000000e+00> : vector<8xf32>
    %106 = vector.multi_reduction <add>, %105, %cst_42 [1] : vector<8x32xf32> to vector<8xf32>
    %107 = vector.shape_cast %106 : vector<8xf32> to vector<8x1xf32>
    %cst_43 = arith.constant 3.200000e+01 : f32
    %108 = vector.broadcast %cst_43 : f32 to vector<8x1xf32>
    %109 = arith.divf %107, %108 : vector<8x1xf32>
    %110 = arith.mulf %104, %104 : vector<8x1xf32>
    %111 = arith.subf %109, %110 : vector<8x1xf32>
    %112 = vector.broadcast %104 : vector<8x1xf32> to vector<8x32xf32>
    %113 = arith.subf %100, %112 : vector<8x32xf32>
    %cst_44 = arith.constant 9.99999974E-6 : f32
    %114 = vector.broadcast %cst_44 : f32 to vector<8x1xf32>
    %115 = arith.addf %111, %114 : vector<8x1xf32>
    %116 = math.rsqrt %115 : vector<8x1xf32>
    %117 = vector.broadcast %116 : vector<8x1xf32> to vector<8x32xf32>
    %118 = arith.mulf %113, %117 : vector<8x32xf32>
    %119 = vector.broadcast %9 : vector<1x32xf32> to vector<8x32xf32>
    %120 = arith.mulf %118, %119 : vector<8x32xf32>
    %121 = vector.broadcast %10 : vector<1x32xf32> to vector<8x32xf32>
    %122 = arith.addf %120, %121 : vector<8x32xf32>
    %c0_45 = arith.constant 0 : index
    %c0_46 = arith.constant 0 : index
    %c0_47 = arith.constant 0 : index
    %123 = vector.load %arg11[%c0_45, %c0_46, %c0_47] : memref<1x8x32xf32, #tpu.memory_space<vmem>>, vector<1x8x32xf32>
    %124 = vector.shape_cast %123 : vector<1x8x32xf32> to vector<8x32xf32>
    %125 = vector.shape_cast %122 : vector<8x32xf32> to vector<1x8x32xf32>
    tpu.vector_store %arg11[%c0_45, %c0_46, %c0_47], %125 {strides = array<i32>} : memref<1x8x32xf32, #tpu.memory_space<vmem>>, vector<1x8x32xf32>,
    return
  }
  func.func @transform_0(%arg0: i32, %arg1: i32) -> (i32, i32, i32) {
    %c0_i32 = arith.constant 0 : i32
    %c0_i32_0 = arith.constant 0 : i32
    %c0_i32_1 = arith.constant 0 : i32
    return %arg0, %c0_i32, %c0_i32_0 : i32, i32, i32
  }
  func.func @transform_1(%arg0: i32, %arg1: i32) -> (i32, i32) {
    %c0_i32 = arith.constant 0 : i32
    %c0_i32_0 = arith.constant 0 : i32
    %c0_i32_1 = arith.constant 0 : i32
    return %c0_i32, %c0_i32_0 : i32, i32
  }
  func.func @transform_2(%arg0: i32, %arg1: i32) -> (i32, i32) {
    %c0_i32 = arith.constant 0 : i32
    %c0_i32_0 = arith.constant 0 : i32
    %c0_i32_1 = arith.constant 0 : i32
    return %c0_i32, %c0_i32_0 : i32, i32
  }
  func.func @transform_3(%arg0: i32, %arg1: i32) -> (i32, i32) {
    %c0_i32 = arith.constant 0 : i32
    %c0_i32_0 = arith.constant 0 : i32
    %c0_i32_1 = arith.constant 0 : i32
    return %c0_i32, %c0_i32_0 : i32, i32
  }
  func.func @transform_4(%arg0: i32, %arg1: i32) -> (i32, i32) {
    %c0_i32 = arith.constant 0 : i32
    %c0_i32_0 = arith.constant 0 : i32
    %c0_i32_1 = arith.constant 0 : i32
    return %c0_i32, %c0_i32_0 : i32, i32
  }
  func.func @transform_5(%arg0: i32, %arg1: i32) -> (i32, i32) {
    %c0_i32 = arith.constant 0 : i32
    %c0_i32_0 = arith.constant 0 : i32
    %c0_i32_1 = arith.constant 0 : i32
    return %c0_i32, %c0_i32_0 : i32, i32
  }
  func.func @transform_6(%arg0: i32, %arg1: i32) -> (i32, i32) {
    %c0_i32 = arith.constant 0 : i32
    %c0_i32_0 = arith.constant 0 : i32
    %c0_i32_1 = arith.constant 0 : i32
    return %c0_i32, %c0_i32_0 : i32, i32
  }
  func.func @transform_7(%arg0: i32, %arg1: i32) -> (i32, i32) {
    %c0_i32 = arith.constant 0 : i32
    %c0_i32_0 = arith.constant 0 : i32
    %c0_i32_1 = arith.constant 0 : i32
    return %c0_i32, %c0_i32_0 : i32, i32
  }
  func.func @transform_8(%arg0: i32, %arg1: i32) -> (i32, i32) {
    %c0_i32 = arith.constant 0 : i32
    %c0_i32_0 = arith.constant 0 : i32
    %c0_i32_1 = arith.constant 0 : i32
    return %c0_i32, %c0_i32_0 : i32, i32
  }
  func.func @transform_9(%arg0: i32, %arg1: i32) -> (i32, i32, i32) {
    %c0_i32 = arith.constant 0 : i32
    %c0_i32_0 = arith.constant 0 : i32
    return %arg0, %arg1, %c0_i32 : i32, i32, i32
  }
}

</mosaic_0001>

<llo_original>
// kernel: transformer_encoder_forward.3
$region0: #{transformer_encoder_forward.3}
  #allocation0 [shape = 'u32[]', space=smem, size = 0x4, offset = 0x4, fixed_abs, tag = 'smem constant byte address 0x4 - core index']
  #allocation1 [shape = 'u32[144,128]{1,0:T(1,128)}', space=vmem, size = 0x12000, scoped, tag = 'internal scratch']
  #allocation2 [shape = 'bf16[4,8,8]{2,1,0:T(8,128)(2,1)}', space=vmem, size = 0x2000, scoped, tag = 'scratch operand']
  #allocation3 [shape = 'bf16[4,8,8]{2,1,0:T(8,128)(2,1)}', space=vmem, size = 0x2000, scoped, tag = 'scratch operand']
  #allocation4 [shape = 'f32[8,32]{1,0:T(8,128)}', space=vmem, size = 0x1000, scoped, tag = 'scratch operand']
  %s0 = inlined_call_operand.vmem [shape: f32[2,8,32], index: 0, kind: input, shape index: {}]
  %s1 = inlined_call_operand.vmem [shape: bf16[32,32], index: 1, kind: input, shape index: {}]
  %s2 = inlined_call_operand.vmem [shape: bf16[32,64], index: 2, kind: input, shape index: {}]
  %s3 = inlined_call_operand.vmem [shape: bf16[32,32], index: 3, kind: input, shape index: {}]
  %s4 = inlined_call_operand.vmem [shape: bf16[32,64], index: 4, kind: input, shape index: {}]
  %s5 = inlined_call_operand.vmem [shape: bf16[64,32], index: 5, kind: input, shape index: {}]
  %s6 = inlined_call_operand.vmem [shape: f32[8,32], index: 6, kind: input, shape index: {}]
  %s7 = inlined_call_operand.vmem [shape: f32[1,64], index: 7, kind: input, shape index: {}]
  %s8 = inlined_call_operand.vmem [shape: f32[1,64], index: 8, kind: input, shape index: {}]
  %s9 = inlined_call_operand.hbm [shape: f32[2,8,32], index: 9, kind: output, shape index: {}]
  %s10 = sld [smem:[#allocation0]]
  $region73: #{transformer_encoder_forward.3} parent=0
    _
  %s12 = ssub.s32 1, %s10
  %s13 = scalar_select 0, %s12, %s10
  $region1: #{transformer_encoder_forward.3} parent=0
    #allocation5 [shape = 'u8[8192]{0}', space=vmem, size = 0x2000, scoped, tag = 'output window, operand 0']
    #allocation6 [shape = 's32[2]{0}', space=sflag, size = 0x8, scoped, tag = 'scoped memory for transformer_encoder_forward.3']
    %14 = vsyncpa [#allocation6], 0
    %s15 = scalar_lea.sflag [#allocation6], 1
    %16 = vsyncpa %s15, 0
    loop: start=0, step=1, limit=4
    $region2: #{transformer_encoder_forward.3} parent=1 // loop_pre_header
      _
    $region3: #{transformer_encoder_forward.3} parent=1 // loop_header
      %s18 = sphi 0, %s22
      %p19 = scmp.ge.s32.totalorder %s18, 4
      %s25 = sphi 0, %s37
      %s26 = sphi 0, %s33
      %s27 = sphi 0, %s25
      %s28 = sphi 0, %s26
      %s29 = sphi 0, %s27
      %s30 = sphi 0, %s28
      %s40 = sphi 0, %s42
      %s43 = sphi 0, %s40
      %s44 = sphi 0, %s43
      %s60 = sphi 0, %s44
      %s64 = sphi 0, %s64
      %s66 = sphi 0, %s64
      %s67 = sphi 0, %s66
      %s81 = sphi 0, %s67
      %s85 = sphi 0, %s85
      %s87 = sphi 0, %s85
      %s88 = sphi 0, %s87
      %s102 = sphi 0, %s88
      %s106 = sphi 0, %s106
      %s108 = sphi 0, %s106
      %s109 = sphi 0, %s108
      %s123 = sphi 0, %s109
      %s127 = sphi 0, %s127
      %s129 = sphi 0, %s127
      %s130 = sphi 0, %s129
      %s144 = sphi 0, %s130
      %s148 = sphi 0, %s148
      %s150 = sphi 0, %s148
      %s151 = sphi 0, %s150
      %s165 = sphi 0, %s151
      %s169 = sphi 0, %s169
      %s171 = sphi 0, %s169
      %s172 = sphi 0, %s171
      %s186 = sphi 0, %s172
      %s190 = sphi 0, %s190
      %s192 = sphi 0, %s190
      %s193 = sphi 0, %s192
      %s207 = sphi 0, %s193
      %s211 = sphi 0, %s211
      %s213 = sphi 0, %s211
      %s214 = sphi 0, %s213
      %s228 = sphi 0, %s214
      %s236 = sphi 0, %s238
      %s239 = sphi 0, %s236
      %s240 = sphi 0, %s239
      %s256 = sphi 0, %s240
    $region4: #{transformer_encoder_forward.3} parent=1 // loop_header_branch
      %21 = sbr.rel (%p19) target = $region8
    $region5: #{transformer_encoder_forward.3} parent=1 // loop_body
      %s23 = ssub.s32 %s18, 1
      %s24 = ssub.s32 %s18, 2
      %s31 = sadd.s32 1, %s26
      %p32 = scmp.ge.s32.totalorder %s31, 1
      %s33 = scalar_select %p32, 0, %s31
      %s34 = sadd.s32 1, %s25
      %s35 = scalar_select %p32, %s34, %s25
      %p36 = scmp.ge.s32.totalorder %s35, 2
      %s37 = scalar_select %p36, 0, %s35
      %s38 = ssub.s32 %s25, %s37
      %p39 = scmp.eq.s32.totalorder %s38, 0
      %s41 = sadd.s32 %s40, 1
      %s42 = scalar_select %p39, %s40, %s41
      %p45 = pneg %p39
      %p46 = scmp.eq.s32.totalorder %s18, 1
      %p47 = por %p45, %p46
      %p48 = scmp.ne.s32.totalorder %s40, %s43
      %p49 = scmp.eq.s32.totalorder %s18, 0
      %p50 = por %p48, %p49
      %p51 = scmp.ne.s32.totalorder %s40, %s43
      %p52 = scmp.eq.s32.totalorder %s23, 1
      %p53 = por %p51, %p52
      %p54 = scmp.ne.s32.totalorder %s43, %s44
      %p55 = scmp.eq.s32.totalorder %s23, 0
      %p56 = por %p54, %p55
      %p57 = scmp.ne.s32.totalorder %s43, %s44
      %p58 = scmp.eq.s32.totalorder %s24, 1
      %p59 = por %p57, %p58
      %p61 = scmp.ne.s32.totalorder %s44, %s60
      %p62 = scmp.eq.s32.totalorder %s24, 0
      %p63 = por %p61, %p62
      %s65 = sadd.s32 %s64, 1
      %p68 = scmp.eq.s32.totalorder %s18, 1
      %p69 = scmp.ne.s32.totalorder %s64, %s66
      %p70 = scmp.eq.s32.totalorder %s18, 0
      %p71 = por %p69, %p70
      %p72 = scmp.ne.s32.totalorder %s64, %s66
      %p73 = scmp.eq.s32.totalorder %s23, 1
      %p74 = por %p72, %p73
      %p75 = scmp.ne.s32.totalorder %s66, %s67
      %p76 = scmp.eq.s32.totalorder %s23, 0
      %p77 = por %p75, %p76
      %p78 = scmp.ne.s32.totalorder %s66, %s67
      %p79 = scmp.eq.s32.totalorder %s24, 1
      %p80 = por %p78, %p79
      %p82 = scmp.ne.s32.totalorder %s67, %s81
      %p83 = scmp.eq.s32.totalorder %s24, 0
      %p84 = por %p82, %p83
      %s86 = sadd.s32 %s85, 1
      %p89 = scmp.eq.s32.totalorder %s18, 1
      %p90 = scmp.ne.s32.totalorder %s85, %s87
      %p91 = scmp.eq.s32.totalorder %s18, 0
      %p92 = por %p90, %p91
      %p93 = scmp.ne.s32.totalorder %s85, %s87
      %p94 = scmp.eq.s32.totalorder %s23, 1
      %p95 = por %p93, %p94
      %p96 = scmp.ne.s32.totalorder %s87, %s88
      %p97 = scmp.eq.s32.totalorder %s23, 0
      %p98 = por %p96, %p97
      %p99 = scmp.ne.s32.totalorder %s87, %s88
      %p100 = scmp.eq.s32.totalorder %s24, 1
      %p101 = por %p99, %p100
      %p103 = scmp.ne.s32.totalorder %s88, %s102
      %p104 = scmp.eq.s32.totalorder %s24, 0
      %p105 = por %p103, %p104
      %s107 = sadd.s32 %s106, 1
      %p110 = scmp.eq.s32.totalorder %s18, 1
      %p111 = scmp.ne.s32.totalorder %s106, %s108
      %p112 = scmp.eq.s32.totalorder %s18, 0
      %p113 = por %p111, %p112
      %p114 = scmp.ne.s32.totalorder %s106, %s108
      %p115 = scmp.eq.s32.totalorder %s23, 1
      %p116 = por %p114, %p115
      %p117 = scmp.ne.s32.totalorder %s108, %s109
      %p118 = scmp.eq.s32.totalorder %s23, 0
      %p119 = por %p117, %p118
      %p120 = scmp.ne.s32.totalorder %s108, %s109
      %p121 = scmp.eq.s32.totalorder %s24, 1
      %p122 = por %p120, %p121
      %p124 = scmp.ne.s32.totalorder %s109, %s123
      %p125 = scmp.eq.s32.totalorder %s24, 0
      %p126 = por %p124, %p125
      %s128 = sadd.s32 %s127, 1
      %p131 = scmp.eq.s32.totalorder %s18, 1
      %p132 = scmp.ne.s32.totalorder %s127, %s129
      %p133 = scmp.eq.s32.totalorder %s18, 0
      %p134 = por %p132, %p133
      %p135 = scmp.ne.s32.totalorder %s127, %s129
      %p136 = scmp.eq.s32.totalorder %s23, 1
      %p137 = por %p135, %p136
      %p138 = scmp.ne.s32.totalorder %s129, %s130
      %p139 = scmp.eq.s32.totalorder %s23, 0
      %p140 = por %p138, %p139
      %p141 = scmp.ne.s32.totalorder %s129, %s130
      %p142 = scmp.eq.s32.totalorder %s24, 1
      %p143 = por %p141, %p142
      %p145 = scmp.ne.s32.totalorder %s130, %s144
      %p146 = scmp.eq.s32.totalorder %s24, 0
      %p147 = por %p145, %p146
      %s149 = sadd.s32 %s148, 1
      %p152 = scmp.eq.s32.totalorder %s18, 1
      %p153 = scmp.ne.s32.totalorder %s148, %s150
      %p154 = scmp.eq.s32.totalorder %s18, 0
      %p155 = por %p153, %p154
      %p156 = scmp.ne.s32.totalorder %s148, %s150
      %p157 = scmp.eq.s32.totalorder %s23, 1
      %p158 = por %p156, %p157
      %p159 = scmp.ne.s32.totalorder %s150, %s151
      %p160 = scmp.eq.s32.totalorder %s23, 0
      %p161 = por %p159, %p160
      %p162 = scmp.ne.s32.totalorder %s150, %s151
      %p163 = scmp.eq.s32.totalorder %s24, 1
      %p164 = por %p162, %p163
      %p166 = scmp.ne.s32.totalorder %s151, %s165
      %p167 = scmp.eq.s32.totalorder %s24, 0
      %p168 = por %p166, %p167
      %s170 = sadd.s32 %s169, 1
      %p173 = scmp.eq.s32.totalorder %s18, 1
      %p174 = scmp.ne.s32.totalorder %s169, %s171
      %p175 = scmp.eq.s32.totalorder %s18, 0
      %p176 = por %p174, %p175
      %p177 = scmp.ne.s32.totalorder %s169, %s171
      %p178 = scmp.eq.s32.totalorder %s23, 1
      %p179 = por %p177, %p178
      %p180 = scmp.ne.s32.totalorder %s171, %s172
      %p181 = scmp.eq.s32.totalorder %s23, 0
      %p182 = por %p180, %p181
      %p183 = scmp.ne.s32.totalorder %s171, %s172
      %p184 = scmp.eq.s32.totalorder %s24, 1
      %p185 = por %p183, %p184
      %p187 = scmp.ne.s32.totalorder %s172, %s186
      %p188 = scmp.eq.s32.totalorder %s24, 0
      %p189 = por %p187, %p188
      %s191 = sadd.s32 %s190, 1
      %p194 = scmp.eq.s32.totalorder %s18, 1
      %p195 = scmp.ne.s32.totalorder %s190, %s192
      %p196 = scmp.eq.s32.totalorder %s18, 0
      %p197 = por %p195, %p196
      %p198 = scmp.ne.s32.totalorder %s190, %s192
      %p199 = scmp.eq.s32.totalorder %s23, 1
      %p200 = por %p198, %p199
      %p201 = scmp.ne.s32.totalorder %s192, %s193
      %p202 = scmp.eq.s32.totalorder %s23, 0
      %p203 = por %p201, %p202
      %p204 = scmp.ne.s32.totalorder %s192, %s193
      %p205 = scmp.eq.s32.totalorder %s24, 1
      %p206 = por %p204, %p205
      %p208 = scmp.ne.s32.totalorder %s193, %s207
      %p209 = scmp.eq.s32.totalorder %s24, 0
      %p210 = por %p208, %p209
      %s212 = sadd.s32 %s211, 1
      %p215 = scmp.eq.s32.totalorder %s18, 1
      %p216 = scmp.ne.s32.totalorder %s211, %s213
      %p217 = scmp.eq.s32.totalorder %s18, 0
      %p218 = por %p216, %p217
      %p219 = scmp.ne.s32.totalorder %s211, %s213
      %p220 = scmp.eq.s32.totalorder %s23, 1
      %p221 = por %p219, %p220
      %p222 = scmp.ne.s32.totalorder %s213, %s214
      %p223 = scmp.eq.s32.totalorder %s23, 0
      %p224 = por %p222, %p223
      %p225 = scmp.ne.s32.totalorder %s213, %s214
      %p226 = scmp.eq.s32.totalorder %s24, 1
      %p227 = por %p225, %p226
      %p229 = scmp.ne.s32.totalorder %s214, %s228
      %p230 = scmp.eq.s32.totalorder %s24, 0
      %p231 = por %p229, %p230
      %s232 = ssub.s32 %s25, %s37
      %s233 = ssub.s32 %s26, %s33
      %s234 = sor.u32 %s232, %s233
      %p235 = scmp.eq.s32.totalorder %s234, 0
      %s237 = sadd.s32 %s236, 1
      %s238 = scalar_select %p235, %s236, %s237
      %p241 = pneg %p235
      %p242 = scmp.eq.s32.totalorder %s18, 1
      %p243 = por %p241, %p242
      %p244 = scmp.ne.s32.totalorder %s236, %s239
      %p245 = scmp.eq.s32.totalorder %s18, 0
      %p246 = por %p244, %p245
      %p247 = scmp.ne.s32.totalorder %s236, %s239
      %p248 = scmp.eq.s32.totalorder %s23, 1
      %p249 = por %p247, %p248
      %p250 = scmp.ne.s32.totalorder %s239, %s240
      %p251 = scmp.eq.s32.totalorder %s23, 0
      %p252 = por %p250, %p251
      %p253 = scmp.ne.s32.totalorder %s239, %s240
      %p254 = scmp.eq.s32.totalorder %s24, 1
      %p255 = por %p253, %p254
      %p257 = scmp.ne.s32.totalorder %s240, %s256
      %p258 = scmp.eq.s32.totalorder %s24, 0
      %p259 = por %p257, %p258
      %p260 = scmp.le.s32.totalorder 1, %s18
      %p261 = scmp.lt.s32.totalorder %s18, 3
      %p262 = pnand %p260, %p261
      %p263 = pneg %p262
      // Predicated region
      $region9: #{transformer_encoder_forward.3} parent=5 // pred_check
        _
      $region10: #{transformer_encoder_forward.3} parent=5 // pred_check_branch
        %265 = sbr.rel (%p262) target = $region12
      $region11: #{transformer_encoder_forward.3} parent=5 // pred_region
        %s266 = ssub.s32 %s18, 1
        // Predicated region
        $region13: #{transformer_encoder_forward.3} parent=11 // pred_check
          %p267 = pneg %p77
        $region14: #{transformer_encoder_forward.3} parent=11 // pred_check_branch
          %269 = sbr.rel (%p267) target = $region16
        $region15: #{transformer_encoder_forward.3} parent=11 // pred_region
          _
        $region16: #{transformer_encoder_forward.3} parent=11 // pred_fallthru
          _
        // Predicated region
        $region17: #{transformer_encoder_forward.3} parent=11 // pred_check
          %p270 = pneg %p98
        $region18: #{transformer_encoder_forward.3} parent=11 // pred_check_branch
          %272 = sbr.rel (%p270) target = $region20
        $region19: #{transformer_encoder_forward.3} parent=11 // pred_region
          _
        $region20: #{transformer_encoder_forward.3} parent=11 // pred_fallthru
          _
        // Predicated region
        $region21: #{transformer_encoder_forward.3} parent=11 // pred_check
          %p273 = pneg %p119
        $region22: #{transformer_encoder_forward.3} parent=11 // pred_check_branch
          %275 = sbr.rel (%p273) target = $region24
        $region23: #{transformer_encoder_forward.3} parent=11 // pred_region
          _
        $region24: #{transformer_encoder_forward.3} parent=11 // pred_fallthru
          _
        // Predicated region
        $region25: #{transformer_encoder_forward.3} parent=11 // pred_check
          %p276 = pneg %p140
        $region26: #{transformer_encoder_forward.3} parent=11 // pred_check_branch
          %278 = sbr.rel (%p276) target = $region28
        $region27: #{transformer_encoder_forward.3} parent=11 // pred_region
          _
        $region28: #{transformer_encoder_forward.3} parent=11 // pred_fallthru
          _
        // Predicated region
        $region29: #{transformer_encoder_forward.3} parent=11 // pred_check
          %p279 = pneg %p161
        $region30: #{transformer_encoder_forward.3} parent=11 // pred_check_branch
          %281 = sbr.rel (%p279) target = $region32
        $region31: #{transformer_encoder_forward.3} parent=11 // pred_region
          _
        $region32: #{transformer_encoder_forward.3} parent=11 // pred_fallthru
          _
        // Predicated region
        $region33: #{transformer_encoder_forward.3} parent=11 // pred_check
          %p282 = pneg %p182
        $region34: #{transformer_encoder_forward.3} parent=11 // pred_check_branch
          %284 = sbr.rel (%p282) target = $region36
        $region35: #{transformer_encoder_forward.3} parent=11 // pred_region
          _
        $region36: #{transformer_encoder_forward.3} parent=11 // pred_fallthru
          _
        // Predicated region
        $region37: #{transformer_encoder_forward.3} parent=11 // pred_check
          %p285 = pneg %p203
        $region38: #{transformer_encoder_forward.3} parent=11 // pred_check_branch
          %287 = sbr.rel (%p285) target = $region40
        $region39: #{transformer_encoder_forward.3} parent=11 // pred_region
          _
        $region40: #{transformer_encoder_forward.3} parent=11 // pred_fallthru
          _
        // Predicated region
        $region41: #{transformer_encoder_forward.3} parent=11 // pred_check
          %p288 = pneg %p224
        $region42: #{transformer_encoder_forward.3} parent=11 // pred_check_branch
          %290 = sbr.rel (%p288) target = $region44
        $region43: #{transformer_encoder_forward.3} parent=11 // pred_region
          _
        $region44: #{transformer_encoder_forward.3} parent=11 // pred_fallthru
          _
      $region12: #{transformer_encoder_forward.3} parent=5 // pred_fallthru
        _
      %p291 = scmp.lt.s32.totalorder %s18, 2
      // Predicated region
      $region45: #{transformer_encoder_forward.3} parent=5 // pred_check
        %p292 = pneg %p291
      $region46: #{transformer_encoder_forward.3} parent=5 // pred_check_branch
        %294 = sbr.rel (%p292) target = $region48
      $region47: #{transformer_encoder_forward.3} parent=5 // pred_region
        // Predicated region
        $region49: #{transformer_encoder_forward.3} parent=47 // pred_check
          %p295 = pneg %p50
        $region50: #{transformer_encoder_forward.3} parent=47 // pred_check_branch
          %297 = sbr.rel (%p295) target = $region52
        $region51: #{transformer_encoder_forward.3} parent=47 // pred_region
          %p298 = scmp.lt.s32.totalorder %s25, 1
          %s299 = scalar_select %p298, %s25, 1
          %s300 = smul.addr %s299, 8
          %s301 = scalar_lea.vmem %s0, %s300
        $region52: #{transformer_encoder_forward.3} parent=47 // pred_fallthru
          _
      $region48: #{transformer_encoder_forward.3} parent=5 // pred_fallthru
        _
      %p302 = scmp.le.s32.totalorder 1, %s18
      %p303 = scmp.lt.s32.totalorder %s18, 3
      %p304 = pnand %p302, %p303
      %p305 = pneg %p304
      // Predicated region
      $region53: #{transformer_encoder_forward.3} parent=5 // pred_check
        _
      $region54: #{transformer_encoder_forward.3} parent=5 // pred_check_branch
        %307 = sbr.rel (%p304) target = $region56
      $region55: #{transformer_encoder_forward.3} parent=5 // pred_region
        %s308 = ssub.s32 %s18, 1
        %p309 = scmp.lt.s32.totalorder %s27, 1
        %s310 = scalar_select %p309, %s27, 1
        %s311 = smul.addr %s310, 8
        %s312 = scalar_lea.vmem %s0, %s311
        %p313 = pneg %p56
        %p314 = pneg %p53
        %p315 = pneg %p77
        %p316 = pneg %p74
        %p317 = pneg %p98
        %p318 = pneg %p95
        %p319 = pneg %p119
        %p320 = pneg %p116
        %p321 = pneg %p140
        %p322 = pneg %p137
        %p323 = pneg %p161
        %p324 = pneg %p158
        %p325 = pneg %p182
        %p326 = pneg %p179
        %p327 = pneg %p203
        %p328 = pneg %p200
        %p329 = pneg %p224
        %p330 = pneg %p221
        %p331 = pneg %p252
        %p332 = pneg %p249
        %s333 = sand.u32 %s239, 1
        %s334 = scalar_lea.sflag [#allocation6], %s333
        %s335 = sand.u32 %s239, 1
        %s336 = smul.addr %s335, 8
        %s337 = scalar_lea.vmem [#allocation5], %s336
        %p338 = scmp.lt.s32.totalorder %s27, 1
        %s339 = scalar_select %p338, %s27, 1
        %s340 = smul.addr %s339, 8
        %s341 = scalar_lea.vmem %s0, %s340
        %p343 = scmp.eq.s32.totalorder %s28, 0
        // Predicated region
        $region57: #{transformer_encoder_forward.3} parent=55 // pred_check
          %p344 = pneg %p343
        $region58: #{transformer_encoder_forward.3} parent=55 // pred_check_branch
          %346 = sbr.rel (%p344) target = $region60
        $region59: #{transformer_encoder_forward.3} parent=55 // pred_region
          %v347 = vld [vmem:[%s341] sm:$0xff]
          %v348 = vpack.c.bf16 %v347, %v347
          %v349 = vld [vmem:[%s2] sm:$0xf]
          %v350 = vld [vmem:[%s2 + $0x4] sm:$0xf]
          %v351 = vld [vmem:[%s2 + $0x8] sm:$0xf]
          %v352 = vld [vmem:[%s2 + $0xc] sm:$0xf]
          %v353 = vld [vmem:[%s7] sm:$0x1]
          %v355 = vlaneseq
          %v356 = vshrl.u32 %v355, 7
          %v357 = vsub.s32 0, %v356
          %v358 = vrot.slane %v353, %v357
          %v364 = vunpack.c.l.b16 %v349
          %v365 = vunpack.c.l.b16 %v350
          %v366 = vunpack.c.l.b16 %v351
          %v367 = vunpack.c.l.b16 %v352
          %v368 = vpack.c.b16 %v365, %v364
          %v369 = vpack.c.b16 %v367, %v366
          %vm372 = vcmask 261120
          %v374 = vsel %vm372, %v348, 0
          %376 = vmatprep.subr.bf16.mxu0 0
          %377 = vmatpush1.bf16.msra.mxu0 %v368
          %378 = vmatprep.subr.bf16.mxu0 0
          %379 = vmatpush1.bf16.msra.mxu0 %v369
          %380 = vmatprep.subr.bf16.mxu0 0
          %381 = vmatpush1.bf16.msra.mxu0 0
          %382 = vmatprep.subr.bf16.mxu0 0
          %383 = vmatpush1.bf16.msra.mxu0 0
          %384 = vmatprep.subr.bf16.mxu0 0
          %385 = vmatpush1.bf16.msra.mxu0 0
          %386 = vmatprep.subr.bf16.mxu0 0
          %387 = vmatpush1.bf16.msra.mxu0 0
          %388 = vmatprep.subr.bf16.mxu0 0
          %389 = vmatpush1.bf16.msra.mxu0 0
          %390 = vmatprep.subr.bf16.mxu0 0
          %391 = vmatpush1.bf16.msra.mxu0 0
          %392 = vmatprep.subr.bf16.mxu0 0
          %393 = vmatpush1.bf16.msra.mxu0 0
          %394 = vmatprep.subr.bf16.mxu0 0
          %395 = vmatpush1.bf16.msra.mxu0 0
          %396 = vmatprep.subr.bf16.mxu0 0
          %397 = vmatpush1.bf16.msra.mxu0 0
          %398 = vmatprep.subr.bf16.mxu0 0
          %399 = vmatpush1.bf16.msra.mxu0 0
          %400 = vmatprep.subr.bf16.mxu0 0
          %401 = vmatpush1.bf16.msra.mxu0 0
          %402 = vmatprep.subr.bf16.mxu0 0
          %403 = vmatpush1.bf16.msra.mxu0 0
          %404 = vmatprep.subr.bf16.mxu0 0
          %405 = vmatpush1.bf16.msra.mxu0 0
          %406 = vmatprep.subr.bf16.mxu0 0
          %407 = vmatpush1.bf16.msra.mxu0 0
          %408 = vmatprep.mubr.bf16.mxu0 0
          %409 = vmatmul.mubr.bf16.gmra.mrb[0].mxu0 %v374
          %v410 = vpop.f32.mrb[0].mxu0
          %v411 = vadd.f32 %v358, %v410
          %v412 = vpop.f32.mrb[0].mxu0
          %v413 = vpop.f32.mrb[0].mxu0
          %v414 = vpop.f32.mrb[0].mxu0
          %415 = vdwg.mxu0
          %v416 = vpack.c.bf16 %v411, %v411
          %vm417 = vcmask 60416
          %418 = vst.msk [vmem:[#allocation2] sm:$0xf] %vm417, %v416
          %v420 = vunpack.c.l.b16 %v416
          %v421 = vpack.c.b16 %v420, %v420
          %422 = vrot.lane.b32.xlu0 %v421, 96
          %v423 = vpop.permute.xlu0 %422
          %425 = vst.msk [vmem:[#allocation3] sm:$0xf] %vm417, %v423
          %426 = vrot.lane.b32.xlu0 %v421, 120
          %v427 = vpop.permute.xlu0 %426
          %s429 = scalar_lea.vmem [#allocation2], 4
          %430 = vst.msk [vmem:[%s429] sm:$0xf] %vm417, %v427
          %431 = vrot.lane.b32.xlu0 %v421, 88
          %v432 = vpop.permute.xlu0 %431
          %s434 = scalar_lea.vmem [#allocation3], 4
          %435 = vst.msk [vmem:[%s434] sm:$0xf] %vm417, %v432
          %436 = vrot.lane.b32.xlu0 %v421, 112
          %v437 = vpop.permute.xlu0 %436
          %s439 = scalar_lea.vmem [#allocation2], 8
          %440 = vst.msk [vmem:[%s439] sm:$0xf] %vm417, %v437
          %441 = vrot.lane.b32.xlu0 %v421, 80
          %v442 = vpop.permute.xlu0 %441
          %s444 = scalar_lea.vmem [#allocation3], 8
          %445 = vst.msk [vmem:[%s444] sm:$0xf] %vm417, %v442
          %446 = vrot.lane.b32.xlu0 %v421, 104
          %v447 = vpop.permute.xlu0 %446
          %s449 = scalar_lea.vmem [#allocation2], 12
          %450 = vst.msk [vmem:[%s449] sm:$0xf] %vm417, %v447
          %451 = vrot.lane.b32.xlu0 %v421, 72
          %v452 = vpop.permute.xlu0 %451
          %s454 = scalar_lea.vmem [#allocation3], 12
          %455 = vst.msk [vmem:[%s454] sm:$0xf] %vm417, %v452
        $region60: #{transformer_encoder_forward.3} parent=55 // pred_fallthru
          _
        %v456 = vld [vmem:[%s6] sm:$0xff]
        %s457 = smul.u32 %s28, 8
        %s458 = scalar_lea.vmem %s341, %s457
        %v459 = vld [vmem:[%s458] sm:$0xff]
        %v460 = vpack.c.bf16 %v459, %v459
        %v461 = vld [vmem:[%s1] sm:$0xf]
        %v462 = vld [vmem:[%s1 + $0x4] sm:$0xf]
        %v463 = vld [vmem:[%s1 + $0x8] sm:$0xf]
        %v464 = vld [vmem:[%s1 + $0xc] sm:$0xf]
        %v465 = vlaneseq
        %v466 = vshrl.u32 %v465, 7
        %v467 = vsub.s32 0, %v466
        %v468 = vrot.slane %v456, %v467
        %v473 = vunpack.c.l.b16 %v461
        %v474 = vunpack.c.l.b16 %v462
        %v475 = vunpack.c.l.b16 %v463
        %v476 = vunpack.c.l.b16 %v464
        %v477 = vpack.c.b16 %v474, %v473
        %v478 = vpack.c.b16 %v476, %v475
        %vm481 = vcmask 261120
        %v483 = vsel %vm481, %v460, 0
        %485 = vmatprep.subr.bf16.mxu0 0
        %486 = vmatpush1.bf16.msra.mxu0 %v477
        %487 = vmatprep.subr.bf16.mxu0 0
        %488 = vmatpush1.bf16.msra.mxu0 %v478
        %489 = vmatprep.subr.bf16.mxu0 0
        %490 = vmatpush1.bf16.msra.mxu0 0
        %491 = vmatprep.subr.bf16.mxu0 0
        %492 = vmatpush1.bf16.msra.mxu0 0
        %493 = vmatprep.subr.bf16.mxu0 0
        %494 = vmatpush1.bf16.msra.mxu0 0
        %495 = vmatprep.subr.bf16.mxu0 0
        %496 = vmatpush1.bf16.msra.mxu0 0
        %497 = vmatprep.subr.bf16.mxu0 0
        %498 = vmatpush1.bf16.msra.mxu0 0
        %499 = vmatprep.subr.bf16.mxu0 0
        %500 = vmatpush1.bf16.msra.mxu0 0
        %501 = vmatprep.subr.bf16.mxu0 0
        %502 = vmatpush1.bf16.msra.mxu0 0
        %503 = vmatprep.subr.bf16.mxu0 0
        %504 = vmatpush1.bf16.msra.mxu0 0
        %505 = vmatprep.subr.bf16.mxu0 0
        %506 = vmatpush1.bf16.msra.mxu0 0
        %507 = vmatprep.subr.bf16.mxu0 0
        %508 = vmatpush1.bf16.msra.mxu0 0
        %509 = vmatprep.subr.bf16.mxu0 0
        %510 = vmatpush1.bf16.msra.mxu0 0
        %511 = vmatprep.subr.bf16.mxu0 0
        %512 = vmatpush1.bf16.msra.mxu0 0
        %513 = vmatprep.subr.bf16.mxu0 0
        %514 = vmatpush1.bf16.msra.mxu0 0
        %515 = vmatprep.subr.bf16.mxu0 0
        %516 = vmatpush1.bf16.msra.mxu0 0
        %517 = vmatprep.mubr.bf16.mxu0 0
        %518 = vmatmul.mubr.bf16.gmra.mrb[0].mxu0 %v483
        %v519 = vpop.f32.mrb[0].mxu0
        %v520 = vadd.f32 %v468, %v519
        %v521 = vpop.f32.mrb[0].mxu0
        %v522 = vpop.f32.mrb[0].mxu0
        %v523 = vpop.f32.mrb[0].mxu0
        %524 = vdwg.mxu0
        %526 = vrot.lane.b32.xlu0 %v520, 120
        %v527 = vpop.permute.xlu0 %526
        %529 = vrot.lane.b32.xlu0 %v520, 112
        %v530 = vpop.permute.xlu0 %529
        %532 = vrot.lane.b32.xlu0 %v520, 104
        %v533 = vpop.permute.xlu0 %532
        %v535 = vpack.c.bf16 %v520, %v520
        %v536 = vpack.c.bf16 %v527, %v527
        %v537 = vpack.c.bf16 %v530, %v530
        %v538 = vpack.c.bf16 %v533, %v533
        %v539 = vld [vmem:[#allocation2] sm:$0xf]
        %v540 = vld [vmem:[#allocation2 + $0x4] sm:$0xf]
        %v541 = vld [vmem:[#allocation2 + $0x8] sm:$0xf]
        %v542 = vld [vmem:[#allocation2 + $0xc] sm:$0xf]
        %v543 = vld [vmem:[#allocation3] sm:$0xf]
        %v544 = vld [vmem:[#allocation3 + $0x4] sm:$0xf]
        %v545 = vld [vmem:[#allocation3 + $0x8] sm:$0xf]
        %v546 = vld [vmem:[#allocation3 + $0xc] sm:$0xf]
        %vm547 = vcmask 64512
        %v549 = vsel %vm547, %v535, 0
        %v552 = vsel %vm547, %v539, 0
        %554 = vmatprep.subr.bf16.mxu0 0
        %555 = vmatpush1.bf16.xpose.msra.mxu0 %v552
        %556 = vmatprep.subr.bf16.mxu0 0
        %557 = vmatpush1.bf16.xpose.msra.mxu0 0
        %558 = vmatprep.subr.bf16.mxu0 0
        %559 = vmatpush1.bf16.xpose.msra.mxu0 0
        %560 = vmatprep.subr.bf16.mxu0 0
        %561 = vmatpush1.bf16.xpose.msra.mxu0 0
        %562 = vmatprep.subr.bf16.mxu0 0
        %563 = vmatpush1.bf16.xpose.msra.mxu0 0
        %564 = vmatprep.subr.bf16.mxu0 0
        %565 = vmatpush1.bf16.xpose.msra.mxu0 0
        %566 = vmatprep.subr.bf16.mxu0 0
        %567 = vmatpush1.bf16.xpose.msra.mxu0 0
        %568 = vmatprep.subr.bf16.mxu0 0
        %569 = vmatpush1.bf16.xpose.msra.mxu0 0
        %570 = vmatprep.subr.bf16.mxu0 0
        %571 = vmatpush1.bf16.xpose.msra.mxu0 0
        %572 = vmatprep.subr.bf16.mxu0 0
        %573 = vmatpush1.bf16.xpose.msra.mxu0 0
        %574 = vmatprep.subr.bf16.mxu0 0
        %575 = vmatpush1.bf16.xpose.msra.mxu0 0
        %576 = vmatprep.subr.bf16.mxu0 0
        %577 = vmatpush1.bf16.xpose.msra.mxu0 0
        %578 = vmatprep.subr.bf16.mxu0 0
        %579 = vmatpush1.bf16.xpose.msra.mxu0 0
        %580 = vmatprep.subr.bf16.mxu0 0
        %581 = vmatpush1.bf16.xpose.msra.mxu0 0
        %582 = vmatprep.subr.bf16.mxu0 0
        %583 = vmatpush1.bf16.xpose.msra.mxu0 0
        %584 = vmatprep.subr.bf16.mxu0 0
        %585 = vmatpush1.bf16.xpose.msra.mxu0 0
        %586 = vmatprep.mubr.bf16.mxu0 0
        %587 = vmatmul.mubr.bf16.gmra.mrb[0].mxu0 %v549
        %v588 = vpop.f32.mrb[0].mxu0
        %v589 = vadd.f32 0.0, %v588
        %v590 = vpop.f32.mrb[0].mxu0
        %v591 = vpop.f32.mrb[0].mxu0
        %v592 = vpop.f32.mrb[0].mxu0
        %593 = vdwg.mxu0
        %v595 = vsel %vm547, %v536, 0
        %v598 = vsel %vm547, %v540, 0
        %600 = vmatprep.subr.bf16.mxu0 0
        %601 = vmatpush1.bf16.xpose.msra.mxu0 %v598
        %602 = vmatprep.subr.bf16.mxu0 0
        %603 = vmatpush1.bf16.xpose.msra.mxu0 0
        %604 = vmatprep.subr.bf16.mxu0 0
        %605 = vmatpush1.bf16.xpose.msra.mxu0 0
        %606 = vmatprep.subr.bf16.mxu0 0
        %607 = vmatpush1.bf16.xpose.msra.mxu0 0
        %608 = vmatprep.subr.bf16.mxu0 0
        %609 = vmatpush1.bf16.xpose.msra.mxu0 0
        %610 = vmatprep.subr.bf16.mxu0 0
        %611 = vmatpush1.bf16.xpose.msra.mxu0 0
        %612 = vmatprep.subr.bf16.mxu0 0
        %613 = vmatpush1.bf16.xpose.msra.mxu0 0
        %614 = vmatprep.subr.bf16.mxu0 0
        %615 = vmatpush1.bf16.xpose.msra.mxu0 0
        %616 = vmatprep.subr.bf16.mxu0 0
        %617 = vmatpush1.bf16.xpose.msra.mxu0 0
        %618 = vmatprep.subr.bf16.mxu0 0
        %619 = vmatpush1.bf16.xpose.msra.mxu0 0
        %620 = vmatprep.subr.bf16.mxu0 0
        %621 = vmatpush1.bf16.xpose.msra.mxu0 0
        %622 = vmatprep.subr.bf16.mxu0 0
        %623 = vmatpush1.bf16.xpose.msra.mxu0 0
        %624 = vmatprep.subr.bf16.mxu0 0
        %625 = vmatpush1.bf16.xpose.msra.mxu0 0
        %626 = vmatprep.subr.bf16.mxu0 0
        %627 = vmatpush1.bf16.xpose.msra.mxu0 0
        %628 = vmatprep.subr.bf16.mxu0 0
        %629 = vmatpush1.bf16.xpose.msra.mxu0 0
        %630 = vmatprep.subr.bf16.mxu0 0
        %631 = vmatpush1.bf16.xpose.msra.mxu0 0
        %632 = vmatprep.mubr.bf16.mxu0 0
        %633 = vmatmul.mubr.bf16.gmra.mrb[0].mxu0 %v595
        %v634 = vpop.f32.mrb[0].mxu0
        %v635 = vadd.f32 0.0, %v634
        %v636 = vpop.f32.mrb[0].mxu0
        %v637 = vpop.f32.mrb[0].mxu0
        %v638 = vpop.f32.mrb[0].mxu0
        %639 = vdwg.mxu0
        %v641 = vsel %vm547, %v537, 0
        %v644 = vsel %vm547, %v541, 0
        %646 = vmatprep.subr.bf16.mxu0 0
        %647 = vmatpush1.bf16.xpose.msra.mxu0 %v644
        %648 = vmatprep.subr.bf16.mxu0 0
        %649 = vmatpush1.bf16.xpose.msra.mxu0 0
        %650 = vmatprep.subr.bf16.mxu0 0
        %651 = vmatpush1.bf16.xpose.msra.mxu0 0
        %652 = vmatprep.subr.bf16.mxu0 0
        %653 = vmatpush1.bf16.xpose.msra.mxu0 0
        %654 = vmatprep.subr.bf16.mxu0 0
        %655 = vmatpush1.bf16.xpose.msra.mxu0 0
        %656 = vmatprep.subr.bf16.mxu0 0
        %657 = vmatpush1.bf16.xpose.msra.mxu0 0
        %658 = vmatprep.subr.bf16.mxu0 0
        %659 = vmatpush1.bf16.xpose.msra.mxu0 0
        %660 = vmatprep.subr.bf16.mxu0 0
        %661 = vmatpush1.bf16.xpose.msra.mxu0 0
        %662 = vmatprep.subr.bf16.mxu0 0
        %663 = vmatpush1.bf16.xpose.msra.mxu0 0
        %664 = vmatprep.subr.bf16.mxu0 0
        %665 = vmatpush1.bf16.xpose.msra.mxu0 0
        %666 = vmatprep.subr.bf16.mxu0 0
        %667 = vmatpush1.bf16.xpose.msra.mxu0 0
        %668 = vmatprep.subr.bf16.mxu0 0
        %669 = vmatpush1.bf16.xpose.msra.mxu0 0
        %670 = vmatprep.subr.bf16.mxu0 0
        %671 = vmatpush1.bf16.xpose.msra.mxu0 0
        %672 = vmatprep.subr.bf16.mxu0 0
        %673 = vmatpush1.bf16.xpose.msra.mxu0 0
        %674 = vmatprep.subr.bf16.mxu0 0
        %675 = vmatpush1.bf16.xpose.msra.mxu0 0
        %676 = vmatprep.subr.bf16.mxu0 0
        %677 = vmatpush1.bf16.xpose.msra.mxu0 0
        %678 = vmatprep.mubr.bf16.mxu0 0
        %679 = vmatmul.mubr.bf16.gmra.mrb[0].mxu0 %v641
        %v680 = vpop.f32.mrb[0].mxu0
        %v681 = vadd.f32 0.0, %v680
        %v682 = vpop.f32.mrb[0].mxu0
        %v683 = vpop.f32.mrb[0].mxu0
        %v684 = vpop.f32.mrb[0].mxu0
        %685 = vdwg.mxu0
        %v687 = vsel %vm547, %v538, 0
        %v690 = vsel %vm547, %v542, 0
        %692 = vmatprep.subr.bf16.mxu0 0
        %693 = vmatpush1.bf16.xpose.msra.mxu0 %v690
        %694 = vmatprep.subr.bf16.mxu0 0
        %695 = vmatpush1.bf16.xpose.msra.mxu0 0
        %696 = vmatprep.subr.bf16.mxu0 0
        %697 = vmatpush1.bf16.xpose.msra.mxu0 0
        %698 = vmatprep.subr.bf16.mxu0 0
        %699 = vmatpush1.bf16.xpose.msra.mxu0 0
        %700 = vmatprep.subr.bf16.mxu0 0
        %701 = vmatpush1.bf16.xpose.msra.mxu0 0
        %702 = vmatprep.subr.bf16.mxu0 0
        %703 = vmatpush1.bf16.xpose.msra.mxu0 0
        %704 = vmatprep.subr.bf16.mxu0 0
        %705 = vmatpush1.bf16.xpose.msra.mxu0 0
        %706 = vmatprep.subr.bf16.mxu0 0
        %707 = vmatpush1.bf16.xpose.msra.mxu0 0
        %708 = vmatprep.subr.bf16.mxu0 0
        %709 = vmatpush1.bf16.xpose.msra.mxu0 0
        %710 = vmatprep.subr.bf16.mxu0 0
        %711 = vmatpush1.bf16.xpose.msra.mxu0 0
        %712 = vmatprep.subr.bf16.mxu0 0
        %713 = vmatpush1.bf16.xpose.msra.mxu0 0
        %714 = vmatprep.subr.bf16.mxu0 0
        %715 = vmatpush1.bf16.xpose.msra.mxu0 0
        %716 = vmatprep.subr.bf16.mxu0 0
        %717 = vmatpush1.bf16.xpose.msra.mxu0 0
        %718 = vmatprep.subr.bf16.mxu0 0
        %719 = vmatpush1.bf16.xpose.msra.mxu0 0
        %720 = vmatprep.subr.bf16.mxu0 0
        %721 = vmatpush1.bf16.xpose.msra.mxu0 0
        %722 = vmatprep.subr.bf16.mxu0 0
        %723 = vmatpush1.bf16.xpose.msra.mxu0 0
        %724 = vmatprep.mubr.bf16.mxu0 0
        %725 = vmatmul.mubr.bf16.gmra.mrb[0].mxu0 %v687
        %v726 = vpop.f32.mrb[0].mxu0
        %v727 = vadd.f32 0.0, %v726
        %v728 = vpop.f32.mrb[0].mxu0
        %v729 = vpop.f32.mrb[0].mxu0
        %v730 = vpop.f32.mrb[0].mxu0
        %731 = vdwg.mxu0
        %v732 = vsel %vm547, %v589, -inf
        %733 = vmax.xlane.f32.xlu0 %v732
        %v734 = vpop.xlane.xlu0 %733
        %v735 = vsel %vm547, %v635, -inf
        %736 = vmax.xlane.f32.xlu0 %v735
        %v737 = vpop.xlane.xlu0 %736
        %v738 = vsel %vm547, %v681, -inf
        %739 = vmax.xlane.f32.xlu0 %v738
        %v740 = vpop.xlane.xlu0 %739
        %v741 = vsel %vm547, %v727, -inf
        %742 = vmax.xlane.f32.xlu0 %v741
        %v743 = vpop.xlane.xlu0 %742
        %v744 = vsub.f32 %v589, %v734
        %v745 = vsub.f32 %v635, %v737
        %v746 = vsub.f32 %v681, %v740
        %v747 = vsub.f32 %v727, %v743
        %v748 = vmul.f32 %v744, 1.442695
        %v749 = vpow.pop %v748
        %v750 = vmul.f32 %v745, 1.442695
        %v751 = vpow.pop %v750
        %v752 = vmul.f32 %v746, 1.442695
        %v753 = vpow.pop %v752
        %v754 = vmul.f32 %v747, 1.442695
        %v755 = vpow.pop %v754
        %v756 = vsel %vm547, %v749, 0.0
        %757 = vadd.xlane.f32.xlu0 %v756
        %v758 = vpop.xlane.xlu0 %757
        %v759 = vsel %vm547, %v751, 0.0
        %760 = vadd.xlane.f32.xlu0 %v759
        %v761 = vpop.xlane.xlu0 %760
        %v762 = vsel %vm547, %v753, 0.0
        %763 = vadd.xlane.f32.xlu0 %v762
        %v764 = vpop.xlane.xlu0 %763
        %v765 = vsel %vm547, %v755, 0.0
        %766 = vadd.xlane.f32.xlu0 %v765
        %v767 = vpop.xlane.xlu0 %766
        %v768 = vrcp.pop %v758
        %v769 = vrcp.pop %v761
        %v770 = vrcp.pop %v764
        %v771 = vrcp.pop %v767
        %v772 = vmul.f32 %v749, %v768
        %v773 = vmul.f32 %v751, %v769
        %v774 = vmul.f32 %v753, %v770
        %v775 = vmul.f32 %v755, %v771
        %v776 = vpack.c.bf16 %v772, %v772
        %v777 = vpack.c.bf16 %v773, %v773
        %v778 = vpack.c.bf16 %v774, %v774
        %v779 = vpack.c.bf16 %v775, %v775
        %v781 = vsel %vm547, %v776, 0
        %vm783 = vcmask 1043456
        %v785 = vsel %vm783, %v543, 0
        %787 = vmatprep.subr.bf16.mxu0 0
        %788 = vmatpush1.bf16.msra.mxu0 %v785
        %789 = vmatprep.subr.bf16.mxu0 0
        %790 = vmatpush1.bf16.msra.mxu0 0
        %791 = vmatprep.subr.bf16.mxu0 0
        %792 = vmatpush1.bf16.msra.mxu0 0
        %793 = vmatprep.subr.bf16.mxu0 0
        %794 = vmatpush1.bf16.msra.mxu0 0
        %795 = vmatprep.subr.bf16.mxu0 0
        %796 = vmatpush1.bf16.msra.mxu0 0
        %797 = vmatprep.subr.bf16.mxu0 0
        %798 = vmatpush1.bf16.msra.mxu0 0
        %799 = vmatprep.subr.bf16.mxu0 0
        %800 = vmatpush1.bf16.msra.mxu0 0
        %801 = vmatprep.subr.bf16.mxu0 0
        %802 = vmatpush1.bf16.msra.mxu0 0
        %803 = vmatprep.subr.bf16.mxu0 0
        %804 = vmatpush1.bf16.msra.mxu0 0
        %805 = vmatprep.subr.bf16.mxu0 0
        %806 = vmatpush1.bf16.msra.mxu0 0
        %807 = vmatprep.subr.bf16.mxu0 0
        %808 = vmatpush1.bf16.msra.mxu0 0
        %809 = vmatprep.subr.bf16.mxu0 0
        %810 = vmatpush1.bf16.msra.mxu0 0
        %811 = vmatprep.subr.bf16.mxu0 0
        %812 = vmatpush1.bf16.msra.mxu0 0
        %813 = vmatprep.subr.bf16.mxu0 0
        %814 = vmatpush1.bf16.msra.mxu0 0
        %815 = vmatprep.subr.bf16.mxu0 0
        %816 = vmatpush1.bf16.msra.mxu0 0
        %817 = vmatprep.subr.bf16.mxu0 0
        %818 = vmatpush1.bf16.msra.mxu0 0
        %819 = vmatprep.mubr.bf16.mxu0 0
        %820 = vmatmul.mubr.bf16.gmra.mrb[0].mxu0 %v781
        %v821 = vpop.f32.mrb[0].mxu0
        %v822 = vadd.f32 0.0, %v821
        %v823 = vpop.f32.mrb[0].mxu0
        %v824 = vpop.f32.mrb[0].mxu0
        %v825 = vpop.f32.mrb[0].mxu0
        %826 = vdwg.mxu0
        %v828 = vsel %vm547, %v777, 0
        %v831 = vsel %vm783, %v544, 0
        %833 = vmatprep.subr.bf16.mxu0 0
        %834 = vmatpush1.bf16.msra.mxu0 %v831
        %835 = vmatprep.subr.bf16.mxu0 0
        %836 = vmatpush1.bf16.msra.mxu0 0
        %837 = vmatprep.subr.bf16.mxu0 0
        %838 = vmatpush1.bf16.msra.mxu0 0
        %839 = vmatprep.subr.bf16.mxu0 0
        %840 = vmatpush1.bf16.msra.mxu0 0
        %841 = vmatprep.subr.bf16.mxu0 0
        %842 = vmatpush1.bf16.msra.mxu0 0
        %843 = vmatprep.subr.bf16.mxu0 0
        %844 = vmatpush1.bf16.msra.mxu0 0
        %845 = vmatprep.subr.bf16.mxu0 0
        %846 = vmatpush1.bf16.msra.mxu0 0
        %847 = vmatprep.subr.bf16.mxu0 0
        %848 = vmatpush1.bf16.msra.mxu0 0
        %849 = vmatprep.subr.bf16.mxu0 0
        %850 = vmatpush1.bf16.msra.mxu0 0
        %851 = vmatprep.subr.bf16.mxu0 0
        %852 = vmatpush1.bf16.msra.mxu0 0
        %853 = vmatprep.subr.bf16.mxu0 0
        %854 = vmatpush1.bf16.msra.mxu0 0
        %855 = vmatprep.subr.bf16.mxu0 0
        %856 = vmatpush1.bf16.msra.mxu0 0
        %857 = vmatprep.subr.bf16.mxu0 0
        %858 = vmatpush1.bf16.msra.mxu0 0
        %859 = vmatprep.subr.bf16.mxu0 0
        %860 = vmatpush1.bf16.msra.mxu0 0
        %861 = vmatprep.subr.bf16.mxu0 0
        %862 = vmatpush1.bf16.msra.mxu0 0
        %863 = vmatprep.subr.bf16.mxu0 0
        %864 = vmatpush1.bf16.msra.mxu0 0
        %865 = vmatprep.mubr.bf16.mxu0 0
        %866 = vmatmul.mubr.bf16.gmra.mrb[0].mxu0 %v828
        %v867 = vpop.f32.mrb[0].mxu0
        %v868 = vadd.f32 0.0, %v867
        %v869 = vpop.f32.mrb[0].mxu0
        %v870 = vpop.f32.mrb[0].mxu0
        %v871 = vpop.f32.mrb[0].mxu0
        %872 = vdwg.mxu0
        %v874 = vsel %vm547, %v778, 0
        %v877 = vsel %vm783, %v545, 0
        %879 = vmatprep.subr.bf16.mxu0 0
        %880 = vmatpush1.bf16.msra.mxu0 %v877
        %881 = vmatprep.subr.bf16.mxu0 0
        %882 = vmatpush1.bf16.msra.mxu0 0
        %883 = vmatprep.subr.bf16.mxu0 0
        %884 = vmatpush1.bf16.msra.mxu0 0
        %885 = vmatprep.subr.bf16.mxu0 0
        %886 = vmatpush1.bf16.msra.mxu0 0
        %887 = vmatprep.subr.bf16.mxu0 0
        %888 = vmatpush1.bf16.msra.mxu0 0
        %889 = vmatprep.subr.bf16.mxu0 0
        %890 = vmatpush1.bf16.msra.mxu0 0
        %891 = vmatprep.subr.bf16.mxu0 0
        %892 = vmatpush1.bf16.msra.mxu0 0
        %893 = vmatprep.subr.bf16.mxu0 0
        %894 = vmatpush1.bf16.msra.mxu0 0
        %895 = vmatprep.subr.bf16.mxu0 0
        %896 = vmatpush1.bf16.msra.mxu0 0
        %897 = vmatprep.subr.bf16.mxu0 0
        %898 = vmatpush1.bf16.msra.mxu0 0
        %899 = vmatprep.subr.bf16.mxu0 0
        %900 = vmatpush1.bf16.msra.mxu0 0
        %901 = vmatprep.subr.bf16.mxu0 0
        %902 = vmatpush1.bf16.msra.mxu0 0
        %903 = vmatprep.subr.bf16.mxu0 0
        %904 = vmatpush1.bf16.msra.mxu0 0
        %905 = vmatprep.subr.bf16.mxu0 0
        %906 = vmatpush1.bf16.msra.mxu0 0
        %907 = vmatprep.subr.bf16.mxu0 0
        %908 = vmatpush1.bf16.msra.mxu0 0
        %909 = vmatprep.subr.bf16.mxu0 0
        %910 = vmatpush1.bf16.msra.mxu0 0
        %911 = vmatprep.mubr.bf16.mxu0 0
        %912 = vmatmul.mubr.bf16.gmra.mrb[0].mxu0 %v874
        %v913 = vpop.f32.mrb[0].mxu0
        %v914 = vadd.f32 0.0, %v913
        %v915 = vpop.f32.mrb[0].mxu0
        %v916 = vpop.f32.mrb[0].mxu0
        %v917 = vpop.f32.mrb[0].mxu0
        %918 = vdwg.mxu0
        %v920 = vsel %vm547, %v779, 0
        %v923 = vsel %vm783, %v546, 0
        %925 = vmatprep.subr.bf16.mxu0 0
        %926 = vmatpush1.bf16.msra.mxu0 %v923
        %927 = vmatprep.subr.bf16.mxu0 0
        %928 = vmatpush1.bf16.msra.mxu0 0
        %929 = vmatprep.subr.bf16.mxu0 0
        %930 = vmatpush1.bf16.msra.mxu0 0
        %931 = vmatprep.subr.bf16.mxu0 0
        %932 = vmatpush1.bf16.msra.mxu0 0
        %933 = vmatprep.subr.bf16.mxu0 0
        %934 = vmatpush1.bf16.msra.mxu0 0
        %935 = vmatprep.subr.bf16.mxu0 0
        %936 = vmatpush1.bf16.msra.mxu0 0
        %937 = vmatprep.subr.bf16.mxu0 0
        %938 = vmatpush1.bf16.msra.mxu0 0
        %939 = vmatprep.subr.bf16.mxu0 0
        %940 = vmatpush1.bf16.msra.mxu0 0
        %941 = vmatprep.subr.bf16.mxu0 0
        %942 = vmatpush1.bf16.msra.mxu0 0
        %943 = vmatprep.subr.bf16.mxu0 0
        %944 = vmatpush1.bf16.msra.mxu0 0
        %945 = vmatprep.subr.bf16.mxu0 0
        %946 = vmatpush1.bf16.msra.mxu0 0
        %947 = vmatprep.subr.bf16.mxu0 0
        %948 = vmatpush1.bf16.msra.mxu0 0
        %949 = vmatprep.subr.bf16.mxu0 0
        %950 = vmatpush1.bf16.msra.mxu0 0
        %951 = vmatprep.subr.bf16.mxu0 0
        %952 = vmatpush1.bf16.msra.mxu0 0
        %953 = vmatprep.subr.bf16.mxu0 0
        %954 = vmatpush1.bf16.msra.mxu0 0
        %955 = vmatprep.subr.bf16.mxu0 0
        %956 = vmatpush1.bf16.msra.mxu0 0
        %957 = vmatprep.mubr.bf16.mxu0 0
        %958 = vmatmul.mubr.bf16.gmra.mrb[0].mxu0 %v920
        %v959 = vpop.f32.mrb[0].mxu0
        %v960 = vadd.f32 0.0, %v959
        %v961 = vpop.f32.mrb[0].mxu0
        %v962 = vpop.f32.mrb[0].mxu0
        %v963 = vpop.f32.mrb[0].mxu0
        %964 = vdwg.mxu0
        %965 = vst.msk [vmem:[#allocation4] sm:$0xff] %vm547, %v822
        %967 = vrot.lane.b32.xlu0 %v868, 8
        %v968 = vpop.permute.xlu0 %967
        %vm970 = vcmask 130112
        %971 = vst.msk [vmem:[#allocation4] sm:$0xff] %vm970, %v968
        %973 = vrot.lane.b32.xlu0 %v914, 16
        %v974 = vpop.permute.xlu0 %973
        %vm976 = vcmask 195712
        %977 = vst.msk [vmem:[#allocation4] sm:$0xff] %vm976, %v974
        %979 = vrot.lane.b32.xlu0 %v960, 24
        %v980 = vpop.permute.xlu0 %979
        %vm982 = vcmask 261312
        %983 = vst.msk [vmem:[#allocation4] sm:$0xff] %vm982, %v980
        %v984 = vld [vmem:[#allocation4] sm:$0xff]
        %v985 = vpack.c.bf16 %v984, %v984
        %v986 = vld [vmem:[%s3] sm:$0xf]
        %v987 = vld [vmem:[%s3 + $0x4] sm:$0xf]
        %v988 = vld [vmem:[%s3 + $0x8] sm:$0xf]
        %v989 = vld [vmem:[%s3 + $0xc] sm:$0xf]
        %v990 = vlaneseq
        %v991 = vshrl.u32 %v990, 7
        %v992 = vsub.s32 1, %v991
        %v993 = vrot.slane %v456, %v992
        %v998 = vunpack.c.l.b16 %v986
        %v999 = vunpack.c.l.b16 %v987
        %v1000 = vunpack.c.l.b16 %v988
        %v1001 = vunpack.c.l.b16 %v989
        %v1002 = vpack.c.b16 %v999, %v998
        %v1003 = vpack.c.b16 %v1001, %v1000
        %v1007 = vsel %vm481, %v985, 0
        %1009 = vmatprep.subr.bf16.mxu0 0
        %1010 = vmatpush1.bf16.msra.mxu0 %v1002
        %1011 = vmatprep.subr.bf16.mxu0 0
        %1012 = vmatpush1.bf16.msra.mxu0 %v1003
        %1013 = vmatprep.subr.bf16.mxu0 0
        %1014 = vmatpush1.bf16.msra.mxu0 0
        %1015 = vmatprep.subr.bf16.mxu0 0
        %1016 = vmatpush1.bf16.msra.mxu0 0
        %1017 = vmatprep.subr.bf16.mxu0 0
        %1018 = vmatpush1.bf16.msra.mxu0 0
        %1019 = vmatprep.subr.bf16.mxu0 0
        %1020 = vmatpush1.bf16.msra.mxu0 0
        %1021 = vmatprep.subr.bf16.mxu0 0
        %1022 = vmatpush1.bf16.msra.mxu0 0
        %1023 = vmatprep.subr.bf16.mxu0 0
        %1024 = vmatpush1.bf16.msra.mxu0 0
        %1025 = vmatprep.subr.bf16.mxu0 0
        %1026 = vmatpush1.bf16.msra.mxu0 0
        %1027 = vmatprep.subr.bf16.mxu0 0
        %1028 = vmatpush1.bf16.msra.mxu0 0
        %1029 = vmatprep.subr.bf16.mxu0 0
        %1030 = vmatpush1.bf16.msra.mxu0 0
        %1031 = vmatprep.subr.bf16.mxu0 0
        %1032 = vmatpush1.bf16.msra.mxu0 0
        %1033 = vmatprep.subr.bf16.mxu0 0
        %1034 = vmatpush1.bf16.msra.mxu0 0
        %1035 = vmatprep.subr.bf16.mxu0 0
        %1036 = vmatpush1.bf16.msra.mxu0 0
        %1037 = vmatprep.subr.bf16.mxu0 0
        %1038 = vmatpush1.bf16.msra.mxu0 0
        %1039 = vmatprep.subr.bf16.mxu0 0
        %1040 = vmatpush1.bf16.msra.mxu0 0
        %1041 = vmatprep.mubr.bf16.mxu0 0
        %1042 = vmatmul.mubr.bf16.gmra.mrb[0].mxu0 %v1007
        %v1043 = vpop.f32.mrb[0].mxu0
        %v1044 = vadd.f32 %v993, %v1043
        %v1045 = vpop.f32.mrb[0].mxu0
        %v1046 = vpop.f32.mrb[0].mxu0
        %v1047 = vpop.f32.mrb[0].mxu0
        %1048 = vdwg.mxu0
        %v1049 = vadd.f32 %v459, %v1044
        %v1050 = vsel %vm481, %v1049, 0.0
        %1051 = vadd.xlane.f32.xlu0 %v1050
        %v1052 = vpop.xlane.xlu0 %1051
        %v1053 = vrcp.pop 32.0
        %v1054 = vmul.f32 %v1052, %v1053
        %v1055 = vmul.f32 %v1049, %v1049
        %v1056 = vsel %vm481, %v1055, 0.0
        %1057 = vadd.xlane.f32.xlu0 %v1056
        %v1058 = vpop.xlane.xlu0 %1057
        %v1059 = vmul.f32 %v1058, %v1053
        %v1060 = vmul.f32 %v1054, %v1054
        %v1061 = vsub.f32 %v1059, %v1060
        %v1062 = vsub.f32 %v1049, %v1054
        %v1063 = vadd.f32 %v1061, 1e-05
        %v1064 = vrsqrt.pop %v1063
        %v1065 = vmul.f32 %v1062, %v1064
        %v1066 = vlaneseq
        %v1067 = vshrl.u32 %v1066, 7
        %v1068 = vsub.s32 2, %v1067
        %v1069 = vrot.slane %v456, %v1068
        %v1070 = vmul.f32 %v1065, %v1069
        %v1071 = vlaneseq
        %v1072 = vshrl.u32 %v1071, 7
        %v1073 = vsub.s32 3, %v1072
        %v1074 = vrot.slane %v456, %v1073
        %v1075 = vadd.f32 %v1070, %v1074
        %v1076 = vpack.c.bf16 %v1075, %v1075
        %v1077 = vld [vmem:[%s4] sm:$0xf]
        %v1078 = vld [vmem:[%s4 + $0x4] sm:$0xf]
        %v1079 = vld [vmem:[%s4 + $0x8] sm:$0xf]
        %v1080 = vld [vmem:[%s4 + $0xc] sm:$0xf]
        %v1081 = vld [vmem:[%s8] sm:$0x1]
        %v1083 = vlaneseq
        %v1084 = vshrl.u32 %v1083, 7
        %v1085 = vsub.s32 0, %v1084
        %v1086 = vrot.slane %v1081, %v1085
        %v1092 = vunpack.c.l.b16 %v1077
        %v1093 = vunpack.c.l.b16 %v1078
        %v1094 = vunpack.c.l.b16 %v1079
        %v1095 = vunpack.c.l.b16 %v1080
        %v1096 = vpack.c.b16 %v1093, %v1092
        %v1097 = vpack.c.b16 %v1095, %v1094
        %v1101 = vsel %vm481, %v1076, 0
        %1103 = vmatprep.subr.bf16.mxu0 0
        %1104 = vmatpush1.bf16.msra.mxu0 %v1096
        %1105 = vmatprep.subr.bf16.mxu0 0
        %1106 = vmatpush1.bf16.msra.mxu0 %v1097
        %1107 = vmatprep.subr.bf16.mxu0 0
        %1108 = vmatpush1.bf16.msra.mxu0 0
        %1109 = vmatprep.subr.bf16.mxu0 0
        %1110 = vmatpush1.bf16.msra.mxu0 0
        %1111 = vmatprep.subr.bf16.mxu0 0
        %1112 = vmatpush1.bf16.msra.mxu0 0
        %1113 = vmatprep.subr.bf16.mxu0 0
        %1114 = vmatpush1.bf16.msra.mxu0 0
        %1115 = vmatprep.subr.bf16.mxu0 0
        %1116 = vmatpush1.bf16.msra.mxu0 0
        %1117 = vmatprep.subr.bf16.mxu0 0
        %1118 = vmatpush1.bf16.msra.mxu0 0
        %1119 = vmatprep.subr.bf16.mxu0 0
        %1120 = vmatpush1.bf16.msra.mxu0 0
        %1121 = vmatprep.subr.bf16.mxu0 0
        %1122 = vmatpush1.bf16.msra.mxu0 0
        %1123 = vmatprep.subr.bf16.mxu0 0
        %1124 = vmatpush1.bf16.msra.mxu0 0
        %1125 = vmatprep.subr.bf16.mxu0 0
        %1126 = vmatpush1.bf16.msra.mxu0 0
        %1127 = vmatprep.subr.bf16.mxu0 0
        %1128 = vmatpush1.bf16.msra.mxu0 0
        %1129 = vmatprep.subr.bf16.mxu0 0
        %1130 = vmatpush1.bf16.msra.mxu0 0
        %1131 = vmatprep.subr.bf16.mxu0 0
        %1132 = vmatpush1.bf16.msra.mxu0 0
        %1133 = vmatprep.subr.bf16.mxu0 0
        %1134 = vmatpush1.bf16.msra.mxu0 0
        %1135 = vmatprep.mubr.bf16.mxu0 0
        %1136 = vmatmul.mubr.bf16.gmra.mrb[0].mxu0 %v1101
        %v1137 = vpop.f32.mrb[0].mxu0
        %v1138 = vadd.f32 %v1086, %v1137
        %v1139 = vpop.f32.mrb[0].mxu0
        %v1140 = vpop.f32.mrb[0].mxu0
        %v1141 = vpop.f32.mrb[0].mxu0
        %1142 = vdwg.mxu0
        %v1143 = vmax.f32 %v1138, 0.0
        %v1144 = vpack.c.bf16 %v1143, %v1143
        %v1145 = vld [vmem:[%s5] sm:$0xf]
        %v1146 = vld [vmem:[%s5 + $0x4] sm:$0xf]
        %v1147 = vld [vmem:[%s5 + $0x8] sm:$0xf]
        %v1148 = vld [vmem:[%s5 + $0xc] sm:$0xf]
        %v1149 = vld [vmem:[%s5 + $0x10] sm:$0xf]
        %v1150 = vld [vmem:[%s5 + $0x14] sm:$0xf]
        %v1151 = vld [vmem:[%s5 + $0x18] sm:$0xf]
        %v1152 = vld [vmem:[%s5 + $0x1c] sm:$0xf]
        %v1153 = vlaneseq
        %v1154 = vshrl.u32 %v1153, 7
        %v1155 = vsub.s32 4, %v1154
        %v1156 = vrot.slane %v456, %v1155
        %v1165 = vunpack.c.l.b16 %v1145
        %v1166 = vunpack.c.l.b16 %v1146
        %v1167 = vunpack.c.l.b16 %v1147
        %v1168 = vunpack.c.l.b16 %v1148
        %v1169 = vunpack.c.l.b16 %v1149
        %v1170 = vunpack.c.l.b16 %v1150
        %v1171 = vunpack.c.l.b16 %v1151
        %v1172 = vunpack.c.l.b16 %v1152
        %v1173 = vpack.c.b16 %v1166, %v1165
        %v1174 = vpack.c.b16 %v1168, %v1167
        %v1175 = vpack.c.b16 %v1170, %v1169
        %v1176 = vpack.c.b16 %v1172, %v1171
        %vm1181 = vcmask 523264
        %v1183 = vsel %vm1181, %v1144, 0
        %1185 = vmatprep.subr.bf16.mxu0 0
        %1186 = vmatpush1.bf16.msra.mxu0 %v1173
        %1187 = vmatprep.subr.bf16.mxu0 0
        %1188 = vmatpush1.bf16.msra.mxu0 %v1174
        %1189 = vmatprep.subr.bf16.mxu0 0
        %1190 = vmatpush1.bf16.msra.mxu0 %v1175
        %1191 = vmatprep.subr.bf16.mxu0 0
        %1192 = vmatpush1.bf16.msra.mxu0 %v1176
        %1193 = vmatprep.subr.bf16.mxu0 0
        %1194 = vmatpush1.bf16.msra.mxu0 0
        %1195 = vmatprep.subr.bf16.mxu0 0
        %1196 = vmatpush1.bf16.msra.mxu0 0
        %1197 = vmatprep.subr.bf16.mxu0 0
        %1198 = vmatpush1.bf16.msra.mxu0 0
        %1199 = vmatprep.subr.bf16.mxu0 0
        %1200 = vmatpush1.bf16.msra.mxu0 0
        %1201 = vmatprep.subr.bf16.mxu0 0
        %1202 = vmatpush1.bf16.msra.mxu0 0
        %1203 = vmatprep.subr.bf16.mxu0 0
        %1204 = vmatpush1.bf16.msra.mxu0 0
        %1205 = vmatprep.subr.bf16.mxu0 0
        %1206 = vmatpush1.bf16.msra.mxu0 0
        %1207 = vmatprep.subr.bf16.mxu0 0
        %1208 = vmatpush1.bf16.msra.mxu0 0
        %1209 = vmatprep.subr.bf16.mxu0 0
        %1210 = vmatpush1.bf16.msra.mxu0 0
        %1211 = vmatprep.subr.bf16.mxu0 0
        %1212 = vmatpush1.bf16.msra.mxu0 0
        %1213 = vmatprep.subr.bf16.mxu0 0
        %1214 = vmatpush1.bf16.msra.mxu0 0
        %1215 = vmatprep.subr.bf16.mxu0 0
        %1216 = vmatpush1.bf16.msra.mxu0 0
        %1217 = vmatprep.mubr.bf16.mxu0 0
        %1218 = vmatmul.mubr.bf16.gmra.mrb[0].mxu0 %v1183
        %v1219 = vpop.f32.mrb[0].mxu0
        %v1220 = vadd.f32 %v1156, %v1219
        %v1221 = vpop.f32.mrb[0].mxu0
        %v1222 = vpop.f32.mrb[0].mxu0
        %v1223 = vpop.f32.mrb[0].mxu0
        %1224 = vdwg.mxu0
        %v1225 = vadd.f32 %v1075, %v1220
        %v1226 = vsel %vm481, %v1225, 0.0
        %1227 = vadd.xlane.f32.xlu0 %v1226
        %v1228 = vpop.xlane.xlu0 %1227
        %v1229 = vmul.f32 %v1228, %v1053
        %v1230 = vmul.f32 %v1225, %v1225
        %v1231 = vsel %vm481, %v1230, 0.0
        %1232 = vadd.xlane.f32.xlu0 %v1231
        %v1233 = vpop.xlane.xlu0 %1232
        %v1234 = vmul.f32 %v1233, %v1053
        %v1235 = vmul.f32 %v1229, %v1229
        %v1236 = vsub.f32 %v1234, %v1235
        %v1237 = vsub.f32 %v1225, %v1229
        %v1238 = vadd.f32 %v1236, 1e-05
        %v1239 = vrsqrt.pop %v1238
        %v1240 = vmul.f32 %v1237, %v1239
        %v1241 = vlaneseq
        %v1242 = vshrl.u32 %v1241, 7
        %v1243 = vsub.s32 5, %v1242
        %v1244 = vrot.slane %v456, %v1243
        %v1245 = vmul.f32 %v1240, %v1244
        %v1246 = vlaneseq
        %v1247 = vshrl.u32 %v1246, 7
        %v1248 = vsub.s32 6, %v1247
        %v1249 = vrot.slane %v456, %v1248
        %v1250 = vadd.f32 %v1245, %v1249
        %1251 = vst.msk [vmem:[%s337] sm:$0xff] %vm481, %v1250
        %s1252 = sand.u32 %s239, 1
        %s1253 = scalar_lea.sflag [#allocation6], %s1252
        %s1254 = sand.u32 %s239, 1
        %s1255 = smul.addr %s1254, 8
        %s1256 = scalar_lea.vmem [#allocation5], %s1255
        // Predicated region
        $region61: #{transformer_encoder_forward.3} parent=55 // pred_check
          %p1257 = pneg %p249
        $region62: #{transformer_encoder_forward.3} parent=55 // pred_check_branch
          %1259 = sbr.rel (%p1257) target = $region64
        $region63: #{transformer_encoder_forward.3} parent=55 // pred_region
          %s1261 = ssub.s32 128, 128
          %1262 = vsyncadd %s1253, %s1261
          %s1263 = sadd.s32 %s28, %s27
          %s1264 = smul.addr %s1263, 128
          %s1265 = scalar_lea.hbm %s9, %s1264
          %s1267 = sshll.u32 %s1256, 4
          %s1268 = int_to_ptr.vmem [resolvable:$true] %s1267
          %1270 = dma.vmem_to_hbm [thread:$0]  %s1268, 128, %s1265, %s1253
        $region64: #{transformer_encoder_forward.3} parent=55 // pred_fallthru
          _
      $region56: #{transformer_encoder_forward.3} parent=5 // pred_fallthru
        _
      %p1271 = scmp.le.s32.totalorder 2, %s18
      // Predicated region
      $region65: #{transformer_encoder_forward.3} parent=5 // pred_check
        %p1272 = pneg %p1271
      $region66: #{transformer_encoder_forward.3} parent=5 // pred_check_branch
        %1274 = sbr.rel (%p1272) target = $region68
      $region67: #{transformer_encoder_forward.3} parent=5 // pred_region
        %s1275 = ssub.s32 %s18, 2
        // Predicated region
        $region69: #{transformer_encoder_forward.3} parent=67 // pred_check
          %p1276 = pneg %p255
        $region70: #{transformer_encoder_forward.3} parent=67 // pred_check_branch
          %1278 = sbr.rel (%p1276) target = $region72
        $region71: #{transformer_encoder_forward.3} parent=67 // pred_region
          %s1279 = sand.u32 %s240, 1
          %s1280 = scalar_lea.sflag [#allocation6], %s1279
          %s1281 = sand.u32 %s240, 1
          %s1282 = smul.addr %s1281, 8
          %s1283 = scalar_lea.vmem [#allocation5], %s1282
          %1284 = dma.done %s1280, 128
        $region72: #{transformer_encoder_forward.3} parent=67 // pred_fallthru
          _
      $region68: #{transformer_encoder_forward.3} parent=5 // pred_fallthru
        _
    $region6: #{transformer_encoder_forward.3} parent=1 // loop_footer
      %s22 = sadd.s32 1, %s18
    $region7: #{transformer_encoder_forward.3} parent=1 // loop_footer_branch
      %17 = sbr.rel target = $region3
    $region8: #{transformer_encoder_forward.3} parent=1 // loop_exit
      _
    %1285 = vsyncpa [#allocation6], 1
    %s1286 = scalar_lea.sflag [#allocation6], 1
    %1287 = vsyncpa %s1286, 1

// kernel: transformer_encoder_forward.2
$region0: #{transformer_encoder_forward.2}
  #allocation0 [shape = 'u32[]', space=smem, size = 0x4, offset = 0x4, fixed_abs, tag = 'smem constant byte address 0x4 - core index']
  #allocation1 [shape = 'u32[144,128]{1,0:T(1,128)}', space=vmem, size = 0x12000, scoped, tag = 'internal scratch']
  #allocation2 [shape = 'bf16[4,8,8]{2,1,0:T(8,128)(2,1)}', space=vmem, size = 0x2000, scoped, tag = 'scratch operand']
  #allocation3 [shape = 'bf16[4,8,8]{2,1,0:T(8,128)(2,1)}', space=vmem, size = 0x2000, scoped, tag = 'scratch operand']
  #allocation4 [shape = 'f32[8,32]{1,0:T(8,128)}', space=vmem, size = 0x1000, scoped, tag = 'scratch operand']
  %s0 = inlined_call_operand.vmem [shape: f32[2,8,32], index: 0, kind: input, shape index: {}]
  %s1 = inlined_call_operand.vmem [shape: bf16[32,32], index: 1, kind: input, shape index: {}]
  %s2 = inlined_call_operand.vmem [shape: bf16[32,64], index: 2, kind: input, shape index: {}]
  %s3 = inlined_call_operand.hbm [shape: bf16[32,32], index: 3, kind: input, shape index: {}]
  %s4 = inlined_call_operand.hbm [shape: bf16[32,64], index: 4, kind: input, shape index: {}]
  %s5 = inlined_call_operand.vmem [shape: bf16[64,32], index: 5, kind: input, shape index: {}]
  %s6 = inlined_call_operand.hbm [shape: f32[8,32], index: 6, kind: input, shape index: {}]
  %s7 = inlined_call_operand.vmem [shape: f32[1,64], index: 7, kind: input, shape index: {}]
  %s8 = inlined_call_operand.vmem [shape: f32[1,64], index: 8, kind: input, shape index: {}]
  %s9 = inlined_call_operand.vmem [shape: f32[2,8,32], index: 9, kind: output, shape index: {}]
  %s10 = sld [smem:[#allocation0]]
  $region85: #{transformer_encoder_forward.2} parent=0
    _
  %s12 = ssub.s32 1, %s10
  %s13 = scalar_select 0, %s12, %s10
  $region1: #{transformer_encoder_forward.2} parent=0
    #allocation5 [shape = 'u8[8192]{0}', space=vmem, size = 0x2000, scoped, tag = 'input window, operand 3, single buffered']
    #allocation6 [shape = 's32[2]{0}', space=sflag, size = 0x8, scoped, tag = 'scoped memory for transformer_encoder_forward.2']
    #allocation7 [shape = 'u8[8192]{0}', space=vmem, size = 0x2000, scoped, tag = 'input window, operand 4, single buffered']
    #allocation8 [shape = 's32[1]{0}', space=sflag, size = 0x4, scoped, tag = 'scoped memory for transformer_encoder_forward.2']
    #allocation9 [shape = 'u8[4096]{0}', space=vmem, size = 0x1000, scoped, tag = 'input window, operand 6, single buffered']
    %14 = vsyncpa [#allocation6], 0
    %15 = vsyncpa [#allocation8], 0
    loop: start=0, step=1, limit=4
    $region2: #{transformer_encoder_forward.2} parent=1 // loop_pre_header
      _
    $region3: #{transformer_encoder_forward.2} parent=1 // loop_header
      %s17 = sphi 0, %s21
      %p18 = scmp.ge.s32.totalorder %s17, 4
      %s24 = sphi 0, %s36
      %s25 = sphi 0, %s32
      %s26 = sphi 0, %s24
      %s27 = sphi 0, %s25
      %s28 = sphi 0, %s26
      %s29 = sphi 0, %s27
      %s39 = sphi 0, %s41
      %s42 = sphi 0, %s39
      %s43 = sphi 0, %s42
      %s59 = sphi 0, %s43
      %s63 = sphi 0, %s63
      %s65 = sphi 0, %s63
      %s66 = sphi 0, %s65
      %s80 = sphi 0, %s66
      %s84 = sphi 0, %s84
      %s86 = sphi 0, %s84
      %s87 = sphi 0, %s86
      %s101 = sphi 0, %s87
      %s105 = sphi 0, %s105
      %s107 = sphi 0, %s105
      %s108 = sphi 0, %s107
      %s122 = sphi 0, %s108
      %s126 = sphi 0, %s126
      %s128 = sphi 0, %s126
      %s129 = sphi 0, %s128
      %s143 = sphi 0, %s129
      %s147 = sphi 0, %s147
      %s149 = sphi 0, %s147
      %s150 = sphi 0, %s149
      %s164 = sphi 0, %s150
      %s168 = sphi 0, %s168
      %s170 = sphi 0, %s168
      %s171 = sphi 0, %s170
      %s185 = sphi 0, %s171
      %s189 = sphi 0, %s189
      %s191 = sphi 0, %s189
      %s192 = sphi 0, %s191
      %s206 = sphi 0, %s192
      %s210 = sphi 0, %s210
      %s212 = sphi 0, %s210
      %s213 = sphi 0, %s212
      %s227 = sphi 0, %s213
      %s235 = sphi 0, %s237
      %s238 = sphi 0, %s235
      %s239 = sphi 0, %s238
      %s255 = sphi 0, %s239
    $region4: #{transformer_encoder_forward.2} parent=1 // loop_header_branch
      %20 = sbr.rel (%p18) target = $region8
    $region5: #{transformer_encoder_forward.2} parent=1 // loop_body
      %s22 = ssub.s32 %s17, 1
      %s23 = ssub.s32 %s17, 2
      %s30 = sadd.s32 1, %s25
      %p31 = scmp.ge.s32.totalorder %s30, 1
      %s32 = scalar_select %p31, 0, %s30
      %s33 = sadd.s32 1, %s24
      %s34 = scalar_select %p31, %s33, %s24
      %p35 = scmp.ge.s32.totalorder %s34, 2
      %s36 = scalar_select %p35, 0, %s34
      %s37 = ssub.s32 %s24, %s36
      %p38 = scmp.eq.s32.totalorder %s37, 0
      %s40 = sadd.s32 %s39, 1
      %s41 = scalar_select %p38, %s39, %s40
      %p44 = pneg %p38
      %p45 = scmp.eq.s32.totalorder %s17, 1
      %p46 = por %p44, %p45
      %p47 = scmp.ne.s32.totalorder %s39, %s42
      %p48 = scmp.eq.s32.totalorder %s17, 0
      %p49 = por %p47, %p48
      %p50 = scmp.ne.s32.totalorder %s39, %s42
      %p51 = scmp.eq.s32.totalorder %s22, 1
      %p52 = por %p50, %p51
      %p53 = scmp.ne.s32.totalorder %s42, %s43
      %p54 = scmp.eq.s32.totalorder %s22, 0
      %p55 = por %p53, %p54
      %p56 = scmp.ne.s32.totalorder %s42, %s43
      %p57 = scmp.eq.s32.totalorder %s23, 1
      %p58 = por %p56, %p57
      %p60 = scmp.ne.s32.totalorder %s43, %s59
      %p61 = scmp.eq.s32.totalorder %s23, 0
      %p62 = por %p60, %p61
      %s64 = sadd.s32 %s63, 1
      %p67 = scmp.eq.s32.totalorder %s17, 1
      %p68 = scmp.ne.s32.totalorder %s63, %s65
      %p69 = scmp.eq.s32.totalorder %s17, 0
      %p70 = por %p68, %p69
      %p71 = scmp.ne.s32.totalorder %s63, %s65
      %p72 = scmp.eq.s32.totalorder %s22, 1
      %p73 = por %p71, %p72
      %p74 = scmp.ne.s32.totalorder %s65, %s66
      %p75 = scmp.eq.s32.totalorder %s22, 0
      %p76 = por %p74, %p75
      %p77 = scmp.ne.s32.totalorder %s65, %s66
      %p78 = scmp.eq.s32.totalorder %s23, 1
      %p79 = por %p77, %p78
      %p81 = scmp.ne.s32.totalorder %s66, %s80
      %p82 = scmp.eq.s32.totalorder %s23, 0
      %p83 = por %p81, %p82
      %s85 = sadd.s32 %s84, 1
      %p88 = scmp.eq.s32.totalorder %s17, 1
      %p89 = scmp.ne.s32.totalorder %s84, %s86
      %p90 = scmp.eq.s32.totalorder %s17, 0
      %p91 = por %p89, %p90
      %p92 = scmp.ne.s32.totalorder %s84, %s86
      %p93 = scmp.eq.s32.totalorder %s22, 1
      %p94 = por %p92, %p93
      %p95 = scmp.ne.s32.totalorder %s86, %s87
      %p96 = scmp.eq.s32.totalorder %s22, 0
      %p97 = por %p95, %p96
      %p98 = scmp.ne.s32.totalorder %s86, %s87
      %p99 = scmp.eq.s32.totalorder %s23, 1
      %p100 = por %p98, %p99
      %p102 = scmp.ne.s32.totalorder %s87, %s101
      %p103 = scmp.eq.s32.totalorder %s23, 0
      %p104 = por %p102, %p103
      %s106 = sadd.s32 %s105, 1
      %p109 = scmp.eq.s32.totalorder %s17, 1
      %p110 = scmp.ne.s32.totalorder %s105, %s107
      %p111 = scmp.eq.s32.totalorder %s17, 0
      %p112 = por %p110, %p111
      %p113 = scmp.ne.s32.totalorder %s105, %s107
      %p114 = scmp.eq.s32.totalorder %s22, 1
      %p115 = por %p113, %p114
      %p116 = scmp.ne.s32.totalorder %s107, %s108
      %p117 = scmp.eq.s32.totalorder %s22, 0
      %p118 = por %p116, %p117
      %p119 = scmp.ne.s32.totalorder %s107, %s108
      %p120 = scmp.eq.s32.totalorder %s23, 1
      %p121 = por %p119, %p120
      %p123 = scmp.ne.s32.totalorder %s108, %s122
      %p124 = scmp.eq.s32.totalorder %s23, 0
      %p125 = por %p123, %p124
      %s127 = sadd.s32 %s126, 1
      %p130 = scmp.eq.s32.totalorder %s17, 1
      %p131 = scmp.ne.s32.totalorder %s126, %s128
      %p132 = scmp.eq.s32.totalorder %s17, 0
      %p133 = por %p131, %p132
      %p134 = scmp.ne.s32.totalorder %s126, %s128
      %p135 = scmp.eq.s32.totalorder %s22, 1
      %p136 = por %p134, %p135
      %p137 = scmp.ne.s32.totalorder %s128, %s129
      %p138 = scmp.eq.s32.totalorder %s22, 0
      %p139 = por %p137, %p138
      %p140 = scmp.ne.s32.totalorder %s128, %s129
      %p141 = scmp.eq.s32.totalorder %s23, 1
      %p142 = por %p140, %p141
      %p144 = scmp.ne.s32.totalorder %s129, %s143
      %p145 = scmp.eq.s32.totalorder %s23, 0
      %p146 = por %p144, %p145
      %s148 = sadd.s32 %s147, 1
      %p151 = scmp.eq.s32.totalorder %s17, 1
      %p152 = scmp.ne.s32.totalorder %s147, %s149
      %p153 = scmp.eq.s32.totalorder %s17, 0
      %p154 = por %p152, %p153
      %p155 = scmp.ne.s32.totalorder %s147, %s149
      %p156 = scmp.eq.s32.totalorder %s22, 1
      %p157 = por %p155, %p156
      %p158 = scmp.ne.s32.totalorder %s149, %s150
      %p159 = scmp.eq.s32.totalorder %s22, 0
      %p160 = por %p158, %p159
      %p161 = scmp.ne.s32.totalorder %s149, %s150
      %p162 = scmp.eq.s32.totalorder %s23, 1
      %p163 = por %p161, %p162
      %p165 = scmp.ne.s32.totalorder %s150, %s164
      %p166 = scmp.eq.s32.totalorder %s23, 0
      %p167 = por %p165, %p166
      %s169 = sadd.s32 %s168, 1
      %p172 = scmp.eq.s32.totalorder %s17, 1
      %p173 = scmp.ne.s32.totalorder %s168, %s170
      %p174 = scmp.eq.s32.totalorder %s17, 0
      %p175 = por %p173, %p174
      %p176 = scmp.ne.s32.totalorder %s168, %s170
      %p177 = scmp.eq.s32.totalorder %s22, 1
      %p178 = por %p176, %p177
      %p179 = scmp.ne.s32.totalorder %s170, %s171
      %p180 = scmp.eq.s32.totalorder %s22, 0
      %p181 = por %p179, %p180
      %p182 = scmp.ne.s32.totalorder %s170, %s171
      %p183 = scmp.eq.s32.totalorder %s23, 1
      %p184 = por %p182, %p183
      %p186 = scmp.ne.s32.totalorder %s171, %s185
      %p187 = scmp.eq.s32.totalorder %s23, 0
      %p188 = por %p186, %p187
      %s190 = sadd.s32 %s189, 1
      %p193 = scmp.eq.s32.totalorder %s17, 1
      %p194 = scmp.ne.s32.totalorder %s189, %s191
      %p195 = scmp.eq.s32.totalorder %s17, 0
      %p196 = por %p194, %p195
      %p197 = scmp.ne.s32.totalorder %s189, %s191
      %p198 = scmp.eq.s32.totalorder %s22, 1
      %p199 = por %p197, %p198
      %p200 = scmp.ne.s32.totalorder %s191, %s192
      %p201 = scmp.eq.s32.totalorder %s22, 0
      %p202 = por %p200, %p201
      %p203 = scmp.ne.s32.totalorder %s191, %s192
      %p204 = scmp.eq.s32.totalorder %s23, 1
      %p205 = por %p203, %p204
      %p207 = scmp.ne.s32.totalorder %s192, %s206
      %p208 = scmp.eq.s32.totalorder %s23, 0
      %p209 = por %p207, %p208
      %s211 = sadd.s32 %s210, 1
      %p214 = scmp.eq.s32.totalorder %s17, 1
      %p215 = scmp.ne.s32.totalorder %s210, %s212
      %p216 = scmp.eq.s32.totalorder %s17, 0
      %p217 = por %p215, %p216
      %p218 = scmp.ne.s32.totalorder %s210, %s212
      %p219 = scmp.eq.s32.totalorder %s22, 1
      %p220 = por %p218, %p219
      %p221 = scmp.ne.s32.totalorder %s212, %s213
      %p222 = scmp.eq.s32.totalorder %s22, 0
      %p223 = por %p221, %p222
      %p224 = scmp.ne.s32.totalorder %s212, %s213
      %p225 = scmp.eq.s32.totalorder %s23, 1
      %p226 = por %p224, %p225
      %p228 = scmp.ne.s32.totalorder %s213, %s227
      %p229 = scmp.eq.s32.totalorder %s23, 0
      %p230 = por %p228, %p229
      %s231 = ssub.s32 %s24, %s36
      %s232 = ssub.s32 %s25, %s32
      %s233 = sor.u32 %s231, %s232
      %p234 = scmp.eq.s32.totalorder %s233, 0
      %s236 = sadd.s32 %s235, 1
      %s237 = scalar_select %p234, %s235, %s236
      %p240 = pneg %p234
      %p241 = scmp.eq.s32.totalorder %s17, 1
      %p242 = por %p240, %p241
      %p243 = scmp.ne.s32.totalorder %s235, %s238
      %p244 = scmp.eq.s32.totalorder %s17, 0
      %p245 = por %p243, %p244
      %p246 = scmp.ne.s32.totalorder %s235, %s238
      %p247 = scmp.eq.s32.totalorder %s22, 1
      %p248 = por %p246, %p247
      %p249 = scmp.ne.s32.totalorder %s238, %s239
      %p250 = scmp.eq.s32.totalorder %s22, 0
      %p251 = por %p249, %p250
      %p252 = scmp.ne.s32.totalorder %s238, %s239
      %p253 = scmp.eq.s32.totalorder %s23, 1
      %p254 = por %p252, %p253
      %p256 = scmp.ne.s32.totalorder %s239, %s255
      %p257 = scmp.eq.s32.totalorder %s23, 0
      %p258 = por %p256, %p257
      %p259 = scmp.le.s32.totalorder 1, %s17
      %p260 = scmp.lt.s32.totalorder %s17, 3
      %p261 = pnand %p259, %p260
      %p262 = pneg %p261
      // Predicated region
      $region9: #{transformer_encoder_forward.2} parent=5 // pred_check
        _
      $region10: #{transformer_encoder_forward.2} parent=5 // pred_check_branch
        %264 = sbr.rel (%p261) target = $region12
      $region11: #{transformer_encoder_forward.2} parent=5 // pred_region
        %s265 = ssub.s32 %s17, 1
        // Predicated region
        $region13: #{transformer_encoder_forward.2} parent=11 // pred_check
          %p266 = pneg %p76
        $region14: #{transformer_encoder_forward.2} parent=11 // pred_check_branch
          %268 = sbr.rel (%p266) target = $region16
        $region15: #{transformer_encoder_forward.2} parent=11 // pred_region
          _
        $region16: #{transformer_encoder_forward.2} parent=11 // pred_fallthru
          _
        // Predicated region
        $region17: #{transformer_encoder_forward.2} parent=11 // pred_check
          %p269 = pneg %p97
        $region18: #{transformer_encoder_forward.2} parent=11 // pred_check_branch
          %271 = sbr.rel (%p269) target = $region20
        $region19: #{transformer_encoder_forward.2} parent=11 // pred_region
          _
        $region20: #{transformer_encoder_forward.2} parent=11 // pred_fallthru
          _
        // Predicated region
        $region21: #{transformer_encoder_forward.2} parent=11 // pred_check
          %p272 = pneg %p118
        $region22: #{transformer_encoder_forward.2} parent=11 // pred_check_branch
          %274 = sbr.rel (%p272) target = $region24
        $region23: #{transformer_encoder_forward.2} parent=11 // pred_region
          %s276 = ssub.s32 256, 256
          %277 = vsyncadd [#allocation6], %s276
          %s278 = sshll.u32 [#allocation5], 4
          %s279 = int_to_ptr.vmem [resolvable:$true] %s278
          %284 = dma.hbm_to_vmem [thread:$0]  %s3, 256, %s279, [#allocation6], 64, 64, 4
        $region24: #{transformer_encoder_forward.2} parent=11 // pred_fallthru
          _
        // Predicated region
        $region25: #{transformer_encoder_forward.2} parent=11 // pred_check
          %p285 = pneg %p139
        $region26: #{transformer_encoder_forward.2} parent=11 // pred_check_branch
          %287 = sbr.rel (%p285) target = $region28
        $region27: #{transformer_encoder_forward.2} parent=11 // pred_region
          %s289 = ssub.s32 256, 256
          %290 = vsyncadd [#allocation8], %s289
          %s291 = sshll.u32 [#allocation7], 4
          %s292 = int_to_ptr.vmem [resolvable:$true] %s291
          %297 = dma.hbm_to_vmem [thread:$0]  %s4, 256, %s292, [#allocation8], 64, 64, 4
        $region28: #{transformer_encoder_forward.2} parent=11 // pred_fallthru
          _
        // Predicated region
        $region29: #{transformer_encoder_forward.2} parent=11 // pred_check
          %p298 = pneg %p160
        $region30: #{transformer_encoder_forward.2} parent=11 // pred_check_branch
          %300 = sbr.rel (%p298) target = $region32
        $region31: #{transformer_encoder_forward.2} parent=11 // pred_region
          _
        $region32: #{transformer_encoder_forward.2} parent=11 // pred_fallthru
          _
        // Predicated region
        $region33: #{transformer_encoder_forward.2} parent=11 // pred_check
          %p301 = pneg %p181
        $region34: #{transformer_encoder_forward.2} parent=11 // pred_check_branch
          %303 = sbr.rel (%p301) target = $region36
        $region35: #{transformer_encoder_forward.2} parent=11 // pred_region
          %s305 = ssub.s32 128, 128
          %306 = vsyncadd [#allocation8], %s305
          %s308 = sshll.u32 [#allocation9], 4
          %s309 = int_to_ptr.vmem [resolvable:$true] %s308
          %311 = dma.hbm_to_vmem [thread:$0]  %s6, 128, %s309, [#allocation8]
        $region36: #{transformer_encoder_forward.2} parent=11 // pred_fallthru
          _
        // Predicated region
        $region37: #{transformer_encoder_forward.2} parent=11 // pred_check
          %p312 = pneg %p202
        $region38: #{transformer_encoder_forward.2} parent=11 // pred_check_branch
          %314 = sbr.rel (%p312) target = $region40
        $region39: #{transformer_encoder_forward.2} parent=11 // pred_region
          _
        $region40: #{transformer_encoder_forward.2} parent=11 // pred_fallthru
          _
        // Predicated region
        $region41: #{transformer_encoder_forward.2} parent=11 // pred_check
          %p315 = pneg %p223
        $region42: #{transformer_encoder_forward.2} parent=11 // pred_check_branch
          %317 = sbr.rel (%p315) target = $region44
        $region43: #{transformer_encoder_forward.2} parent=11 // pred_region
          _
        $region44: #{transformer_encoder_forward.2} parent=11 // pred_fallthru
          _
      $region12: #{transformer_encoder_forward.2} parent=5 // pred_fallthru
        _
      %p318 = scmp.lt.s32.totalorder %s17, 2
      // Predicated region
      $region45: #{transformer_encoder_forward.2} parent=5 // pred_check
        %p319 = pneg %p318
      $region46: #{transformer_encoder_forward.2} parent=5 // pred_check_branch
        %321 = sbr.rel (%p319) target = $region48
      $region47: #{transformer_encoder_forward.2} parent=5 // pred_region
        // Predicated region
        $region49: #{transformer_encoder_forward.2} parent=47 // pred_check
          %p322 = pneg %p49
        $region50: #{transformer_encoder_forward.2} parent=47 // pred_check_branch
          %324 = sbr.rel (%p322) target = $region52
        $region51: #{transformer_encoder_forward.2} parent=47 // pred_region
          %p325 = scmp.lt.s32.totalorder %s24, 1
          %s326 = scalar_select %p325, %s24, 1
          %s327 = smul.addr %s326, 8
          %s328 = scalar_lea.vmem %s0, %s327
        $region52: #{transformer_encoder_forward.2} parent=47 // pred_fallthru
          _
      $region48: #{transformer_encoder_forward.2} parent=5 // pred_fallthru
        _
      %p329 = scmp.le.s32.totalorder 1, %s17
      %p330 = scmp.lt.s32.totalorder %s17, 3
      %p331 = pnand %p329, %p330
      %p332 = pneg %p331
      // Predicated region
      $region53: #{transformer_encoder_forward.2} parent=5 // pred_check
        _
      $region54: #{transformer_encoder_forward.2} parent=5 // pred_check_branch
        %334 = sbr.rel (%p331) target = $region56
      $region55: #{transformer_encoder_forward.2} parent=5 // pred_region
        %s335 = ssub.s32 %s17, 1
        // Predicated region
        $region57: #{transformer_encoder_forward.2} parent=55 // pred_check
          %p336 = pneg %p118
        $region58: #{transformer_encoder_forward.2} parent=55 // pred_check_branch
          %338 = sbr.rel (%p336) target = $region60
        $region59: #{transformer_encoder_forward.2} parent=55 // pred_region
          %339 = dma.done [#allocation6], 256
        $region60: #{transformer_encoder_forward.2} parent=55 // pred_fallthru
          _
        // Predicated region
        $region61: #{transformer_encoder_forward.2} parent=55 // pred_check
          %p340 = pneg %p139
        $region62: #{transformer_encoder_forward.2} parent=55 // pred_check_branch
          %342 = sbr.rel (%p340) target = $region64
        $region63: #{transformer_encoder_forward.2} parent=55 // pred_region
          %343 = dma.done [#allocation8], 256
        $region64: #{transformer_encoder_forward.2} parent=55 // pred_fallthru
          _
        // Predicated region
        $region65: #{transformer_encoder_forward.2} parent=55 // pred_check
          %p344 = pneg %p181
        $region66: #{transformer_encoder_forward.2} parent=55 // pred_check_branch
          %346 = sbr.rel (%p344) target = $region68
        $region67: #{transformer_encoder_forward.2} parent=55 // pred_region
          %347 = dma.done [#allocation8], 128
        $region68: #{transformer_encoder_forward.2} parent=55 // pred_fallthru
          _
        %p348 = scmp.lt.s32.totalorder %s26, 1
        %s349 = scalar_select %p348, %s26, 1
        %s350 = smul.addr %s349, 8
        %s351 = scalar_lea.vmem %s0, %s350
        %p352 = pneg %p55
        %p353 = pneg %p52
        %p354 = pneg %p76
        %p355 = pneg %p73
        %p356 = pneg %p97
        %p357 = pneg %p94
        %p358 = pneg %p118
        %p359 = pneg %p115
        %p360 = pneg %p139
        %p361 = pneg %p136
        %p362 = pneg %p160
        %p363 = pneg %p157
        %p364 = pneg %p181
        %p365 = pneg %p178
        %p366 = pneg %p202
        %p367 = pneg %p199
        %p368 = pneg %p223
        %p369 = pneg %p220
        %p370 = pneg %p251
        %p371 = pneg %p248
        %p372 = scmp.lt.s32.totalorder %s26, 1
        %s373 = scalar_select %p372, %s26, 1
        %p374 = scmp.lt.s32.totalorder %s27, 0
        %s375 = scalar_select %p374, %s27, 0
        %s376 = sadd.s32 %s375, %s373
        %s377 = smul.addr %s376, 8
        %s378 = scalar_lea.vmem %s9, %s377
        %p379 = scmp.lt.s32.totalorder %s26, 1
        %s380 = scalar_select %p379, %s26, 1
        %s381 = smul.addr %s380, 8
        %s382 = scalar_lea.vmem %s0, %s381
        %p383 = scmp.lt.s32.totalorder %s26, 1
        %s384 = scalar_select %p383, %s26, 1
        %p385 = scmp.lt.s32.totalorder %s27, 0
        %s386 = scalar_select %p385, %s27, 0
        %s387 = sadd.s32 %s386, %s384
        %s388 = smul.addr %s387, 8
        %s389 = scalar_lea.vmem %s9, %s388
        %p391 = scmp.eq.s32.totalorder %s27, 0
        // Predicated region
        $region69: #{transformer_encoder_forward.2} parent=55 // pred_check
          %p392 = pneg %p391
        $region70: #{transformer_encoder_forward.2} parent=55 // pred_check_branch
          %394 = sbr.rel (%p392) target = $region72
        $region71: #{transformer_encoder_forward.2} parent=55 // pred_region
          %v395 = vld [vmem:[%s382] sm:$0xff]
          %v396 = vpack.c.bf16 %v395, %v395
          %v397 = vld [vmem:[%s2] sm:$0xf]
          %v398 = vld [vmem:[%s2 + $0x4] sm:$0xf]
          %v399 = vld [vmem:[%s2 + $0x8] sm:$0xf]
          %v400 = vld [vmem:[%s2 + $0xc] sm:$0xf]
          %v401 = vld [vmem:[%s7] sm:$0x1]
          %v403 = vlaneseq
          %v404 = vshrl.u32 %v403, 7
          %v405 = vsub.s32 0, %v404
          %v406 = vrot.slane %v401, %v405
          %v412 = vunpack.c.l.b16 %v397
          %v413 = vunpack.c.l.b16 %v398
          %v414 = vunpack.c.l.b16 %v399
          %v415 = vunpack.c.l.b16 %v400
          %v416 = vpack.c.b16 %v413, %v412
          %v417 = vpack.c.b16 %v415, %v414
          %vm420 = vcmask 261120
          %v422 = vsel %vm420, %v396, 0
          %424 = vmatprep.subr.bf16.mxu0 0
          %425 = vmatpush1.bf16.msra.mxu0 %v416
          %426 = vmatprep.subr.bf16.mxu0 0
          %427 = vmatpush1.bf16.msra.mxu0 %v417
          %428 = vmatprep.subr.bf16.mxu0 0
          %429 = vmatpush1.bf16.msra.mxu0 0
          %430 = vmatprep.subr.bf16.mxu0 0
          %431 = vmatpush1.bf16.msra.mxu0 0
          %432 = vmatprep.subr.bf16.mxu0 0
          %433 = vmatpush1.bf16.msra.mxu0 0
          %434 = vmatprep.subr.bf16.mxu0 0
          %435 = vmatpush1.bf16.msra.mxu0 0
          %436 = vmatprep.subr.bf16.mxu0 0
          %437 = vmatpush1.bf16.msra.mxu0 0
          %438 = vmatprep.subr.bf16.mxu0 0
          %439 = vmatpush1.bf16.msra.mxu0 0
          %440 = vmatprep.subr.bf16.mxu0 0
          %441 = vmatpush1.bf16.msra.mxu0 0
          %442 = vmatprep.subr.bf16.mxu0 0
          %443 = vmatpush1.bf16.msra.mxu0 0
          %444 = vmatprep.subr.bf16.mxu0 0
          %445 = vmatpush1.bf16.msra.mxu0 0
          %446 = vmatprep.subr.bf16.mxu0 0
          %447 = vmatpush1.bf16.msra.mxu0 0
          %448 = vmatprep.subr.bf16.mxu0 0
          %449 = vmatpush1.bf16.msra.mxu0 0
          %450 = vmatprep.subr.bf16.mxu0 0
          %451 = vmatpush1.bf16.msra.mxu0 0
          %452 = vmatprep.subr.bf16.mxu0 0
          %453 = vmatpush1.bf16.msra.mxu0 0
          %454 = vmatprep.subr.bf16.mxu0 0
          %455 = vmatpush1.bf16.msra.mxu0 0
          %456 = vmatprep.mubr.bf16.mxu0 0
          %457 = vmatmul.mubr.bf16.gmra.mrb[0].mxu0 %v422
          %v458 = vpop.f32.mrb[0].mxu0
          %v459 = vadd.f32 %v406, %v458
          %v460 = vpop.f32.mrb[0].mxu0
          %v461 = vpop.f32.mrb[0].mxu0
          %v462 = vpop.f32.mrb[0].mxu0
          %463 = vdwg.mxu0
          %v464 = vpack.c.bf16 %v459, %v459
          %vm465 = vcmask 60416
          %466 = vst.msk [vmem:[#allocation2] sm:$0xf] %vm465, %v464
          %v468 = vunpack.c.l.b16 %v464
          %v469 = vpack.c.b16 %v468, %v468
          %470 = vrot.lane.b32.xlu0 %v469, 96
          %v471 = vpop.permute.xlu0 %470
          %473 = vst.msk [vmem:[#allocation3] sm:$0xf] %vm465, %v471
          %474 = vrot.lane.b32.xlu0 %v469, 120
          %v475 = vpop.permute.xlu0 %474
          %s477 = scalar_lea.vmem [#allocation2], 4
          %478 = vst.msk [vmem:[%s477] sm:$0xf] %vm465, %v475
          %479 = vrot.lane.b32.xlu0 %v469, 88
          %v480 = vpop.permute.xlu0 %479
          %s482 = scalar_lea.vmem [#allocation3], 4
          %483 = vst.msk [vmem:[%s482] sm:$0xf] %vm465, %v480
          %484 = vrot.lane.b32.xlu0 %v469, 112
          %v485 = vpop.permute.xlu0 %484
          %s487 = scalar_lea.vmem [#allocation2], 8
          %488 = vst.msk [vmem:[%s487] sm:$0xf] %vm465, %v485
          %489 = vrot.lane.b32.xlu0 %v469, 80
          %v490 = vpop.permute.xlu0 %489
          %s492 = scalar_lea.vmem [#allocation3], 8
          %493 = vst.msk [vmem:[%s492] sm:$0xf] %vm465, %v490
          %494 = vrot.lane.b32.xlu0 %v469, 104
          %v495 = vpop.permute.xlu0 %494
          %s497 = scalar_lea.vmem [#allocation2], 12
          %498 = vst.msk [vmem:[%s497] sm:$0xf] %vm465, %v495
          %499 = vrot.lane.b32.xlu0 %v469, 72
          %v500 = vpop.permute.xlu0 %499
          %s502 = scalar_lea.vmem [#allocation3], 12
          %503 = vst.msk [vmem:[%s502] sm:$0xf] %vm465, %v500
        $region72: #{transformer_encoder_forward.2} parent=55 // pred_fallthru
          _
        %v504 = vld [vmem:[#allocation9] sm:$0xff]
        %s505 = smul.u32 %s27, 8
        %s506 = scalar_lea.vmem %s382, %s505
        %v507 = vld [vmem:[%s506] sm:$0xff]
        %v508 = vpack.c.bf16 %v507, %v507
        %v509 = vld [vmem:[%s1] sm:$0xf]
        %v510 = vld [vmem:[%s1 + $0x4] sm:$0xf]
        %v511 = vld [vmem:[%s1 + $0x8] sm:$0xf]
        %v512 = vld [vmem:[%s1 + $0xc] sm:$0xf]
        %v513 = vlaneseq
        %v514 = vshrl.u32 %v513, 7
        %v515 = vsub.s32 0, %v514
        %v516 = vrot.slane %v504, %v515
        %v521 = vunpack.c.l.b16 %v509
        %v522 = vunpack.c.l.b16 %v510
        %v523 = vunpack.c.l.b16 %v511
        %v524 = vunpack.c.l.b16 %v512
        %v525 = vpack.c.b16 %v522, %v521
        %v526 = vpack.c.b16 %v524, %v523
        %vm529 = vcmask 261120
        %v531 = vsel %vm529, %v508, 0
        %533 = vmatprep.subr.bf16.mxu0 0
        %534 = vmatpush1.bf16.msra.mxu0 %v525
        %535 = vmatprep.subr.bf16.mxu0 0
        %536 = vmatpush1.bf16.msra.mxu0 %v526
        %537 = vmatprep.subr.bf16.mxu0 0
        %538 = vmatpush1.bf16.msra.mxu0 0
        %539 = vmatprep.subr.bf16.mxu0 0
        %540 = vmatpush1.bf16.msra.mxu0 0
        %541 = vmatprep.subr.bf16.mxu0 0
        %542 = vmatpush1.bf16.msra.mxu0 0
        %543 = vmatprep.subr.bf16.mxu0 0
        %544 = vmatpush1.bf16.msra.mxu0 0
        %545 = vmatprep.subr.bf16.mxu0 0
        %546 = vmatpush1.bf16.msra.mxu0 0
        %547 = vmatprep.subr.bf16.mxu0 0
        %548 = vmatpush1.bf16.msra.mxu0 0
        %549 = vmatprep.subr.bf16.mxu0 0
        %550 = vmatpush1.bf16.msra.mxu0 0
        %551 = vmatprep.subr.bf16.mxu0 0
        %552 = vmatpush1.bf16.msra.mxu0 0
        %553 = vmatprep.subr.bf16.mxu0 0
        %554 = vmatpush1.bf16.msra.mxu0 0
        %555 = vmatprep.subr.bf16.mxu0 0
        %556 = vmatpush1.bf16.msra.mxu0 0
        %557 = vmatprep.subr.bf16.mxu0 0
        %558 = vmatpush1.bf16.msra.mxu0 0
        %559 = vmatprep.subr.bf16.mxu0 0
        %560 = vmatpush1.bf16.msra.mxu0 0
        %561 = vmatprep.subr.bf16.mxu0 0
        %562 = vmatpush1.bf16.msra.mxu0 0
        %563 = vmatprep.subr.bf16.mxu0 0
        %564 = vmatpush1.bf16.msra.mxu0 0
        %565 = vmatprep.mubr.bf16.mxu0 0
        %566 = vmatmul.mubr.bf16.gmra.mrb[0].mxu0 %v531
        %v567 = vpop.f32.mrb[0].mxu0
        %v568 = vadd.f32 %v516, %v567
        %v569 = vpop.f32.mrb[0].mxu0
        %v570 = vpop.f32.mrb[0].mxu0
        %v571 = vpop.f32.mrb[0].mxu0
        %572 = vdwg.mxu0
        %574 = vrot.lane.b32.xlu0 %v568, 120
        %v575 = vpop.permute.xlu0 %574
        %577 = vrot.lane.b32.xlu0 %v568, 112
        %v578 = vpop.permute.xlu0 %577
        %580 = vrot.lane.b32.xlu0 %v568, 104
        %v581 = vpop.permute.xlu0 %580
        %v583 = vpack.c.bf16 %v568, %v568
        %v584 = vpack.c.bf16 %v575, %v575
        %v585 = vpack.c.bf16 %v578, %v578
        %v586 = vpack.c.bf16 %v581, %v581
        %v587 = vld [vmem:[#allocation2] sm:$0xf]
        %v588 = vld [vmem:[#allocation2 + $0x4] sm:$0xf]
        %v589 = vld [vmem:[#allocation2 + $0x8] sm:$0xf]
        %v590 = vld [vmem:[#allocation2 + $0xc] sm:$0xf]
        %v591 = vld [vmem:[#allocation3] sm:$0xf]
        %v592 = vld [vmem:[#allocation3 + $0x4] sm:$0xf]
        %v593 = vld [vmem:[#allocation3 + $0x8] sm:$0xf]
        %v594 = vld [vmem:[#allocation3 + $0xc] sm:$0xf]
        %vm595 = vcmask 64512
        %v597 = vsel %vm595, %v583, 0
        %v600 = vsel %vm595, %v587, 0
        %602 = vmatprep.subr.bf16.mxu0 0
        %603 = vmatpush1.bf16.xpose.msra.mxu0 %v600
        %604 = vmatprep.subr.bf16.mxu0 0
        %605 = vmatpush1.bf16.xpose.msra.mxu0 0
        %606 = vmatprep.subr.bf16.mxu0 0
        %607 = vmatpush1.bf16.xpose.msra.mxu0 0
        %608 = vmatprep.subr.bf16.mxu0 0
        %609 = vmatpush1.bf16.xpose.msra.mxu0 0
        %610 = vmatprep.subr.bf16.mxu0 0
        %611 = vmatpush1.bf16.xpose.msra.mxu0 0
        %612 = vmatprep.subr.bf16.mxu0 0
        %613 = vmatpush1.bf16.xpose.msra.mxu0 0
        %614 = vmatprep.subr.bf16.mxu0 0
        %615 = vmatpush1.bf16.xpose.msra.mxu0 0
        %616 = vmatprep.subr.bf16.mxu0 0
        %617 = vmatpush1.bf16.xpose.msra.mxu0 0
        %618 = vmatprep.subr.bf16.mxu0 0
        %619 = vmatpush1.bf16.xpose.msra.mxu0 0
        %620 = vmatprep.subr.bf16.mxu0 0
        %621 = vmatpush1.bf16.xpose.msra.mxu0 0
        %622 = vmatprep.subr.bf16.mxu0 0
        %623 = vmatpush1.bf16.xpose.msra.mxu0 0
        %624 = vmatprep.subr.bf16.mxu0 0
        %625 = vmatpush1.bf16.xpose.msra.mxu0 0
        %626 = vmatprep.subr.bf16.mxu0 0
        %627 = vmatpush1.bf16.xpose.msra.mxu0 0
        %628 = vmatprep.subr.bf16.mxu0 0
        %629 = vmatpush1.bf16.xpose.msra.mxu0 0
        %630 = vmatprep.subr.bf16.mxu0 0
        %631 = vmatpush1.bf16.xpose.msra.mxu0 0
        %632 = vmatprep.subr.bf16.mxu0 0
        %633 = vmatpush1.bf16.xpose.msra.mxu0 0
        %634 = vmatprep.mubr.bf16.mxu0 0
        %635 = vmatmul.mubr.bf16.gmra.mrb[0].mxu0 %v597
        %v636 = vpop.f32.mrb[0].mxu0
        %v637 = vadd.f32 0.0, %v636
        %v638 = vpop.f32.mrb[0].mxu0
        %v639 = vpop.f32.mrb[0].mxu0
        %v640 = vpop.f32.mrb[0].mxu0
        %641 = vdwg.mxu0
        %v643 = vsel %vm595, %v584, 0
        %v646 = vsel %vm595, %v588, 0
        %648 = vmatprep.subr.bf16.mxu0 0
        %649 = vmatpush1.bf16.xpose.msra.mxu0 %v646
        %650 = vmatprep.subr.bf16.mxu0 0
        %651 = vmatpush1.bf16.xpose.msra.mxu0 0
        %652 = vmatprep.subr.bf16.mxu0 0
        %653 = vmatpush1.bf16.xpose.msra.mxu0 0
        %654 = vmatprep.subr.bf16.mxu0 0
        %655 = vmatpush1.bf16.xpose.msra.mxu0 0
        %656 = vmatprep.subr.bf16.mxu0 0
        %657 = vmatpush1.bf16.xpose.msra.mxu0 0
        %658 = vmatprep.subr.bf16.mxu0 0
        %659 = vmatpush1.bf16.xpose.msra.mxu0 0
        %660 = vmatprep.subr.bf16.mxu0 0
        %661 = vmatpush1.bf16.xpose.msra.mxu0 0
        %662 = vmatprep.subr.bf16.mxu0 0
        %663 = vmatpush1.bf16.xpose.msra.mxu0 0
        %664 = vmatprep.subr.bf16.mxu0 0
        %665 = vmatpush1.bf16.xpose.msra.mxu0 0
        %666 = vmatprep.subr.bf16.mxu0 0
        %667 = vmatpush1.bf16.xpose.msra.mxu0 0
        %668 = vmatprep.subr.bf16.mxu0 0
        %669 = vmatpush1.bf16.xpose.msra.mxu0 0
        %670 = vmatprep.subr.bf16.mxu0 0
        %671 = vmatpush1.bf16.xpose.msra.mxu0 0
        %672 = vmatprep.subr.bf16.mxu0 0
        %673 = vmatpush1.bf16.xpose.msra.mxu0 0
        %674 = vmatprep.subr.bf16.mxu0 0
        %675 = vmatpush1.bf16.xpose.msra.mxu0 0
        %676 = vmatprep.subr.bf16.mxu0 0
        %677 = vmatpush1.bf16.xpose.msra.mxu0 0
        %678 = vmatprep.subr.bf16.mxu0 0
        %679 = vmatpush1.bf16.xpose.msra.mxu0 0
        %680 = vmatprep.mubr.bf16.mxu0 0
        %681 = vmatmul.mubr.bf16.gmra.mrb[0].mxu0 %v643
        %v682 = vpop.f32.mrb[0].mxu0
        %v683 = vadd.f32 0.0, %v682
        %v684 = vpop.f32.mrb[0].mxu0
        %v685 = vpop.f32.mrb[0].mxu0
        %v686 = vpop.f32.mrb[0].mxu0
        %687 = vdwg.mxu0
        %v689 = vsel %vm595, %v585, 0
        %v692 = vsel %vm595, %v589, 0
        %694 = vmatprep.subr.bf16.mxu0 0
        %695 = vmatpush1.bf16.xpose.msra.mxu0 %v692
        %696 = vmatprep.subr.bf16.mxu0 0
        %697 = vmatpush1.bf16.xpose.msra.mxu0 0
        %698 = vmatprep.subr.bf16.mxu0 0
        %699 = vmatpush1.bf16.xpose.msra.mxu0 0
        %700 = vmatprep.subr.bf16.mxu0 0
        %701 = vmatpush1.bf16.xpose.msra.mxu0 0
        %702 = vmatprep.subr.bf16.mxu0 0
        %703 = vmatpush1.bf16.xpose.msra.mxu0 0
        %704 = vmatprep.subr.bf16.mxu0 0
        %705 = vmatpush1.bf16.xpose.msra.mxu0 0
        %706 = vmatprep.subr.bf16.mxu0 0
        %707 = vmatpush1.bf16.xpose.msra.mxu0 0
        %708 = vmatprep.subr.bf16.mxu0 0
        %709 = vmatpush1.bf16.xpose.msra.mxu0 0
        %710 = vmatprep.subr.bf16.mxu0 0
        %711 = vmatpush1.bf16.xpose.msra.mxu0 0
        %712 = vmatprep.subr.bf16.mxu0 0
        %713 = vmatpush1.bf16.xpose.msra.mxu0 0
        %714 = vmatprep.subr.bf16.mxu0 0
        %715 = vmatpush1.bf16.xpose.msra.mxu0 0
        %716 = vmatprep.subr.bf16.mxu0 0
        %717 = vmatpush1.bf16.xpose.msra.mxu0 0
        %718 = vmatprep.subr.bf16.mxu0 0
        %719 = vmatpush1.bf16.xpose.msra.mxu0 0
        %720 = vmatprep.subr.bf16.mxu0 0
        %721 = vmatpush1.bf16.xpose.msra.mxu0 0
        %722 = vmatprep.subr.bf16.mxu0 0
        %723 = vmatpush1.bf16.xpose.msra.mxu0 0
        %724 = vmatprep.subr.bf16.mxu0 0
        %725 = vmatpush1.bf16.xpose.msra.mxu0 0
        %726 = vmatprep.mubr.bf16.mxu0 0
        %727 = vmatmul.mubr.bf16.gmra.mrb[0].mxu0 %v689
        %v728 = vpop.f32.mrb[0].mxu0
        %v729 = vadd.f32 0.0, %v728
        %v730 = vpop.f32.mrb[0].mxu0
        %v731 = vpop.f32.mrb[0].mxu0
        %v732 = vpop.f32.mrb[0].mxu0
        %733 = vdwg.mxu0
        %v735 = vsel %vm595, %v586, 0
        %v738 = vsel %vm595, %v590, 0
        %740 = vmatprep.subr.bf16.mxu0 0
        %741 = vmatpush1.bf16.xpose.msra.mxu0 %v738
        %742 = vmatprep.subr.bf16.mxu0 0
        %743 = vmatpush1.bf16.xpose.msra.mxu0 0
        %744 = vmatprep.subr.bf16.mxu0 0
        %745 = vmatpush1.bf16.xpose.msra.mxu0 0
        %746 = vmatprep.subr.bf16.mxu0 0
        %747 = vmatpush1.bf16.xpose.msra.mxu0 0
        %748 = vmatprep.subr.bf16.mxu0 0
        %749 = vmatpush1.bf16.xpose.msra.mxu0 0
        %750 = vmatprep.subr.bf16.mxu0 0
        %751 = vmatpush1.bf16.xpose.msra.mxu0 0
        %752 = vmatprep.subr.bf16.mxu0 0
        %753 = vmatpush1.bf16.xpose.msra.mxu0 0
        %754 = vmatprep.subr.bf16.mxu0 0
        %755 = vmatpush1.bf16.xpose.msra.mxu0 0
        %756 = vmatprep.subr.bf16.mxu0 0
        %757 = vmatpush1.bf16.xpose.msra.mxu0 0
        %758 = vmatprep.subr.bf16.mxu0 0
        %759 = vmatpush1.bf16.xpose.msra.mxu0 0
        %760 = vmatprep.subr.bf16.mxu0 0
        %761 = vmatpush1.bf16.xpose.msra.mxu0 0
        %762 = vmatprep.subr.bf16.mxu0 0
        %763 = vmatpush1.bf16.xpose.msra.mxu0 0
        %764 = vmatprep.subr.bf16.mxu0 0
        %765 = vmatpush1.bf16.xpose.msra.mxu0 0
        %766 = vmatprep.subr.bf16.mxu0 0
        %767 = vmatpush1.bf16.xpose.msra.mxu0 0
        %768 = vmatprep.subr.bf16.mxu0 0
        %769 = vmatpush1.bf16.xpose.msra.mxu0 0
        %770 = vmatprep.subr.bf16.mxu0 0
        %771 = vmatpush1.bf16.xpose.msra.mxu0 0
        %772 = vmatprep.mubr.bf16.mxu0 0
        %773 = vmatmul.mubr.bf16.gmra.mrb[0].mxu0 %v735
        %v774 = vpop.f32.mrb[0].mxu0
        %v775 = vadd.f32 0.0, %v774
        %v776 = vpop.f32.mrb[0].mxu0
        %v777 = vpop.f32.mrb[0].mxu0
        %v778 = vpop.f32.mrb[0].mxu0
        %779 = vdwg.mxu0
        %v780 = vsel %vm595, %v637, -inf
        %781 = vmax.xlane.f32.xlu0 %v780
        %v782 = vpop.xlane.xlu0 %781
        %v783 = vsel %vm595, %v683, -inf
        %784 = vmax.xlane.f32.xlu0 %v783
        %v785 = vpop.xlane.xlu0 %784
        %v786 = vsel %vm595, %v729, -inf
        %787 = vmax.xlane.f32.xlu0 %v786
        %v788 = vpop.xlane.xlu0 %787
        %v789 = vsel %vm595, %v775, -inf
        %790 = vmax.xlane.f32.xlu0 %v789
        %v791 = vpop.xlane.xlu0 %790
        %v792 = vsub.f32 %v637, %v782
        %v793 = vsub.f32 %v683, %v785
        %v794 = vsub.f32 %v729, %v788
        %v795 = vsub.f32 %v775, %v791
        %v796 = vmul.f32 %v792, 1.442695
        %v797 = vpow.pop %v796
        %v798 = vmul.f32 %v793, 1.442695
        %v799 = vpow.pop %v798
        %v800 = vmul.f32 %v794, 1.442695
        %v801 = vpow.pop %v800
        %v802 = vmul.f32 %v795, 1.442695
        %v803 = vpow.pop %v802
        %v804 = vsel %vm595, %v797, 0.0
        %805 = vadd.xlane.f32.xlu0 %v804
        %v806 = vpop.xlane.xlu0 %805
        %v807 = vsel %vm595, %v799, 0.0
        %808 = vadd.xlane.f32.xlu0 %v807
        %v809 = vpop.xlane.xlu0 %808
        %v810 = vsel %vm595, %v801, 0.0
        %811 = vadd.xlane.f32.xlu0 %v810
        %v812 = vpop.xlane.xlu0 %811
        %v813 = vsel %vm595, %v803, 0.0
        %814 = vadd.xlane.f32.xlu0 %v813
        %v815 = vpop.xlane.xlu0 %814
        %v816 = vrcp.pop %v806
        %v817 = vrcp.pop %v809
        %v818 = vrcp.pop %v812
        %v819 = vrcp.pop %v815
        %v820 = vmul.f32 %v797, %v816
        %v821 = vmul.f32 %v799, %v817
        %v822 = vmul.f32 %v801, %v818
        %v823 = vmul.f32 %v803, %v819
        %v824 = vpack.c.bf16 %v820, %v820
        %v825 = vpack.c.bf16 %v821, %v821
        %v826 = vpack.c.bf16 %v822, %v822
        %v827 = vpack.c.bf16 %v823, %v823
        %v829 = vsel %vm595, %v824, 0
        %vm831 = vcmask 1043456
        %v833 = vsel %vm831, %v591, 0
        %835 = vmatprep.subr.bf16.mxu0 0
        %836 = vmatpush1.bf16.msra.mxu0 %v833
        %837 = vmatprep.subr.bf16.mxu0 0
        %838 = vmatpush1.bf16.msra.mxu0 0
        %839 = vmatprep.subr.bf16.mxu0 0
        %840 = vmatpush1.bf16.msra.mxu0 0
        %841 = vmatprep.subr.bf16.mxu0 0
        %842 = vmatpush1.bf16.msra.mxu0 0
        %843 = vmatprep.subr.bf16.mxu0 0
        %844 = vmatpush1.bf16.msra.mxu0 0
        %845 = vmatprep.subr.bf16.mxu0 0
        %846 = vmatpush1.bf16.msra.mxu0 0
        %847 = vmatprep.subr.bf16.mxu0 0
        %848 = vmatpush1.bf16.msra.mxu0 0
        %849 = vmatprep.subr.bf16.mxu0 0
        %850 = vmatpush1.bf16.msra.mxu0 0
        %851 = vmatprep.subr.bf16.mxu0 0
        %852 = vmatpush1.bf16.msra.mxu0 0
        %853 = vmatprep.subr.bf16.mxu0 0
        %854 = vmatpush1.bf16.msra.mxu0 0
        %855 = vmatprep.subr.bf16.mxu0 0
        %856 = vmatpush1.bf16.msra.mxu0 0
        %857 = vmatprep.subr.bf16.mxu0 0
        %858 = vmatpush1.bf16.msra.mxu0 0
        %859 = vmatprep.subr.bf16.mxu0 0
        %860 = vmatpush1.bf16.msra.mxu0 0
        %861 = vmatprep.subr.bf16.mxu0 0
        %862 = vmatpush1.bf16.msra.mxu0 0
        %863 = vmatprep.subr.bf16.mxu0 0
        %864 = vmatpush1.bf16.msra.mxu0 0
        %865 = vmatprep.subr.bf16.mxu0 0
        %866 = vmatpush1.bf16.msra.mxu0 0
        %867 = vmatprep.mubr.bf16.mxu0 0
        %868 = vmatmul.mubr.bf16.gmra.mrb[0].mxu0 %v829
        %v869 = vpop.f32.mrb[0].mxu0
        %v870 = vadd.f32 0.0, %v869
        %v871 = vpop.f32.mrb[0].mxu0
        %v872 = vpop.f32.mrb[0].mxu0
        %v873 = vpop.f32.mrb[0].mxu0
        %874 = vdwg.mxu0
        %v876 = vsel %vm595, %v825, 0
        %v879 = vsel %vm831, %v592, 0
        %881 = vmatprep.subr.bf16.mxu0 0
        %882 = vmatpush1.bf16.msra.mxu0 %v879
        %883 = vmatprep.subr.bf16.mxu0 0
        %884 = vmatpush1.bf16.msra.mxu0 0
        %885 = vmatprep.subr.bf16.mxu0 0
        %886 = vmatpush1.bf16.msra.mxu0 0
        %887 = vmatprep.subr.bf16.mxu0 0
        %888 = vmatpush1.bf16.msra.mxu0 0
        %889 = vmatprep.subr.bf16.mxu0 0
        %890 = vmatpush1.bf16.msra.mxu0 0
        %891 = vmatprep.subr.bf16.mxu0 0
        %892 = vmatpush1.bf16.msra.mxu0 0
        %893 = vmatprep.subr.bf16.mxu0 0
        %894 = vmatpush1.bf16.msra.mxu0 0
        %895 = vmatprep.subr.bf16.mxu0 0
        %896 = vmatpush1.bf16.msra.mxu0 0
        %897 = vmatprep.subr.bf16.mxu0 0
        %898 = vmatpush1.bf16.msra.mxu0 0
        %899 = vmatprep.subr.bf16.mxu0 0
        %900 = vmatpush1.bf16.msra.mxu0 0
        %901 = vmatprep.subr.bf16.mxu0 0
        %902 = vmatpush1.bf16.msra.mxu0 0
        %903 = vmatprep.subr.bf16.mxu0 0
        %904 = vmatpush1.bf16.msra.mxu0 0
        %905 = vmatprep.subr.bf16.mxu0 0
        %906 = vmatpush1.bf16.msra.mxu0 0
        %907 = vmatprep.subr.bf16.mxu0 0
        %908 = vmatpush1.bf16.msra.mxu0 0
        %909 = vmatprep.subr.bf16.mxu0 0
        %910 = vmatpush1.bf16.msra.mxu0 0
        %911 = vmatprep.subr.bf16.mxu0 0
        %912 = vmatpush1.bf16.msra.mxu0 0
        %913 = vmatprep.mubr.bf16.mxu0 0
        %914 = vmatmul.mubr.bf16.gmra.mrb[0].mxu0 %v876
        %v915 = vpop.f32.mrb[0].mxu0
        %v916 = vadd.f32 0.0, %v915
        %v917 = vpop.f32.mrb[0].mxu0
        %v918 = vpop.f32.mrb[0].mxu0
        %v919 = vpop.f32.mrb[0].mxu0
        %920 = vdwg.mxu0
        %v922 = vsel %vm595, %v826, 0
        %v925 = vsel %vm831, %v593, 0
        %927 = vmatprep.subr.bf16.mxu0 0
        %928 = vmatpush1.bf16.msra.mxu0 %v925
        %929 = vmatprep.subr.bf16.mxu0 0
        %930 = vmatpush1.bf16.msra.mxu0 0
        %931 = vmatprep.subr.bf16.mxu0 0
        %932 = vmatpush1.bf16.msra.mxu0 0
        %933 = vmatprep.subr.bf16.mxu0 0
        %934 = vmatpush1.bf16.msra.mxu0 0
        %935 = vmatprep.subr.bf16.mxu0 0
        %936 = vmatpush1.bf16.msra.mxu0 0
        %937 = vmatprep.subr.bf16.mxu0 0
        %938 = vmatpush1.bf16.msra.mxu0 0
        %939 = vmatprep.subr.bf16.mxu0 0
        %940 = vmatpush1.bf16.msra.mxu0 0
        %941 = vmatprep.subr.bf16.mxu0 0
        %942 = vmatpush1.bf16.msra.mxu0 0
        %943 = vmatprep.subr.bf16.mxu0 0
        %944 = vmatpush1.bf16.msra.mxu0 0
        %945 = vmatprep.subr.bf16.mxu0 0
        %946 = vmatpush1.bf16.msra.mxu0 0
        %947 = vmatprep.subr.bf16.mxu0 0
        %948 = vmatpush1.bf16.msra.mxu0 0
        %949 = vmatprep.subr.bf16.mxu0 0
        %950 = vmatpush1.bf16.msra.mxu0 0
        %951 = vmatprep.subr.bf16.mxu0 0
        %952 = vmatpush1.bf16.msra.mxu0 0
        %953 = vmatprep.subr.bf16.mxu0 0
        %954 = vmatpush1.bf16.msra.mxu0 0
        %955 = vmatprep.subr.bf16.mxu0 0
        %956 = vmatpush1.bf16.msra.mxu0 0
        %957 = vmatprep.subr.bf16.mxu0 0
        %958 = vmatpush1.bf16.msra.mxu0 0
        %959 = vmatprep.mubr.bf16.mxu0 0
        %960 = vmatmul.mubr.bf16.gmra.mrb[0].mxu0 %v922
        %v961 = vpop.f32.mrb[0].mxu0
        %v962 = vadd.f32 0.0, %v961
        %v963 = vpop.f32.mrb[0].mxu0
        %v964 = vpop.f32.mrb[0].mxu0
        %v965 = vpop.f32.mrb[0].mxu0
        %966 = vdwg.mxu0
        %v968 = vsel %vm595, %v827, 0
        %v971 = vsel %vm831, %v594, 0
        %973 = vmatprep.subr.bf16.mxu0 0
        %974 = vmatpush1.bf16.msra.mxu0 %v971
        %975 = vmatprep.subr.bf16.mxu0 0
        %976 = vmatpush1.bf16.msra.mxu0 0
        %977 = vmatprep.subr.bf16.mxu0 0
        %978 = vmatpush1.bf16.msra.mxu0 0
        %979 = vmatprep.subr.bf16.mxu0 0
        %980 = vmatpush1.bf16.msra.mxu0 0
        %981 = vmatprep.subr.bf16.mxu0 0
        %982 = vmatpush1.bf16.msra.mxu0 0
        %983 = vmatprep.subr.bf16.mxu0 0
        %984 = vmatpush1.bf16.msra.mxu0 0
        %985 = vmatprep.subr.bf16.mxu0 0
        %986 = vmatpush1.bf16.msra.mxu0 0
        %987 = vmatprep.subr.bf16.mxu0 0
        %988 = vmatpush1.bf16.msra.mxu0 0
        %989 = vmatprep.subr.bf16.mxu0 0
        %990 = vmatpush1.bf16.msra.mxu0 0
        %991 = vmatprep.subr.bf16.mxu0 0
        %992 = vmatpush1.bf16.msra.mxu0 0
        %993 = vmatprep.subr.bf16.mxu0 0
        %994 = vmatpush1.bf16.msra.mxu0 0
        %995 = vmatprep.subr.bf16.mxu0 0
        %996 = vmatpush1.bf16.msra.mxu0 0
        %997 = vmatprep.subr.bf16.mxu0 0
        %998 = vmatpush1.bf16.msra.mxu0 0
        %999 = vmatprep.subr.bf16.mxu0 0
        %1000 = vmatpush1.bf16.msra.mxu0 0
        %1001 = vmatprep.subr.bf16.mxu0 0
        %1002 = vmatpush1.bf16.msra.mxu0 0
        %1003 = vmatprep.subr.bf16.mxu0 0
        %1004 = vmatpush1.bf16.msra.mxu0 0
        %1005 = vmatprep.mubr.bf16.mxu0 0
        %1006 = vmatmul.mubr.bf16.gmra.mrb[0].mxu0 %v968
        %v1007 = vpop.f32.mrb[0].mxu0
        %v1008 = vadd.f32 0.0, %v1007
        %v1009 = vpop.f32.mrb[0].mxu0
        %v1010 = vpop.f32.mrb[0].mxu0
        %v1011 = vpop.f32.mrb[0].mxu0
        %1012 = vdwg.mxu0
        %1013 = vst.msk [vmem:[#allocation4] sm:$0xff] %vm595, %v870
        %1015 = vrot.lane.b32.xlu0 %v916, 8
        %v1016 = vpop.permute.xlu0 %1015
        %vm1018 = vcmask 130112
        %1019 = vst.msk [vmem:[#allocation4] sm:$0xff] %vm1018, %v1016
        %1021 = vrot.lane.b32.xlu0 %v962, 16
        %v1022 = vpop.permute.xlu0 %1021
        %vm1024 = vcmask 195712
        %1025 = vst.msk [vmem:[#allocation4] sm:$0xff] %vm1024, %v1022
        %1027 = vrot.lane.b32.xlu0 %v1008, 24
        %v1028 = vpop.permute.xlu0 %1027
        %vm1030 = vcmask 261312
        %1031 = vst.msk [vmem:[#allocation4] sm:$0xff] %vm1030, %v1028
        %v1032 = vld [vmem:[#allocation4] sm:$0xff]
        %v1033 = vpack.c.bf16 %v1032, %v1032
        %v1034 = vld [vmem:[#allocation5] sm:$0xf]
        %v1035 = vld [vmem:[#allocation5 + $0x4] sm:$0xf]
        %v1036 = vld [vmem:[#allocation5 + $0x8] sm:$0xf]
        %v1037 = vld [vmem:[#allocation5 + $0xc] sm:$0xf]
        %v1038 = vlaneseq
        %v1039 = vshrl.u32 %v1038, 7
        %v1040 = vsub.s32 1, %v1039
        %v1041 = vrot.slane %v504, %v1040
        %v1046 = vunpack.c.l.b16 %v1034
        %v1047 = vunpack.c.l.b16 %v1035
        %v1048 = vunpack.c.l.b16 %v1036
        %v1049 = vunpack.c.l.b16 %v1037
        %v1050 = vpack.c.b16 %v1047, %v1046
        %v1051 = vpack.c.b16 %v1049, %v1048
        %v1055 = vsel %vm529, %v1033, 0
        %1057 = vmatprep.subr.bf16.mxu0 0
        %1058 = vmatpush1.bf16.msra.mxu0 %v1050
        %1059 = vmatprep.subr.bf16.mxu0 0
        %1060 = vmatpush1.bf16.msra.mxu0 %v1051
        %1061 = vmatprep.subr.bf16.mxu0 0
        %1062 = vmatpush1.bf16.msra.mxu0 0
        %1063 = vmatprep.subr.bf16.mxu0 0
        %1064 = vmatpush1.bf16.msra.mxu0 0
        %1065 = vmatprep.subr.bf16.mxu0 0
        %1066 = vmatpush1.bf16.msra.mxu0 0
        %1067 = vmatprep.subr.bf16.mxu0 0
        %1068 = vmatpush1.bf16.msra.mxu0 0
        %1069 = vmatprep.subr.bf16.mxu0 0
        %1070 = vmatpush1.bf16.msra.mxu0 0
        %1071 = vmatprep.subr.bf16.mxu0 0
        %1072 = vmatpush1.bf16.msra.mxu0 0
        %1073 = vmatprep.subr.bf16.mxu0 0
        %1074 = vmatpush1.bf16.msra.mxu0 0
        %1075 = vmatprep.subr.bf16.mxu0 0
        %1076 = vmatpush1.bf16.msra.mxu0 0
        %1077 = vmatprep.subr.bf16.mxu0 0
        %1078 = vmatpush1.bf16.msra.mxu0 0
        %1079 = vmatprep.subr.bf16.mxu0 0
        %1080 = vmatpush1.bf16.msra.mxu0 0
        %1081 = vmatprep.subr.bf16.mxu0 0
        %1082 = vmatpush1.bf16.msra.mxu0 0
        %1083 = vmatprep.subr.bf16.mxu0 0
        %1084 = vmatpush1.bf16.msra.mxu0 0
        %1085 = vmatprep.subr.bf16.mxu0 0
        %1086 = vmatpush1.bf16.msra.mxu0 0
        %1087 = vmatprep.subr.bf16.mxu0 0
        %1088 = vmatpush1.bf16.msra.mxu0 0
        %1089 = vmatprep.mubr.bf16.mxu0 0
        %1090 = vmatmul.mubr.bf16.gmra.mrb[0].mxu0 %v1055
        %v1091 = vpop.f32.mrb[0].mxu0
        %v1092 = vadd.f32 %v1041, %v1091
        %v1093 = vpop.f32.mrb[0].mxu0
        %v1094 = vpop.f32.mrb[0].mxu0
        %v1095 = vpop.f32.mrb[0].mxu0
        %1096 = vdwg.mxu0
        %v1097 = vadd.f32 %v507, %v1092
        %v1098 = vsel %vm529, %v1097, 0.0
        %1099 = vadd.xlane.f32.xlu0 %v1098
        %v1100 = vpop.xlane.xlu0 %1099
        %v1101 = vrcp.pop 32.0
        %v1102 = vmul.f32 %v1100, %v1101
        %v1103 = vmul.f32 %v1097, %v1097
        %v1104 = vsel %vm529, %v1103, 0.0
        %1105 = vadd.xlane.f32.xlu0 %v1104
        %v1106 = vpop.xlane.xlu0 %1105
        %v1107 = vmul.f32 %v1106, %v1101
        %v1108 = vmul.f32 %v1102, %v1102
        %v1109 = vsub.f32 %v1107, %v1108
        %v1110 = vsub.f32 %v1097, %v1102
        %v1111 = vadd.f32 %v1109, 1e-05
        %v1112 = vrsqrt.pop %v1111
        %v1113 = vmul.f32 %v1110, %v1112
        %v1114 = vlaneseq
        %v1115 = vshrl.u32 %v1114, 7
        %v1116 = vsub.s32 2, %v1115
        %v1117 = vrot.slane %v504, %v1116
        %v1118 = vmul.f32 %v1113, %v1117
        %v1119 = vlaneseq
        %v1120 = vshrl.u32 %v1119, 7
        %v1121 = vsub.s32 3, %v1120
        %v1122 = vrot.slane %v504, %v1121
        %v1123 = vadd.f32 %v1118, %v1122
        %v1124 = vpack.c.bf16 %v1123, %v1123
        %v1125 = vld [vmem:[#allocation7] sm:$0xf]
        %v1126 = vld [vmem:[#allocation7 + $0x4] sm:$0xf]
        %v1127 = vld [vmem:[#allocation7 + $0x8] sm:$0xf]
        %v1128 = vld [vmem:[#allocation7 + $0xc] sm:$0xf]
        %v1129 = vld [vmem:[%s8] sm:$0x1]
        %v1131 = vlaneseq
        %v1132 = vshrl.u32 %v1131, 7
        %v1133 = vsub.s32 0, %v1132
        %v1134 = vrot.slane %v1129, %v1133
        %v1140 = vunpack.c.l.b16 %v1125
        %v1141 = vunpack.c.l.b16 %v1126
        %v1142 = vunpack.c.l.b16 %v1127
        %v1143 = vunpack.c.l.b16 %v1128
        %v1144 = vpack.c.b16 %v1141, %v1140
        %v1145 = vpack.c.b16 %v1143, %v1142
        %v1149 = vsel %vm529, %v1124, 0
        %1151 = vmatprep.subr.bf16.mxu0 0
        %1152 = vmatpush1.bf16.msra.mxu0 %v1144
        %1153 = vmatprep.subr.bf16.mxu0 0
        %1154 = vmatpush1.bf16.msra.mxu0 %v1145
        %1155 = vmatprep.subr.bf16.mxu0 0
        %1156 = vmatpush1.bf16.msra.mxu0 0
        %1157 = vmatprep.subr.bf16.mxu0 0
        %1158 = vmatpush1.bf16.msra.mxu0 0
        %1159 = vmatprep.subr.bf16.mxu0 0
        %1160 = vmatpush1.bf16.msra.mxu0 0
        %1161 = vmatprep.subr.bf16.mxu0 0
        %1162 = vmatpush1.bf16.msra.mxu0 0
        %1163 = vmatprep.subr.bf16.mxu0 0
        %1164 = vmatpush1.bf16.msra.mxu0 0
        %1165 = vmatprep.subr.bf16.mxu0 0
        %1166 = vmatpush1.bf16.msra.mxu0 0
        %1167 = vmatprep.subr.bf16.mxu0 0
        %1168 = vmatpush1.bf16.msra.mxu0 0
        %1169 = vmatprep.subr.bf16.mxu0 0
        %1170 = vmatpush1.bf16.msra.mxu0 0
        %1171 = vmatprep.subr.bf16.mxu0 0
        %1172 = vmatpush1.bf16.msra.mxu0 0
        %1173 = vmatprep.subr.bf16.mxu0 0
        %1174 = vmatpush1.bf16.msra.mxu0 0
        %1175 = vmatprep.subr.bf16.mxu0 0
        %1176 = vmatpush1.bf16.msra.mxu0 0
        %1177 = vmatprep.subr.bf16.mxu0 0
        %1178 = vmatpush1.bf16.msra.mxu0 0
        %1179 = vmatprep.subr.bf16.mxu0 0
        %1180 = vmatpush1.bf16.msra.mxu0 0
        %1181 = vmatprep.subr.bf16.mxu0 0
        %1182 = vmatpush1.bf16.msra.mxu0 0
        %1183 = vmatprep.mubr.bf16.mxu0 0
        %1184 = vmatmul.mubr.bf16.gmra.mrb[0].mxu0 %v1149
        %v1185 = vpop.f32.mrb[0].mxu0
        %v1186 = vadd.f32 %v1134, %v1185
        %v1187 = vpop.f32.mrb[0].mxu0
        %v1188 = vpop.f32.mrb[0].mxu0
        %v1189 = vpop.f32.mrb[0].mxu0
        %1190 = vdwg.mxu0
        %v1191 = vmax.f32 %v1186, 0.0
        %v1192 = vpack.c.bf16 %v1191, %v1191
        %v1193 = vld [vmem:[%s5] sm:$0xf]
        %v1194 = vld [vmem:[%s5 + $0x4] sm:$0xf]
        %v1195 = vld [vmem:[%s5 + $0x8] sm:$0xf]
        %v1196 = vld [vmem:[%s5 + $0xc] sm:$0xf]
        %v1197 = vld [vmem:[%s5 + $0x10] sm:$0xf]
        %v1198 = vld [vmem:[%s5 + $0x14] sm:$0xf]
        %v1199 = vld [vmem:[%s5 + $0x18] sm:$0xf]
        %v1200 = vld [vmem:[%s5 + $0x1c] sm:$0xf]
        %v1201 = vlaneseq
        %v1202 = vshrl.u32 %v1201, 7
        %v1203 = vsub.s32 4, %v1202
        %v1204 = vrot.slane %v504, %v1203
        %v1213 = vunpack.c.l.b16 %v1193
        %v1214 = vunpack.c.l.b16 %v1194
        %v1215 = vunpack.c.l.b16 %v1195
        %v1216 = vunpack.c.l.b16 %v1196
        %v1217 = vunpack.c.l.b16 %v1197
        %v1218 = vunpack.c.l.b16 %v1198
        %v1219 = vunpack.c.l.b16 %v1199
        %v1220 = vunpack.c.l.b16 %v1200
        %v1221 = vpack.c.b16 %v1214, %v1213
        %v1222 = vpack.c.b16 %v1216, %v1215
        %v1223 = vpack.c.b16 %v1218, %v1217
        %v1224 = vpack.c.b16 %v1220, %v1219
        %vm1229 = vcmask 523264
        %v1231 = vsel %vm1229, %v1192, 0
        %1233 = vmatprep.subr.bf16.mxu0 0
        %1234 = vmatpush1.bf16.msra.mxu0 %v1221
        %1235 = vmatprep.subr.bf16.mxu0 0
        %1236 = vmatpush1.bf16.msra.mxu0 %v1222
        %1237 = vmatprep.subr.bf16.mxu0 0
        %1238 = vmatpush1.bf16.msra.mxu0 %v1223
        %1239 = vmatprep.subr.bf16.mxu0 0
        %1240 = vmatpush1.bf16.msra.mxu0 %v1224
        %1241 = vmatprep.subr.bf16.mxu0 0
        %1242 = vmatpush1.bf16.msra.mxu0 0
        %1243 = vmatprep.subr.bf16.mxu0 0
        %1244 = vmatpush1.bf16.msra.mxu0 0
        %1245 = vmatprep.subr.bf16.mxu0 0
        %1246 = vmatpush1.bf16.msra.mxu0 0
        %1247 = vmatprep.subr.bf16.mxu0 0
        %1248 = vmatpush1.bf16.msra.mxu0 0
        %1249 = vmatprep.subr.bf16.mxu0 0
        %1250 = vmatpush1.bf16.msra.mxu0 0
        %1251 = vmatprep.subr.bf16.mxu0 0
        %1252 = vmatpush1.bf16.msra.mxu0 0
        %1253 = vmatprep.subr.bf16.mxu0 0
        %1254 = vmatpush1.bf16.msra.mxu0 0
        %1255 = vmatprep.subr.bf16.mxu0 0
        %1256 = vmatpush1.bf16.msra.mxu0 0
        %1257 = vmatprep.subr.bf16.mxu0 0
        %1258 = vmatpush1.bf16.msra.mxu0 0
        %1259 = vmatprep.subr.bf16.mxu0 0
        %1260 = vmatpush1.bf16.msra.mxu0 0
        %1261 = vmatprep.subr.bf16.mxu0 0
        %1262 = vmatpush1.bf16.msra.mxu0 0
        %1263 = vmatprep.subr.bf16.mxu0 0
        %1264 = vmatpush1.bf16.msra.mxu0 0
        %1265 = vmatprep.mubr.bf16.mxu0 0
        %1266 = vmatmul.mubr.bf16.gmra.mrb[0].mxu0 %v1231
        %v1267 = vpop.f32.mrb[0].mxu0
        %v1268 = vadd.f32 %v1204, %v1267
        %v1269 = vpop.f32.mrb[0].mxu0
        %v1270 = vpop.f32.mrb[0].mxu0
        %v1271 = vpop.f32.mrb[0].mxu0
        %1272 = vdwg.mxu0
        %v1273 = vadd.f32 %v1123, %v1268
        %v1274 = vsel %vm529, %v1273, 0.0
        %1275 = vadd.xlane.f32.xlu0 %v1274
        %v1276 = vpop.xlane.xlu0 %1275
        %v1277 = vmul.f32 %v1276, %v1101
        %v1278 = vmul.f32 %v1273, %v1273
        %v1279 = vsel %vm529, %v1278, 0.0
        %1280 = vadd.xlane.f32.xlu0 %v1279
        %v1281 = vpop.xlane.xlu0 %1280
        %v1282 = vmul.f32 %v1281, %v1101
        %v1283 = vmul.f32 %v1277, %v1277
        %v1284 = vsub.f32 %v1282, %v1283
        %v1285 = vsub.f32 %v1273, %v1277
        %v1286 = vadd.f32 %v1284, 1e-05
        %v1287 = vrsqrt.pop %v1286
        %v1288 = vmul.f32 %v1285, %v1287
        %v1289 = vlaneseq
        %v1290 = vshrl.u32 %v1289, 7
        %v1291 = vsub.s32 5, %v1290
        %v1292 = vrot.slane %v504, %v1291
        %v1293 = vmul.f32 %v1288, %v1292
        %v1294 = vlaneseq
        %v1295 = vshrl.u32 %v1294, 7
        %v1296 = vsub.s32 6, %v1295
        %v1297 = vrot.slane %v504, %v1296
        %v1298 = vadd.f32 %v1293, %v1297
        %1299 = vst.msk [vmem:[%s389] sm:$0xff] %vm529, %v1298
        %p1300 = scmp.lt.s32.totalorder %s26, 1
        %s1301 = scalar_select %p1300, %s26, 1
        %p1302 = scmp.lt.s32.totalorder %s27, 0
        %s1303 = scalar_select %p1302, %s27, 0
        %s1304 = sadd.s32 %s1303, %s1301
        %s1305 = smul.addr %s1304, 8
        %s1306 = scalar_lea.vmem %s9, %s1305
        // Predicated region
        $region73: #{transformer_encoder_forward.2} parent=55 // pred_check
          %p1307 = pneg %p248
        $region74: #{transformer_encoder_forward.2} parent=55 // pred_check_branch
          %1309 = sbr.rel (%p1307) target = $region76
        $region75: #{transformer_encoder_forward.2} parent=55 // pred_region
          _
        $region76: #{transformer_encoder_forward.2} parent=55 // pred_fallthru
          _
      $region56: #{transformer_encoder_forward.2} parent=5 // pred_fallthru
        _
      %p1310 = scmp.le.s32.totalorder 2, %s17
      // Predicated region
      $region77: #{transformer_encoder_forward.2} parent=5 // pred_check
        %p1311 = pneg %p1310
      $region78: #{transformer_encoder_forward.2} parent=5 // pred_check_branch
        %1313 = sbr.rel (%p1311) target = $region80
      $region79: #{transformer_encoder_forward.2} parent=5 // pred_region
        %s1314 = ssub.s32 %s17, 2
        // Predicated region
        $region81: #{transformer_encoder_forward.2} parent=79 // pred_check
          %p1315 = pneg %p254
        $region82: #{transformer_encoder_forward.2} parent=79 // pred_check_branch
          %1317 = sbr.rel (%p1315) target = $region84
        $region83: #{transformer_encoder_forward.2} parent=79 // pred_region
          %p1318 = scmp.lt.s32.totalorder %s28, 1
          %s1319 = scalar_select %p1318, %s28, 1
          %p1320 = scmp.lt.s32.totalorder %s29, 0
          %s1321 = scalar_select %p1320, %s29, 0
          %s1322 = sadd.s32 %s1321, %s1319
          %s1323 = smul.addr %s1322, 8
          %s1324 = scalar_lea.vmem %s9, %s1323
        $region84: #{transformer_encoder_forward.2} parent=79 // pred_fallthru
          _
      $region80: #{transformer_encoder_forward.2} parent=5 // pred_fallthru
        _
    $region6: #{transformer_encoder_forward.2} parent=1 // loop_footer
      %s21 = sadd.s32 1, %s17
    $region7: #{transformer_encoder_forward.2} parent=1 // loop_footer_branch
      %16 = sbr.rel target = $region3
    $region8: #{transformer_encoder_forward.2} parent=1 // loop_exit
      _
    %1325 = vsyncpa [#allocation6], 1
    %s1326 = scalar_lea.sflag [#allocation6], 1
    %1327 = vsyncpa %s1326, 1
    %1328 = vsyncpa [#allocation8], 1

</llo_original>
